<compile_context>
chip_gen: v5e
topology: v5e:2x2
jax: 0.10.0
libtpu: 0.0.40
codegen_flags: <defaults>
</compile_context>

<pallas_src>
import functools
import math

import jax
import jax.numpy as jnp
from jax import lax
from jax.experimental import pallas as pl
from jax.experimental.pallas import tpu as pltpu


def _layernorm(v32, w, b, eps=1e-5):
    # matches torch LayerNorm (biased variance), computed in float32
    mean = jnp.mean(v32, axis=-1, keepdims=True)
    var = jnp.mean((v32 - mean) ** 2, axis=-1, keepdims=True)
    return (v32 - mean) * lax.rsqrt(var + eps) * w + b


# ------------------------- fused per-layer kernel -------------------------
def fused_layer_kernel(x_ref, ln1w, ln1b, wqkv, bqkv, wo, bo,
                       ln2w, ln2b, wfc, bfc, wpj, bpj,
                       out_ref, xa_scr, h2_scr, acc_scr, *, n_head):
    """Grid = (batch_tiles, ff_tiles).

    ff step 0 computes the whole attention block (full-width QKV projection,
    in-kernel head loop, out-projection, residual, LN2) into VMEM scratch;
    every ff step then adds one K-tile of the MLP into the f32 accumulator;
    the last ff step writes the final residual output.
    """
    f = pl.program_id(1)
    Bt, L, D = x_ref.shape
    Dh = D // n_head
    bf16, f32 = jnp.bfloat16, jnp.float32

    @pl.when(f == 0)
    def _attention_and_ln2():
        x32 = x_ref[...].astype(f32)                                 # (Bt, L, D)
        h = _layernorm(x32, ln1w[...], ln1b[...]).astype(bf16)
        h2d = h.reshape(Bt * L, D)
        # Full-width QKV projection; 1/sqrt(Dh) already folded into Wq/bq.
        qkv = jnp.dot(h2d, wqkv[...],
                      preferred_element_type=f32) + bqkv[...]        # (Bt*L, 3D)
        wo_v = wo[...]                                               # (D, D) bf16

        attn = jnp.zeros((Bt * L, D), f32)
        for hh in range(n_head):                                     # short static loop
            q_h = qkv[:, hh * Dh:(hh + 1) * Dh].reshape(Bt, L, Dh).astype(bf16)
            k_h = qkv[:, D + hh * Dh:D + (hh + 1) * Dh].reshape(Bt, L, Dh).astype(bf16)
            v_h = qkv[:, 2 * D + hh * Dh:2 * D + (hh + 1) * Dh].reshape(Bt, L, Dh).astype(bf16)
            # batched contraction over Dh -- no explicit transpose of K
            s = jnp.einsum('bld,bmd->blm', q_h, k_h,
                           preferred_element_type=f32)               # (Bt, L, L)
            s = s - jnp.max(s, axis=-1, keepdims=True)
            p = jnp.exp(s)
            p = p * pl.reciprocal(jnp.sum(p, axis=-1, keepdims=True), approx=True)
            o_h = jnp.einsum('blm,bmd->bld', p.astype(bf16), v_h,
                             preferred_element_type=f32)             # (Bt, L, Dh)
            attn += jnp.dot(o_h.reshape(Bt * L, Dh).astype(bf16),
                            wo_v[hh * Dh:(hh + 1) * Dh, :],
                            preferred_element_type=f32)              # (Bt*L, D)

        xa = x32 + (attn + bo[...]).reshape(Bt, L, D)                # attn residual
        xa_scr[...] = xa
        h2_scr[...] = _layernorm(xa, ln2w[...], ln2b[...]).astype(bf16)
        acc_scr[...] = jnp.zeros_like(acc_scr)

    # ---- MLP K-tile (runs on every ff step) ----
    h2 = h2_scr[...].reshape(Bt * L, D)
    g = jnp.dot(h2, wfc[...], preferred_element_type=f32) + bfc[...]  # (Bt*L, TF)
    g = g * jax.nn.sigmoid(1.702 * g)                                 # QuickGELU
    acc_scr[...] += jnp.dot(g.astype(bf16), wpj[...],
                            preferred_element_type=f32).reshape(Bt, L, D)

    @pl.when(f == pl.num_programs(1) - 1)
    def _finalize():
        out_ref[...] = (xa_scr[...] + acc_scr[...] + bpj[...]).astype(out_ref.dtype)


def _vmem_limit_bytes(bt, L, D, ff_tile):
    """Rough residency estimate (double-buffered blocks + scratch), clamped."""
    blk = bt * L * D
    est = 0
    est += 2 * blk * 4                 # x block (f32, double buffered)
    est += 2 * blk * 4                 # out block
    est += 2 * (D * 3 * D) * 2         # wqkv bf16
    est += 2 * (D * D) * 2             # wo bf16
    est += 2 * 2 * (D * ff_tile) * 2   # wfc + wpj tiles bf16
    est += blk * (4 + 2 + 4)           # scratch: xa(f32) + h2(bf16) + acc(f32)
    est += 16 * D * 4                  # biases / LN params (rough)
    est = int(est * 1.5) + (1 << 20)   # headroom
    return max(16 * 1024 * 1024, min(est, 48 * 1024 * 1024))


def _layer_forward(x, lp, n_head, ff_tile, bt):
    N, L, D = x.shape
    (ln1w, ln1b, wqkv, bqkv, wo, bo, ln2w, ln2b, wfc, bfc, wpj, bpj) = lp
    FF = wfc.shape[1]
    nB = N // bt
    nF = FF // ff_tile

    def rep2(shape):  # replicated 2-D param (constant index across the grid)
        return pl.BlockSpec(tuple(shape), lambda b, f: (0, 0))

    in_specs = [
        pl.BlockSpec((bt, L, D), lambda b, f: (b, 0, 0)),            # x
        rep2(ln1w.shape), rep2(ln1b.shape),
        rep2(wqkv.shape), rep2(bqkv.shape),
        rep2(wo.shape), rep2(bo.shape),
        rep2(ln2w.shape), rep2(ln2b.shape),
        pl.BlockSpec((D, ff_tile), lambda b, f: (0, f)),             # wfc tile
        pl.BlockSpec((1, ff_tile), lambda b, f: (0, f)),             # bfc tile
        pl.BlockSpec((ff_tile, D), lambda b, f: (f, 0)),             # wpj tile
        rep2(bpj.shape),
    ]
    kernel = functools.partial(fused_layer_kernel, n_head=n_head)
    return pl.pallas_call(
        kernel,
        out_shape=jax.ShapeDtypeStruct((N, L, D), x.dtype),
        grid=(nB, nF),
        in_specs=in_specs,
        out_specs=pl.BlockSpec((bt, L, D), lambda b, f: (b, 0, 0)),
        scratch_shapes=[pltpu.VMEM((bt, L, D), jnp.float32),         # attn residual
                        pltpu.VMEM((bt, L, D), jnp.bfloat16),        # ln_2(xa)
                        pltpu.VMEM((bt, L, D), jnp.float32)],        # MLP accumulator
        compiler_params=pltpu.CompilerParams(
            # ff axis must stay sequential ("arbitrary"): scratch accumulates over it.
            dimension_semantics=("parallel", "arbitrary"),
            vmem_limit_bytes=_vmem_limit_bytes(bt, L, D, ff_tile)),
    )(x, *lp)


def _pick_ff_tile(ff):
    if ff <= 2048:                     # keep whole FF resident when it is small
        return ff
    for t in (1024, 512, 256, 128):
        if ff % t == 0:
            return t
    return ff


def _pick_batch_tile(n):
    # prefer >= 2 batch-tile grid steps so both v7x TensorCores get work
    for bt in (16, 8, 4, 2, 1):
        if n % bt == 0 and n // bt >= 2:
            return bt
    return max(1, n)


# ------------------------------ parameter prep --------------------------------
def init_layer_params(key, d_model):
    """Deterministic synthetic init; weights stored as (in, out) so kernel does x @ W."""
    D = d_model
    ks = jax.random.split(key, 6)
    std = 0.02
    f32 = jnp.float32
    ln1w = jnp.ones((1, D), f32)
    ln1b = jnp.zeros((1, D), f32)
    wq = jax.random.normal(ks[0], (D, D), f32) * std
    wk = jax.random.normal(ks[1], (D, D), f32) * std
    wv = jax.random.normal(ks[2], (D, D), f32) * std
    bq = jnp.zeros((1, D), f32)
    bk = jnp.zeros((1, D), f32)
    bv = jnp.zeros((1, D), f32)
    wo = jax.random.normal(ks[3], (D, D), f32) * std
    bo = jnp.zeros((1, D), f32)
    ln2w = jnp.ones((1, D), f32)
    ln2b = jnp.zeros((1, D), f32)
    wfc = jax.random.normal(ks[4], (D, 4 * D), f32) * std
    bfc = jnp.zeros((1, 4 * D), f32)
    wpj = jax.random.normal(ks[5], (4 * D, D), f32) * std
    bpj = jnp.zeros((1, D), f32)
    return (ln1w, ln1b, wq, wk, wv, bq, bk, bv, wo, bo,
            ln2w, ln2b, wfc, bfc, wpj, bpj)


def prepare_layer_params(p, n_head):
    """Canonical f32 params -> kernel params (bf16 weights, fused QKV, scale folded)."""
    (ln1w, ln1b, wq, wk, wv, bq, bk, bv, wo, bo,
     ln2w, ln2b, wfc, bfc, wpj, bpj) = p
    D = wq.shape[0]
    Dh = D // n_head
    scale = 1.0 / math.sqrt(Dh)
    bf16, f32 = jnp.bfloat16, jnp.float32
    wqkv = jnp.concatenate([wq * scale, wk, wv], axis=1).astype(bf16)   # (D, 3D)
    bqkv = jnp.concatenate([bq * scale, bk, bv], axis=1).astype(f32)    # (1, 3D)
    return (ln1w.astype(f32), ln1b.astype(f32),
            wqkv, bqkv, wo.astype(bf16), bo.astype(f32),
            ln2w.astype(f32), ln2b.astype(f32),
            wfc.astype(bf16), bfc.astype(f32),
            wpj.astype(bf16), bpj.astype(f32))


def transformer_forward(x, prepared_layers, n_head, ff_tile, bt):
    """Equivalent of Transformer.forward: sequential ResidualAttentionBlocks."""
    for lp in prepared_layers:
        x = _layer_forward(x, lp, n_head, ff_tile, bt)
    return x


# ---------------- pure-JAX reference (mirrors the PyTorch module) ----------------
def _ref_block(x, p, n_head):
    (ln1w, ln1b, wq, wk, wv, bq, bk, bv, wo, bo,
     ln2w, ln2b, wfc, bfc, wpj, bpj) = p

    def ln(v, w, b):
        m = v.mean(-1, keepdims=True)
        var = ((v - m) ** 2).mean(-1, keepdims=True)
        return (v - m) / jnp.sqrt(var + 1e-5) * w + b

    N, L, D = x.shape
    H, Dh = n_head, D // n_head
    h = ln(x, ln1w, ln1b)
    q = (h @ wq + bq).reshape(N, L, H, Dh)
    k = (h @ wk + bk).reshape(N, L, H, Dh)
    v = (h @ wv + bv).reshape(N, L, H, Dh)
    s = jnp.einsum('nlhd,nmhd->nhlm', q, k) / math.sqrt(Dh)
    a = jax.nn.softmax(s, axis=-1)
    o = jnp.einsum('nhlm,nmhd->nlhd', a, v).reshape(N, L, D)
    x = x + (o @ wo + bo)
    h2 = ln(x, ln2w, ln2b)
    f = h2 @ wfc + bfc
    f = f * jax.nn.sigmoid(1.702 * f)
    return x + (f @ wpj + bpj)


def _ref_transformer(x, all_layer_params, n_head):
    for p in all_layer_params:
        x = _ref_block(x, p, n_head)
    return x


if __name__ == "__main__":
    # Small, shape-consistent config: Transformer(width=32, layers=2, heads=4)
    width, layers, heads = 32, 2, 4
    batch, seq = 2, 8

    key = jax.random.PRNGKey(0)
    kx, kp = jax.random.split(key)
    x = jax.random.normal(kx, (batch, seq, width), jnp.float32)     # (N, L, D)

    layer_keys = jax.random.split(kp, layers)
    all_params = [init_layer_params(k, width) for k in layer_keys]
    prepared = [prepare_layer_params(p, heads) for p in all_params]
    ff_tile = _pick_ff_tile(4 * width)
    bt = _pick_batch_tile(batch)

    fwd = jax.jit(functools.partial(transformer_forward,
                                    n_head=heads, ff_tile=ff_tile, bt=bt))
    out = jax.block_until_ready(fwd(x, prepared))

    ref = _ref_transformer(x, all_params, heads)
    assert out.shape == (batch, seq, width)
    # bf16 matmul operands + approx reciprocal vs f32 reference -> looser tolerance
    assert jnp.allclose(out, ref, atol=2e-2, rtol=2e-2), "mismatch vs reference"

    print("KERNEL_OK")
</pallas_src>

<mosaic_0001>
module attributes {stable_mosaic.version = 11 : i64} {
  func.func @fused_layer_kernel(%arg0: i32, %arg1: i32, %arg2: memref<1x8x32xf32, #tpu.memory_space<vmem>>, %arg3: memref<1x32xf32, #tpu.memory_space<vmem>>, %arg4: memref<1x32xf32, #tpu.memory_space<vmem>>, %arg5: memref<32x96xbf16, #tpu.memory_space<vmem>>, %arg6: memref<1x96xf32, #tpu.memory_space<vmem>>, %arg7: memref<32x32xbf16, #tpu.memory_space<vmem>>, %arg8: memref<1x32xf32, #tpu.memory_space<vmem>>, %arg9: memref<1x32xf32, #tpu.memory_space<vmem>>, %arg10: memref<1x32xf32, #tpu.memory_space<vmem>>, %arg11: memref<32x128xbf16, #tpu.memory_space<vmem>>, %arg12: memref<1x128xf32, #tpu.memory_space<vmem>>, %arg13: memref<128x32xbf16, #tpu.memory_space<vmem>>, %arg14: memref<1x32xf32, #tpu.memory_space<vmem>>, %arg15: memref<1x8x32xf32, #tpu.memory_space<vmem>>, %arg16: memref<1x8x32xf32, #tpu.memory_space<vmem>>, %arg17: memref<1x8x32xbf16, #tpu.memory_space<vmem>>, %arg18: memref<1x8x32xf32, #tpu.memory_space<vmem>>) attributes {dimension_semantics = [#tpu.dimension_semantics<parallel>, #tpu.dimension_semantics<arbitrary>], iteration_bounds = array<i64: 2, 1>, scalar_prefetch = 0 : i64, scratch_operands = 3 : i64, tpu.core_type = #tpu.core_type<tc>, window_params = [{transform_indices = @transform_0, window_bounds = array<i64: 1, 8, 32>}, {pipeline_mode = #tpu.pipeline_mode<synchronous>, transform_indices = @transform_1, window_bounds = array<i64: 1, 32>}, {pipeline_mode = #tpu.pipeline_mode<synchronous>, transform_indices = @transform_2, window_bounds = array<i64: 1, 32>}, {pipeline_mode = #tpu.pipeline_mode<synchronous>, transform_indices = @transform_3, window_bounds = array<i64: 32, 96>}, {pipeline_mode = #tpu.pipeline_mode<synchronous>, transform_indices = @transform_4, window_bounds = array<i64: 1, 96>}, {pipeline_mode = #tpu.pipeline_mode<synchronous>, transform_indices = @transform_5, window_bounds = array<i64: 32, 32>}, {pipeline_mode = #tpu.pipeline_mode<synchronous>, transform_indices = @transform_6, window_bounds = array<i64: 1, 32>}, {pipeline_mode = #tpu.pipeline_mode<synchronous>, transform_indices = @transform_7, window_bounds = array<i64: 1, 32>}, {pipeline_mode = #tpu.pipeline_mode<synchronous>, transform_indices = @transform_8, window_bounds = array<i64: 1, 32>}, {transform_indices = @transform_9, window_bounds = array<i64: 32, 128>}, {transform_indices = @transform_10, window_bounds = array<i64: 1, 128>}, {transform_indices = @transform_11, window_bounds = array<i64: 128, 32>}, {pipeline_mode = #tpu.pipeline_mode<synchronous>, transform_indices = @transform_12, window_bounds = array<i64: 1, 32>}, {transform_indices = @transform_13, window_bounds = array<i64: 1, 8, 32>}]} {
    %c0_i32 = arith.constant 0 : i32
    %0 = arith.cmpi eq, %arg1, %c0_i32 : i32
    %1 = arith.extui %0 : i1 to i32
    %c0_i32_0 = arith.constant 0 : i32
    %2 = arith.cmpi ne, %1, %c0_i32_0 : i32
    scf.if %2 {
      %c0_20 = arith.constant 0 : index
      %c0_21 = arith.constant 0 : index
      %c0_22 = arith.constant 0 : index
      %28 = vector.load %arg2[%c0_20, %c0_21, %c0_22] : memref<1x8x32xf32, #tpu.memory_space<vmem>>, vector<1x8x32xf32>
      %c0_23 = arith.constant 0 : index
      %c0_24 = arith.constant 0 : index
      %29 = vector.load %arg3[%c0_23, %c0_24] : memref<1x32xf32, #tpu.memory_space<vmem>>, vector<1x32xf32>
      %c0_25 = arith.constant 0 : index
      %c0_26 = arith.constant 0 : index
      %30 = vector.load %arg4[%c0_25, %c0_26] : memref<1x32xf32, #tpu.memory_space<vmem>>, vector<1x32xf32>
      %cst_27 = arith.constant dense<0.000000e+00> : vector<1x8xf32>
      %31 = vector.multi_reduction <add>, %28, %cst_27 [2] : vector<1x8x32xf32> to vector<1x8xf32>
      %32 = vector.shape_cast %31 : vector<1x8xf32> to vector<1x8x1xf32>
      %cst_28 = arith.constant 3.200000e+01 : f32
      %33 = vector.broadcast %cst_28 : f32 to vector<1x8x1xf32>
      %34 = arith.divf %32, %33 : vector<1x8x1xf32>
      %35 = vector.broadcast %34 : vector<1x8x1xf32> to vector<1x8x32xf32>
      %36 = arith.subf %28, %35 : vector<1x8x32xf32>
      %37 = arith.mulf %36, %36 : vector<1x8x32xf32>
      %cst_29 = arith.constant dense<0.000000e+00> : vector<1x8xf32>
      %38 = vector.multi_reduction <add>, %37, %cst_29 [2] : vector<1x8x32xf32> to vector<1x8xf32>
      %39 = vector.shape_cast %38 : vector<1x8xf32> to vector<1x8x1xf32>
      %cst_30 = arith.constant 3.200000e+01 : f32
      %40 = vector.broadcast %cst_30 : f32 to vector<1x8x1xf32>
      %41 = arith.divf %39, %40 : vector<1x8x1xf32>
      %42 = vector.broadcast %34 : vector<1x8x1xf32> to vector<1x8x32xf32>
      %43 = arith.subf %28, %42 : vector<1x8x32xf32>
      %cst_31 = arith.constant 9.99999974E-6 : f32
      %44 = vector.broadcast %cst_31 : f32 to vector<1x8x1xf32>
      %45 = arith.addf %41, %44 : vector<1x8x1xf32>
      %46 = math.rsqrt %45 : vector<1x8x1xf32>
      %47 = vector.broadcast %46 : vector<1x8x1xf32> to vector<1x8x32xf32>
      %48 = arith.mulf %43, %47 : vector<1x8x32xf32>
      %49 = vector.shape_cast %29 : vector<1x32xf32> to vector<1x1x32xf32>
      %50 = vector.broadcast %49 : vector<1x1x32xf32> to vector<1x8x32xf32>
      %51 = arith.mulf %48, %50 : vector<1x8x32xf32>
      %52 = vector.shape_cast %30 : vector<1x32xf32> to vector<1x1x32xf32>
      %53 = vector.broadcast %52 : vector<1x1x32xf32> to vector<1x8x32xf32>
      %54 = arith.addf %51, %53 : vector<1x8x32xf32>
      %55 = arith.truncf %54 : vector<1x8x32xf32> to vector<1x8x32xbf16>
      %56 = vector.shape_cast %55 : vector<1x8x32xbf16> to vector<8x32xbf16>
      %c0_32 = arith.constant 0 : index
      %c0_33 = arith.constant 0 : index
      %57 = vector.load %arg5[%c0_32, %c0_33] : memref<32x96xbf16, #tpu.memory_space<vmem>>, vector<32x96xbf16>
      %cst_34 = arith.constant dense<0.000000e+00> : vector<8x96xf32>
      %58 = tpu.matmul %56, %57, %cst_34 {dimension_numbers = #tpu.dot_dimension_numbers<[1], [0], [0], [1], [0, 0, 1, 1], [], []>} : vector<8x32xbf16>, vector<32x96xbf16>, vector<8x96xf32> -> vector<8x96xf32>
      %c0_35 = arith.constant 0 : index
      %c0_36 = arith.constant 0 : index
      %59 = vector.load %arg6[%c0_35, %c0_36] : memref<1x96xf32, #tpu.memory_space<vmem>>, vector<1x96xf32>
      %60 = vector.broadcast %59 : vector<1x96xf32> to vector<8x96xf32>
      %61 = arith.addf %58, %60 : vector<8x96xf32>
      %c0_37 = arith.constant 0 : index
      %c0_38 = arith.constant 0 : index
      %62 = vector.load %arg7[%c0_37, %c0_38] : memref<32x32xbf16, #tpu.memory_space<vmem>>, vector<32x32xbf16>
      %cst_39 = arith.constant 0.000000e+00 : f32
      %63 = vector.broadcast %cst_39 : f32 to vector<8x32xf32>
      %64 = vector.extract_strided_slice %61 {offsets = [0, 0], sizes = [8, 8], strides = [1, 1]} : vector<8x96xf32> to vector<8x8xf32>
      %65 = vector.shape_cast %64 : vector<8x8xf32> to vector<1x8x8xf32>
      %66 = arith.truncf %65 : vector<1x8x8xf32> to vector<1x8x8xbf16>
      %67 = vector.extract_strided_slice %61 {offsets = [0, 32], sizes = [8, 8], strides = [1, 1]} : vector<8x96xf32> to vector<8x8xf32>
      %68 = vector.shape_cast %67 : vector<8x8xf32> to vector<1x8x8xf32>
      %69 = arith.truncf %68 : vector<1x8x8xf32> to vector<1x8x8xbf16>
      %70 = vector.extract_strided_slice %61 {offsets = [0, 64], sizes = [8, 8], strides = [1, 1]} : vector<8x96xf32> to vector<8x8xf32>
      %71 = vector.shape_cast %70 : vector<8x8xf32> to vector<1x8x8xf32>
      %72 = arith.truncf %71 : vector<1x8x8xf32> to vector<1x8x8xbf16>
      "tpu.trace_start"() <{level = 10 : i32, message = "bld,bmd->blm"}> : () -> ()
      %cst_40 = arith.constant dense<0.000000e+00> : vector<1x8x8xf32>
      %73 = tpu.matmul %66, %69, %cst_40 {dimension_numbers = #tpu.dot_dimension_numbers<[2], [2], [1], [1], [0, 0, 0, 1, 1, 1], [0], [0]>} : vector<1x8x8xbf16>, vector<1x8x8xbf16>, vector<1x8x8xf32> -> vector<1x8x8xf32>
      "tpu.trace_stop"() : () -> ()
      %cst_41 = arith.constant dense<0xFF800000> : vector<1x8xf32>
      %74 = vector.multi_reduction <maximumf>, %73, %cst_41 [2] : vector<1x8x8xf32> to vector<1x8xf32>
      %75 = vector.shape_cast %74 : vector<1x8xf32> to vector<1x8x1xf32>
      %76 = vector.broadcast %75 : vector<1x8x1xf32> to vector<1x8x8xf32>
      %77 = arith.subf %73, %76 : vector<1x8x8xf32>
      %78 = math.exp %77 : vector<1x8x8xf32>
      %cst_42 = arith.constant dense<0.000000e+00> : vector<1x8xf32>
      %79 = vector.multi_reduction <add>, %78, %cst_42 [2] : vector<1x8x8xf32> to vector<1x8xf32>
      %80 = vector.shape_cast %79 : vector<1x8xf32> to vector<1x8x1xf32>
      %81 = tpu.reciprocal %80 {approx = true} : vector<1x8x1xf32> -> vector<1x8x1xf32>
      %82 = vector.broadcast %81 : vector<1x8x1xf32> to vector<1x8x8xf32>
      %83 = arith.mulf %78, %82 : vector<1x8x8xf32>
      %84 = arith.truncf %83 : vector<1x8x8xf32> to vector<1x8x8xbf16>
      "tpu.trace_start"() <{level = 10 : i32, message = "blm,bmd->bld"}> : () -> ()
      %cst_43 = arith.constant dense<0.000000e+00> : vector<1x8x8xf32>
      %85 = tpu.matmul %84, %72, %cst_43 {dimension_numbers = #tpu.dot_dimension_numbers<[2], [1], [1], [2], [0, 0, 0, 1, 1, 2], [0], [0]>} : vector<1x8x8xbf16>, vector<1x8x8xbf16>, vector<1x8x8xf32> -> vector<1x8x8xf32>
      "tpu.trace_stop"() : () -> ()
      %86 = vector.shape_cast %85 : vector<1x8x8xf32> to vector<8x8xf32>
      %87 = arith.truncf %86 : vector<8x8xf32> to vector<8x8xbf16>
      %88 = vector.extract_strided_slice %62 {offsets = [0, 0], sizes = [8, 32], strides = [1, 1]} : vector<32x32xbf16> to vector<8x32xbf16>
      %cst_44 = arith.constant dense<0.000000e+00> : vector<8x32xf32>
      %89 = tpu.matmul %87, %88, %cst_44 {dimension_numbers = #tpu.dot_dimension_numbers<[1], [0], [0], [1], [0, 0, 1, 1], [], []>} : vector<8x8xbf16>, vector<8x32xbf16>, vector<8x32xf32> -> vector<8x32xf32>
      %90 = arith.addf %63, %89 : vector<8x32xf32>
      %91 = vector.extract_strided_slice %61 {offsets = [0, 8], sizes = [8, 8], strides = [1, 1]} : vector<8x96xf32> to vector<8x8xf32>
      %92 = vector.shape_cast %91 : vector<8x8xf32> to vector<1x8x8xf32>
      %93 = arith.truncf %92 : vector<1x8x8xf32> to vector<1x8x8xbf16>
      %94 = vector.extract_strided_slice %61 {offsets = [0, 40], sizes = [8, 8], strides = [1, 1]} : vector<8x96xf32> to vector<8x8xf32>
      %95 = vector.shape_cast %94 : vector<8x8xf32> to vector<1x8x8xf32>
      %96 = arith.truncf %95 : vector<1x8x8xf32> to vector<1x8x8xbf16>
      %97 = vector.extract_strided_slice %61 {offsets = [0, 72], sizes = [8, 8], strides = [1, 1]} : vector<8x96xf32> to vector<8x8xf32>
      %98 = vector.shape_cast %97 : vector<8x8xf32> to vector<1x8x8xf32>
      %99 = arith.truncf %98 : vector<1x8x8xf32> to vector<1x8x8xbf16>
      "tpu.trace_start"() <{level = 10 : i32, message = "bld,bmd->blm"}> : () -> ()
      %cst_45 = arith.constant dense<0.000000e+00> : vector<1x8x8xf32>
      %100 = tpu.matmul %93, %96, %cst_45 {dimension_numbers = #tpu.dot_dimension_numbers<[2], [2], [1], [1], [0, 0, 0, 1, 1, 1], [0], [0]>} : vector<1x8x8xbf16>, vector<1x8x8xbf16>, vector<1x8x8xf32> -> vector<1x8x8xf32>
      "tpu.trace_stop"() : () -> ()
      %cst_46 = arith.constant dense<0xFF800000> : vector<1x8xf32>
      %101 = vector.multi_reduction <maximumf>, %100, %cst_46 [2] : vector<1x8x8xf32> to vector<1x8xf32>
      %102 = vector.shape_cast %101 : vector<1x8xf32> to vector<1x8x1xf32>
      %103 = vector.broadcast %102 : vector<1x8x1xf32> to vector<1x8x8xf32>
      %104 = arith.subf %100, %103 : vector<1x8x8xf32>
      %105 = math.exp %104 : vector<1x8x8xf32>
      %cst_47 = arith.constant dense<0.000000e+00> : vector<1x8xf32>
      %106 = vector.multi_reduction <add>, %105, %cst_47 [2] : vector<1x8x8xf32> to vector<1x8xf32>
      %107 = vector.shape_cast %106 : vector<1x8xf32> to vector<1x8x1xf32>
      %108 = tpu.reciprocal %107 {approx = true} : vector<1x8x1xf32> -> vector<1x8x1xf32>
      %109 = vector.broadcast %108 : vector<1x8x1xf32> to vector<1x8x8xf32>
      %110 = arith.mulf %105, %109 : vector<1x8x8xf32>
      %111 = arith.truncf %110 : vector<1x8x8xf32> to vector<1x8x8xbf16>
      "tpu.trace_start"() <{level = 10 : i32, message = "blm,bmd->bld"}> : () -> ()
      %cst_48 = arith.constant dense<0.000000e+00> : vector<1x8x8xf32>
      %112 = tpu.matmul %111, %99, %cst_48 {dimension_numbers = #tpu.dot_dimension_numbers<[2], [1], [1], [2], [0, 0, 0, 1, 1, 2], [0], [0]>} : vector<1x8x8xbf16>, vector<1x8x8xbf16>, vector<1x8x8xf32> -> vector<1x8x8xf32>
      "tpu.trace_stop"() : () -> ()
      %113 = vector.shape_cast %112 : vector<1x8x8xf32> to vector<8x8xf32>
      %114 = arith.truncf %113 : vector<8x8xf32> to vector<8x8xbf16>
      %115 = vector.extract_strided_slice %62 {offsets = [8, 0], sizes = [8, 32], strides = [1, 1]} : vector<32x32xbf16> to vector<8x32xbf16>
      %cst_49 = arith.constant dense<0.000000e+00> : vector<8x32xf32>
      %116 = tpu.matmul %114, %115, %cst_49 {dimension_numbers = #tpu.dot_dimension_numbers<[1], [0], [0], [1], [0, 0, 1, 1], [], []>} : vector<8x8xbf16>, vector<8x32xbf16>, vector<8x32xf32> -> vector<8x32xf32>
      %117 = arith.addf %90, %116 : vector<8x32xf32>
      %118 = vector.extract_strided_slice %61 {offsets = [0, 16], sizes = [8, 8], strides = [1, 1]} : vector<8x96xf32> to vector<8x8xf32>
      %119 = vector.shape_cast %118 : vector<8x8xf32> to vector<1x8x8xf32>
      %120 = arith.truncf %119 : vector<1x8x8xf32> to vector<1x8x8xbf16>
      %121 = vector.extract_strided_slice %61 {offsets = [0, 48], sizes = [8, 8], strides = [1, 1]} : vector<8x96xf32> to vector<8x8xf32>
      %122 = vector.shape_cast %121 : vector<8x8xf32> to vector<1x8x8xf32>
      %123 = arith.truncf %122 : vector<1x8x8xf32> to vector<1x8x8xbf16>
      %124 = vector.extract_strided_slice %61 {offsets = [0, 80], sizes = [8, 8], strides = [1, 1]} : vector<8x96xf32> to vector<8x8xf32>
      %125 = vector.shape_cast %124 : vector<8x8xf32> to vector<1x8x8xf32>
      %126 = arith.truncf %125 : vector<1x8x8xf32> to vector<1x8x8xbf16>
      "tpu.trace_start"() <{level = 10 : i32, message = "bld,bmd->blm"}> : () -> ()
      %cst_50 = arith.constant dense<0.000000e+00> : vector<1x8x8xf32>
      %127 = tpu.matmul %120, %123, %cst_50 {dimension_numbers = #tpu.dot_dimension_numbers<[2], [2], [1], [1], [0, 0, 0, 1, 1, 1], [0], [0]>} : vector<1x8x8xbf16>, vector<1x8x8xbf16>, vector<1x8x8xf32> -> vector<1x8x8xf32>
      "tpu.trace_stop"() : () -> ()
      %cst_51 = arith.constant dense<0xFF800000> : vector<1x8xf32>
      %128 = vector.multi_reduction <maximumf>, %127, %cst_51 [2] : vector<1x8x8xf32> to vector<1x8xf32>
      %129 = vector.shape_cast %128 : vector<1x8xf32> to vector<1x8x1xf32>
      %130 = vector.broadcast %129 : vector<1x8x1xf32> to vector<1x8x8xf32>
      %131 = arith.subf %127, %130 : vector<1x8x8xf32>
      %132 = math.exp %131 : vector<1x8x8xf32>
      %cst_52 = arith.constant dense<0.000000e+00> : vector<1x8xf32>
      %133 = vector.multi_reduction <add>, %132, %cst_52 [2] : vector<1x8x8xf32> to vector<1x8xf32>
      %134 = vector.shape_cast %133 : vector<1x8xf32> to vector<1x8x1xf32>
      %135 = tpu.reciprocal %134 {approx = true} : vector<1x8x1xf32> -> vector<1x8x1xf32>
      %136 = vector.broadcast %135 : vector<1x8x1xf32> to vector<1x8x8xf32>
      %137 = arith.mulf %132, %136 : vector<1x8x8xf32>
      %138 = arith.truncf %137 : vector<1x8x8xf32> to vector<1x8x8xbf16>
      "tpu.trace_start"() <{level = 10 : i32, message = "blm,bmd->bld"}> : () -> ()
      %cst_53 = arith.constant dense<0.000000e+00> : vector<1x8x8xf32>
      %139 = tpu.matmul %138, %126, %cst_53 {dimension_numbers = #tpu.dot_dimension_numbers<[2], [1], [1], [2], [0, 0, 0, 1, 1, 2], [0], [0]>} : vector<1x8x8xbf16>, vector<1x8x8xbf16>, vector<1x8x8xf32> -> vector<1x8x8xf32>
      "tpu.trace_stop"() : () -> ()
      %140 = vector.shape_cast %139 : vector<1x8x8xf32> to vector<8x8xf32>
      %141 = arith.truncf %140 : vector<8x8xf32> to vector<8x8xbf16>
      %142 = vector.extract_strided_slice %62 {offsets = [16, 0], sizes = [8, 32], strides = [1, 1]} : vector<32x32xbf16> to vector<8x32xbf16>
      %cst_54 = arith.constant dense<0.000000e+00> : vector<8x32xf32>
      %143 = tpu.matmul %141, %142, %cst_54 {dimension_numbers = #tpu.dot_dimension_numbers<[1], [0], [0], [1], [0, 0, 1, 1], [], []>} : vector<8x8xbf16>, vector<8x32xbf16>, vector<8x32xf32> -> vector<8x32xf32>
      %144 = arith.addf %117, %143 : vector<8x32xf32>
      %145 = vector.extract_strided_slice %61 {offsets = [0, 24], sizes = [8, 8], strides = [1, 1]} : vector<8x96xf32> to vector<8x8xf32>
      %146 = vector.shape_cast %145 : vector<8x8xf32> to vector<1x8x8xf32>
      %147 = arith.truncf %146 : vector<1x8x8xf32> to vector<1x8x8xbf16>
      %148 = vector.extract_strided_slice %61 {offsets = [0, 56], sizes = [8, 8], strides = [1, 1]} : vector<8x96xf32> to vector<8x8xf32>
      %149 = vector.shape_cast %148 : vector<8x8xf32> to vector<1x8x8xf32>
      %150 = arith.truncf %149 : vector<1x8x8xf32> to vector<1x8x8xbf16>
      %151 = vector.extract_strided_slice %61 {offsets = [0, 88], sizes = [8, 8], strides = [1, 1]} : vector<8x96xf32> to vector<8x8xf32>
      %152 = vector.shape_cast %151 : vector<8x8xf32> to vector<1x8x8xf32>
      %153 = arith.truncf %152 : vector<1x8x8xf32> to vector<1x8x8xbf16>
      "tpu.trace_start"() <{level = 10 : i32, message = "bld,bmd->blm"}> : () -> ()
      %cst_55 = arith.constant dense<0.000000e+00> : vector<1x8x8xf32>
      %154 = tpu.matmul %147, %150, %cst_55 {dimension_numbers = #tpu.dot_dimension_numbers<[2], [2], [1], [1], [0, 0, 0, 1, 1, 1], [0], [0]>} : vector<1x8x8xbf16>, vector<1x8x8xbf16>, vector<1x8x8xf32> -> vector<1x8x8xf32>
      "tpu.trace_stop"() : () -> ()
      %cst_56 = arith.constant dense<0xFF800000> : vector<1x8xf32>
      %155 = vector.multi_reduction <maximumf>, %154, %cst_56 [2] : vector<1x8x8xf32> to vector<1x8xf32>
      %156 = vector.shape_cast %155 : vector<1x8xf32> to vector<1x8x1xf32>
      %157 = vector.broadcast %156 : vector<1x8x1xf32> to vector<1x8x8xf32>
      %158 = arith.subf %154, %157 : vector<1x8x8xf32>
      %159 = math.exp %158 : vector<1x8x8xf32>
      %cst_57 = arith.constant dense<0.000000e+00> : vector<1x8xf32>
      %160 = vector.multi_reduction <add>, %159, %cst_57 [2] : vector<1x8x8xf32> to vector<1x8xf32>
      %161 = vector.shape_cast %160 : vector<1x8xf32> to vector<1x8x1xf32>
      %162 = tpu.reciprocal %161 {approx = true} : vector<1x8x1xf32> -> vector<1x8x1xf32>
      %163 = vector.broadcast %162 : vector<1x8x1xf32> to vector<1x8x8xf32>
      %164 = arith.mulf %159, %163 : vector<1x8x8xf32>
      %165 = arith.truncf %164 : vector<1x8x8xf32> to vector<1x8x8xbf16>
      "tpu.trace_start"() <{level = 10 : i32, message = "blm,bmd->bld"}> : () -> ()
      %cst_58 = arith.constant dense<0.000000e+00> : vector<1x8x8xf32>
      %166 = tpu.matmul %165, %153, %cst_58 {dimension_numbers = #tpu.dot_dimension_numbers<[2], [1], [1], [2], [0, 0, 0, 1, 1, 2], [0], [0]>} : vector<1x8x8xbf16>, vector<1x8x8xbf16>, vector<1x8x8xf32> -> vector<1x8x8xf32>
      "tpu.trace_stop"() : () -> ()
      %167 = vector.shape_cast %166 : vector<1x8x8xf32> to vector<8x8xf32>
      %168 = arith.truncf %167 : vector<8x8xf32> to vector<8x8xbf16>
      %169 = vector.extract_strided_slice %62 {offsets = [24, 0], sizes = [8, 32], strides = [1, 1]} : vector<32x32xbf16> to vector<8x32xbf16>
      %cst_59 = arith.constant dense<0.000000e+00> : vector<8x32xf32>
      %170 = tpu.matmul %168, %169, %cst_59 {dimension_numbers = #tpu.dot_dimension_numbers<[1], [0], [0], [1], [0, 0, 1, 1], [], []>} : vector<8x8xbf16>, vector<8x32xbf16>, vector<8x32xf32> -> vector<8x32xf32>
      %171 = arith.addf %144, %170 : vector<8x32xf32>
      %c0_60 = arith.constant 0 : index
      %c0_61 = arith.constant 0 : index
      %172 = vector.load %arg8[%c0_60, %c0_61] : memref<1x32xf32, #tpu.memory_space<vmem>>, vector<1x32xf32>
      %173 = vector.broadcast %172 : vector<1x32xf32> to vector<8x32xf32>
      %174 = arith.addf %171, %173 : vector<8x32xf32>
      %175 = vector.shape_cast %174 : vector<8x32xf32> to vector<1x8x32xf32>
      %176 = arith.addf %28, %175 : vector<1x8x32xf32>
      %c0_62 = arith.constant 0 : index
      %c0_63 = arith.constant 0 : index
      %c0_64 = arith.constant 0 : index
      %177 = vector.load %arg16[%c0_62, %c0_63, %c0_64] : memref<1x8x32xf32, #tpu.memory_space<vmem>>, vector<1x8x32xf32>
      tpu.vector_store %arg16[%c0_62, %c0_63, %c0_64], %176 {strides = array<i32>} : memref<1x8x32xf32, #tpu.memory_space<vmem>>, vector<1x8x32xf32>,
      %c0_65 = arith.constant 0 : index
      %c0_66 = arith.constant 0 : index
      %178 = vector.load %arg9[%c0_65, %c0_66] : memref<1x32xf32, #tpu.memory_space<vmem>>, vector<1x32xf32>
      %c0_67 = arith.constant 0 : index
      %c0_68 = arith.constant 0 : index
      %179 = vector.load %arg10[%c0_67, %c0_68] : memref<1x32xf32, #tpu.memory_space<vmem>>, vector<1x32xf32>
      %cst_69 = arith.constant dense<0.000000e+00> : vector<1x8xf32>
      %180 = vector.multi_reduction <add>, %176, %cst_69 [2] : vector<1x8x32xf32> to vector<1x8xf32>
      %181 = vector.shape_cast %180 : vector<1x8xf32> to vector<1x8x1xf32>
      %cst_70 = arith.constant 3.200000e+01 : f32
      %182 = vector.broadcast %cst_70 : f32 to vector<1x8x1xf32>
      %183 = arith.divf %181, %182 : vector<1x8x1xf32>
      %184 = vector.broadcast %183 : vector<1x8x1xf32> to vector<1x8x32xf32>
      %185 = arith.subf %176, %184 : vector<1x8x32xf32>
      %186 = arith.mulf %185, %185 : vector<1x8x32xf32>
      %cst_71 = arith.constant dense<0.000000e+00> : vector<1x8xf32>
      %187 = vector.multi_reduction <add>, %186, %cst_71 [2] : vector<1x8x32xf32> to vector<1x8xf32>
      %188 = vector.shape_cast %187 : vector<1x8xf32> to vector<1x8x1xf32>
      %cst_72 = arith.constant 3.200000e+01 : f32
      %189 = vector.broadcast %cst_72 : f32 to vector<1x8x1xf32>
      %190 = arith.divf %188, %189 : vector<1x8x1xf32>
      %191 = vector.broadcast %183 : vector<1x8x1xf32> to vector<1x8x32xf32>
      %192 = arith.subf %176, %191 : vector<1x8x32xf32>
      %cst_73 = arith.constant 9.99999974E-6 : f32
      %193 = vector.broadcast %cst_73 : f32 to vector<1x8x1xf32>
      %194 = arith.addf %190, %193 : vector<1x8x1xf32>
      %195 = math.rsqrt %194 : vector<1x8x1xf32>
      %196 = vector.broadcast %195 : vector<1x8x1xf32> to vector<1x8x32xf32>
      %197 = arith.mulf %192, %196 : vector<1x8x32xf32>
      %198 = vector.shape_cast %178 : vector<1x32xf32> to vector<1x1x32xf32>
      %199 = vector.broadcast %198 : vector<1x1x32xf32> to vector<1x8x32xf32>
      %200 = arith.mulf %197, %199 : vector<1x8x32xf32>
      %201 = vector.shape_cast %179 : vector<1x32xf32> to vector<1x1x32xf32>
      %202 = vector.broadcast %201 : vector<1x1x32xf32> to vector<1x8x32xf32>
      %203 = arith.addf %200, %202 : vector<1x8x32xf32>
      %204 = arith.truncf %203 : vector<1x8x32xf32> to vector<1x8x32xbf16>
      %c0_74 = arith.constant 0 : index
      %c0_75 = arith.constant 0 : index
      %c0_76 = arith.constant 0 : index
      %205 = vector.load %arg17[%c0_74, %c0_75, %c0_76] : memref<1x8x32xbf16, #tpu.memory_space<vmem>>, vector<1x8x32xbf16>
      tpu.vector_store %arg17[%c0_74, %c0_75, %c0_76], %204 {strides = array<i32>} : memref<1x8x32xbf16, #tpu.memory_space<vmem>>, vector<1x8x32xbf16>,
      %cst_77 = arith.constant 0.000000e+00 : f32
      %206 = vector.broadcast %cst_77 : f32 to vector<1x8x32xf32>
      %c0_78 = arith.constant 0 : index
      %c0_79 = arith.constant 0 : index
      %c0_80 = arith.constant 0 : index
      %207 = vector.load %arg18[%c0_78, %c0_79, %c0_80] : memref<1x8x32xf32, #tpu.memory_space<vmem>>, vector<1x8x32xf32>
      tpu.vector_store %arg18[%c0_78, %c0_79, %c0_80], %206 {strides = array<i32>} : memref<1x8x32xf32, #tpu.memory_space<vmem>>, vector<1x8x32xf32>,
    } else {
    }
    %c0 = arith.constant 0 : index
    %c0_1 = arith.constant 0 : index
    %c0_2 = arith.constant 0 : index
    %3 = vector.load %arg17[%c0, %c0_1, %c0_2] : memref<1x8x32xbf16, #tpu.memory_space<vmem>>, vector<1x8x32xbf16>
    %4 = vector.shape_cast %3 : vector<1x8x32xbf16> to vector<8x32xbf16>
    %c0_3 = arith.constant 0 : index
    %c0_4 = arith.constant 0 : index
    %5 = vector.load %arg11[%c0_3, %c0_4] : memref<32x128xbf16, #tpu.memory_space<vmem>>, vector<32x128xbf16>
    %cst = arith.constant dense<0.000000e+00> : vector<8x128xf32>
    %6 = tpu.matmul %4, %5, %cst {dimension_numbers = #tpu.dot_dimension_numbers<[1], [0], [0], [1], [0, 0, 1, 1], [], []>} : vector<8x32xbf16>, vector<32x128xbf16>, vector<8x128xf32> -> vector<8x128xf32>
    %c0_5 = arith.constant 0 : index
    %c0_6 = arith.constant 0 : index
    %7 = vector.load %arg12[%c0_5, %c0_6] : memref<1x128xf32, #tpu.memory_space<vmem>>, vector<1x128xf32>
    %8 = vector.broadcast %7 : vector<1x128xf32> to vector<8x128xf32>
    %9 = arith.addf %6, %8 : vector<8x128xf32>
    %cst_7 = arith.constant 1.702000e+00 : f32
    %10 = vector.broadcast %cst_7 : f32 to vector<8x128xf32>
    %11 = arith.mulf %10, %9 : vector<8x128xf32>
    %12 = arith.negf %11 : vector<8x128xf32>
    %13 = math.exp %12 : vector<8x128xf32>
    %cst_8 = arith.constant 1.000000e+00 : f32
    %14 = vector.broadcast %cst_8 : f32 to vector<8x128xf32>
    %15 = arith.addf %14, %13 : vector<8x128xf32>
    %16 = arith.divf %14, %15 : vector<8x128xf32>
    %17 = arith.mulf %9, %16 : vector<8x128xf32>
    %c0_9 = arith.constant 0 : index
    %c0_10 = arith.constant 0 : index
    %c0_11 = arith.constant 0 : index
    %18 = vector.load %arg18[%c0_9, %c0_10, %c0_11] : memref<1x8x32xf32, #tpu.memory_space<vmem>>, vector<1x8x32xf32>
    %19 = arith.truncf %17 : vector<8x128xf32> to vector<8x128xbf16>
    %c0_12 = arith.constant 0 : index
    %c0_13 = arith.constant 0 : index
    %20 = vector.load %arg13[%c0_12, %c0_13] : memref<128x32xbf16, #tpu.memory_space<vmem>>, vector<128x32xbf16>
    %cst_14 = arith.constant dense<0.000000e+00> : vector<8x32xf32>
    %21 = tpu.matmul %19, %20, %cst_14 {dimension_numbers = #tpu.dot_dimension_numbers<[1], [0], [0], [1], [0, 0, 1, 1], [], []>} : vector<8x128xbf16>, vector<128x32xbf16>, vector<8x32xf32> -> vector<8x32xf32>
    %22 = vector.shape_cast %21 : vector<8x32xf32> to vector<1x8x32xf32>
    %23 = arith.addf %18, %22 : vector<1x8x32xf32>
    %c0_15 = arith.constant 0 : index
    %c0_16 = arith.constant 0 : index
    %c0_17 = arith.constant 0 : index
    %24 = vector.load %arg18[%c0_15, %c0_16, %c0_17] : memref<1x8x32xf32, #tpu.memory_space<vmem>>, vector<1x8x32xf32>
    tpu.vector_store %arg18[%c0_15, %c0_16, %c0_17], %23 {strides = array<i32>} : memref<1x8x32xf32, #tpu.memory_space<vmem>>, vector<1x8x32xf32>,
    %c0_i32_18 = arith.constant 0 : i32
    %25 = arith.cmpi eq, %arg1, %c0_i32_18 : i32
    %26 = arith.extui %25 : i1 to i32
    %c0_i32_19 = arith.constant 0 : i32
    %27 = arith.cmpi ne, %26, %c0_i32_19 : i32
    scf.if %27 {
      %c0_20 = arith.constant 0 : index
      %c0_21 = arith.constant 0 : index
      %c0_22 = arith.constant 0 : index
      %28 = vector.load %arg16[%c0_20, %c0_21, %c0_22] : memref<1x8x32xf32, #tpu.memory_space<vmem>>, vector<1x8x32xf32>
      %c0_23 = arith.constant 0 : index
      %c0_24 = arith.constant 0 : index
      %c0_25 = arith.constant 0 : index
      %29 = vector.load %arg18[%c0_23, %c0_24, %c0_25] : memref<1x8x32xf32, #tpu.memory_space<vmem>>, vector<1x8x32xf32>
      %30 = arith.addf %28, %29 : vector<1x8x32xf32>
      %c0_26 = arith.constant 0 : index
      %c0_27 = arith.constant 0 : index
      %31 = vector.load %arg14[%c0_26, %c0_27] : memref<1x32xf32, #tpu.memory_space<vmem>>, vector<1x32xf32>
      %32 = vector.shape_cast %31 : vector<1x32xf32> to vector<1x1x32xf32>
      %33 = vector.broadcast %32 : vector<1x1x32xf32> to vector<1x8x32xf32>
      %34 = arith.addf %30, %33 : vector<1x8x32xf32>
      %c0_28 = arith.constant 0 : index
      %c0_29 = arith.constant 0 : index
      %c0_30 = arith.constant 0 : index
      %35 = vector.load %arg15[%c0_28, %c0_29, %c0_30] : memref<1x8x32xf32, #tpu.memory_space<vmem>>, vector<1x8x32xf32>
      tpu.vector_store %arg15[%c0_28, %c0_29, %c0_30], %34 {strides = array<i32>} : memref<1x8x32xf32, #tpu.memory_space<vmem>>, vector<1x8x32xf32>,
    } else {
    }
    return
  }
  func.func @transform_0(%arg0: i32, %arg1: i32) -> (i32, i32, i32) {
    %c0_i32 = arith.constant 0 : i32
    %c0_i32_0 = arith.constant 0 : i32
    %c0_i32_1 = arith.constant 0 : i32
    return %arg0, %c0_i32, %c0_i32_0 : i32, i32, i32
  }
  func.func @transform_1(%arg0: i32, %arg1: i32) -> (i32, i32) {
    %c0_i32 = arith.constant 0 : i32
    %c0_i32_0 = arith.constant 0 : i32
    %c0_i32_1 = arith.constant 0 : i32
    return %c0_i32, %c0_i32_0 : i32, i32
  }
  func.func @transform_2(%arg0: i32, %arg1: i32) -> (i32, i32) {
    %c0_i32 = arith.constant 0 : i32
    %c0_i32_0 = arith.constant 0 : i32
    %c0_i32_1 = arith.constant 0 : i32
    return %c0_i32, %c0_i32_0 : i32, i32
  }
  func.func @transform_3(%arg0: i32, %arg1: i32) -> (i32, i32) {
    %c0_i32 = arith.constant 0 : i32
    %c0_i32_0 = arith.constant 0 : i32
    %c0_i32_1 = arith.constant 0 : i32
    return %c0_i32, %c0_i32_0 : i32, i32
  }
  func.func @transform_4(%arg0: i32, %arg1: i32) -> (i32, i32) {
    %c0_i32 = arith.constant 0 : i32
    %c0_i32_0 = arith.constant 0 : i32
    %c0_i32_1 = arith.constant 0 : i32
    return %c0_i32, %c0_i32_0 : i32, i32
  }
  func.func @transform_5(%arg0: i32, %arg1: i32) -> (i32, i32) {
    %c0_i32 = arith.constant 0 : i32
    %c0_i32_0 = arith.constant 0 : i32
    %c0_i32_1 = arith.constant 0 : i32
    return %c0_i32, %c0_i32_0 : i32, i32
  }
  func.func @transform_6(%arg0: i32, %arg1: i32) -> (i32, i32) {
    %c0_i32 = arith.constant 0 : i32
    %c0_i32_0 = arith.constant 0 : i32
    %c0_i32_1 = arith.constant 0 : i32
    return %c0_i32, %c0_i32_0 : i32, i32
  }
  func.func @transform_7(%arg0: i32, %arg1: i32) -> (i32, i32) {
    %c0_i32 = arith.constant 0 : i32
    %c0_i32_0 = arith.constant 0 : i32
    %c0_i32_1 = arith.constant 0 : i32
    return %c0_i32, %c0_i32_0 : i32, i32
  }
  func.func @transform_8(%arg0: i32, %arg1: i32) -> (i32, i32) {
    %c0_i32 = arith.constant 0 : i32
    %c0_i32_0 = arith.constant 0 : i32
    %c0_i32_1 = arith.constant 0 : i32
    return %c0_i32, %c0_i32_0 : i32, i32
  }
  func.func @transform_9(%arg0: i32, %arg1: i32) -> (i32, i32) {
    %c0_i32 = arith.constant 0 : i32
    %c0_i32_0 = arith.constant 0 : i32
    return %c0_i32, %arg1 : i32, i32
  }
  func.func @transform_10(%arg0: i32, %arg1: i32) -> (i32, i32) {
    %c0_i32 = arith.constant 0 : i32
    %c0_i32_0 = arith.constant 0 : i32
    return %c0_i32, %arg1 : i32, i32
  }
  func.func @transform_11(%arg0: i32, %arg1: i32) -> (i32, i32) {
    %c0_i32 = arith.constant 0 : i32
    %c0_i32_0 = arith.constant 0 : i32
    return %arg1, %c0_i32 : i32, i32
  }
  func.func @transform_12(%arg0: i32, %arg1: i32) -> (i32, i32) {
    %c0_i32 = arith.constant 0 : i32
    %c0_i32_0 = arith.constant 0 : i32
    %c0_i32_1 = arith.constant 0 : i32
    return %c0_i32, %c0_i32_0 : i32, i32
  }
  func.func @transform_13(%arg0: i32, %arg1: i32) -> (i32, i32, i32) {
    %c0_i32 = arith.constant 0 : i32
    %c0_i32_0 = arith.constant 0 : i32
    %c0_i32_1 = arith.constant 0 : i32
    return %arg0, %c0_i32, %c0_i32_0 : i32, i32, i32
  }
}

module attributes {stable_mosaic.version = 11 : i64} {
  func.func @fused_layer_kernel(%arg0: i32, %arg1: i32, %arg2: memref<1x8x32xf32, #tpu.memory_space<vmem>>, %arg3: memref<1x32xf32, #tpu.memory_space<vmem>>, %arg4: memref<1x32xf32, #tpu.memory_space<vmem>>, %arg5: memref<32x96xbf16, #tpu.memory_space<vmem>>, %arg6: memref<1x96xf32, #tpu.memory_space<vmem>>, %arg7: memref<32x32xbf16, #tpu.memory_space<vmem>>, %arg8: memref<1x32xf32, #tpu.memory_space<vmem>>, %arg9: memref<1x32xf32, #tpu.memory_space<vmem>>, %arg10: memref<1x32xf32, #tpu.memory_space<vmem>>, %arg11: memref<32x128xbf16, #tpu.memory_space<vmem>>, %arg12: memref<1x128xf32, #tpu.memory_space<vmem>>, %arg13: memref<128x32xbf16, #tpu.memory_space<vmem>>, %arg14: memref<1x32xf32, #tpu.memory_space<vmem>>, %arg15: memref<1x8x32xf32, #tpu.memory_space<vmem>>, %arg16: memref<1x8x32xf32, #tpu.memory_space<vmem>>, %arg17: memref<1x8x32xbf16, #tpu.memory_space<vmem>>, %arg18: memref<1x8x32xf32, #tpu.memory_space<vmem>>) attributes {dimension_semantics = [#tpu.dimension_semantics<parallel>, #tpu.dimension_semantics<arbitrary>], iteration_bounds = array<i64: 2, 1>, scalar_prefetch = 0 : i64, scratch_operands = 3 : i64, tpu.core_type = #tpu.core_type<tc>, window_params = [{transform_indices = @transform_0, window_bounds = array<i64: 1, 8, 32>}, {pipeline_mode = #tpu.pipeline_mode<synchronous>, transform_indices = @transform_1, window_bounds = array<i64: 1, 32>}, {pipeline_mode = #tpu.pipeline_mode<synchronous>, transform_indices = @transform_2, window_bounds = array<i64: 1, 32>}, {pipeline_mode = #tpu.pipeline_mode<synchronous>, transform_indices = @transform_3, window_bounds = array<i64: 32, 96>}, {pipeline_mode = #tpu.pipeline_mode<synchronous>, transform_indices = @transform_4, window_bounds = array<i64: 1, 96>}, {pipeline_mode = #tpu.pipeline_mode<synchronous>, transform_indices = @transform_5, window_bounds = array<i64: 32, 32>}, {pipeline_mode = #tpu.pipeline_mode<synchronous>, transform_indices = @transform_6, window_bounds = array<i64: 1, 32>}, {pipeline_mode = #tpu.pipeline_mode<synchronous>, transform_indices = @transform_7, window_bounds = array<i64: 1, 32>}, {pipeline_mode = #tpu.pipeline_mode<synchronous>, transform_indices = @transform_8, window_bounds = array<i64: 1, 32>}, {transform_indices = @transform_9, window_bounds = array<i64: 32, 128>}, {transform_indices = @transform_10, window_bounds = array<i64: 1, 128>}, {transform_indices = @transform_11, window_bounds = array<i64: 128, 32>}, {pipeline_mode = #tpu.pipeline_mode<synchronous>, transform_indices = @transform_12, window_bounds = array<i64: 1, 32>}, {transform_indices = @transform_13, window_bounds = array<i64: 1, 8, 32>}]} {
    %c0_i32 = arith.constant 0 : i32
    %0 = arith.cmpi eq, %arg1, %c0_i32 : i32
    %1 = arith.extui %0 : i1 to i32
    %c0_i32_0 = arith.constant 0 : i32
    %2 = arith.cmpi ne, %1, %c0_i32_0 : i32
    scf.if %2 {
      %c0_20 = arith.constant 0 : index
      %c0_21 = arith.constant 0 : index
      %c0_22 = arith.constant 0 : index
      %28 = vector.load %arg2[%c0_20, %c0_21, %c0_22] : memref<1x8x32xf32, #tpu.memory_space<vmem>>, vector<1x8x32xf32>
      %c0_23 = arith.constant 0 : index
      %c0_24 = arith.constant 0 : index
      %29 = vector.load %arg3[%c0_23, %c0_24] : memref<1x32xf32, #tpu.memory_space<vmem>>, vector<1x32xf32>
      %c0_25 = arith.constant 0 : index
      %c0_26 = arith.constant 0 : index
      %30 = vector.load %arg4[%c0_25, %c0_26] : memref<1x32xf32, #tpu.memory_space<vmem>>, vector<1x32xf32>
      %cst_27 = arith.constant dense<0.000000e+00> : vector<1x8xf32>
      %31 = vector.multi_reduction <add>, %28, %cst_27 [2] : vector<1x8x32xf32> to vector<1x8xf32>
      %32 = vector.shape_cast %31 : vector<1x8xf32> to vector<1x8x1xf32>
      %cst_28 = arith.constant 3.200000e+01 : f32
      %33 = vector.broadcast %cst_28 : f32 to vector<1x8x1xf32>
      %34 = arith.divf %32, %33 : vector<1x8x1xf32>
      %35 = vector.broadcast %34 : vector<1x8x1xf32> to vector<1x8x32xf32>
      %36 = arith.subf %28, %35 : vector<1x8x32xf32>
      %37 = arith.mulf %36, %36 : vector<1x8x32xf32>
      %cst_29 = arith.constant dense<0.000000e+00> : vector<1x8xf32>
      %38 = vector.multi_reduction <add>, %37, %cst_29 [2] : vector<1x8x32xf32> to vector<1x8xf32>
      %39 = vector.shape_cast %38 : vector<1x8xf32> to vector<1x8x1xf32>
      %cst_30 = arith.constant 3.200000e+01 : f32
      %40 = vector.broadcast %cst_30 : f32 to vector<1x8x1xf32>
      %41 = arith.divf %39, %40 : vector<1x8x1xf32>
      %42 = vector.broadcast %34 : vector<1x8x1xf32> to vector<1x8x32xf32>
      %43 = arith.subf %28, %42 : vector<1x8x32xf32>
      %cst_31 = arith.constant 9.99999974E-6 : f32
      %44 = vector.broadcast %cst_31 : f32 to vector<1x8x1xf32>
      %45 = arith.addf %41, %44 : vector<1x8x1xf32>
      %46 = math.rsqrt %45 : vector<1x8x1xf32>
      %47 = vector.broadcast %46 : vector<1x8x1xf32> to vector<1x8x32xf32>
      %48 = arith.mulf %43, %47 : vector<1x8x32xf32>
      %49 = vector.shape_cast %29 : vector<1x32xf32> to vector<1x1x32xf32>
      %50 = vector.broadcast %49 : vector<1x1x32xf32> to vector<1x8x32xf32>
      %51 = arith.mulf %48, %50 : vector<1x8x32xf32>
      %52 = vector.shape_cast %30 : vector<1x32xf32> to vector<1x1x32xf32>
      %53 = vector.broadcast %52 : vector<1x1x32xf32> to vector<1x8x32xf32>
      %54 = arith.addf %51, %53 : vector<1x8x32xf32>
      %55 = arith.truncf %54 : vector<1x8x32xf32> to vector<1x8x32xbf16>
      %56 = vector.shape_cast %55 : vector<1x8x32xbf16> to vector<8x32xbf16>
      %c0_32 = arith.constant 0 : index
      %c0_33 = arith.constant 0 : index
      %57 = vector.load %arg5[%c0_32, %c0_33] : memref<32x96xbf16, #tpu.memory_space<vmem>>, vector<32x96xbf16>
      %cst_34 = arith.constant dense<0.000000e+00> : vector<8x96xf32>
      %58 = tpu.matmul %56, %57, %cst_34 {dimension_numbers = #tpu.dot_dimension_numbers<[1], [0], [0], [1], [0, 0, 1, 1], [], []>} : vector<8x32xbf16>, vector<32x96xbf16>, vector<8x96xf32> -> vector<8x96xf32>
      %c0_35 = arith.constant 0 : index
      %c0_36 = arith.constant 0 : index
      %59 = vector.load %arg6[%c0_35, %c0_36] : memref<1x96xf32, #tpu.memory_space<vmem>>, vector<1x96xf32>
      %60 = vector.broadcast %59 : vector<1x96xf32> to vector<8x96xf32>
      %61 = arith.addf %58, %60 : vector<8x96xf32>
      %c0_37 = arith.constant 0 : index
      %c0_38 = arith.constant 0 : index
      %62 = vector.load %arg7[%c0_37, %c0_38] : memref<32x32xbf16, #tpu.memory_space<vmem>>, vector<32x32xbf16>
      %cst_39 = arith.constant 0.000000e+00 : f32
      %63 = vector.broadcast %cst_39 : f32 to vector<8x32xf32>
      %64 = vector.extract_strided_slice %61 {offsets = [0, 0], sizes = [8, 8], strides = [1, 1]} : vector<8x96xf32> to vector<8x8xf32>
      %65 = vector.shape_cast %64 : vector<8x8xf32> to vector<1x8x8xf32>
      %66 = arith.truncf %65 : vector<1x8x8xf32> to vector<1x8x8xbf16>
      %67 = vector.extract_strided_slice %61 {offsets = [0, 32], sizes = [8, 8], strides = [1, 1]} : vector<8x96xf32> to vector<8x8xf32>
      %68 = vector.shape_cast %67 : vector<8x8xf32> to vector<1x8x8xf32>
      %69 = arith.truncf %68 : vector<1x8x8xf32> to vector<1x8x8xbf16>
      %70 = vector.extract_strided_slice %61 {offsets = [0, 64], sizes = [8, 8], strides = [1, 1]} : vector<8x96xf32> to vector<8x8xf32>
      %71 = vector.shape_cast %70 : vector<8x8xf32> to vector<1x8x8xf32>
      %72 = arith.truncf %71 : vector<1x8x8xf32> to vector<1x8x8xbf16>
      "tpu.trace_start"() <{level = 10 : i32, message = "bld,bmd->blm"}> : () -> ()
      %cst_40 = arith.constant dense<0.000000e+00> : vector<1x8x8xf32>
      %73 = tpu.matmul %66, %69, %cst_40 {dimension_numbers = #tpu.dot_dimension_numbers<[2], [2], [1], [1], [0, 0, 0, 1, 1, 1], [0], [0]>} : vector<1x8x8xbf16>, vector<1x8x8xbf16>, vector<1x8x8xf32> -> vector<1x8x8xf32>
      "tpu.trace_stop"() : () -> ()
      %cst_41 = arith.constant dense<0xFF800000> : vector<1x8xf32>
      %74 = vector.multi_reduction <maximumf>, %73, %cst_41 [2] : vector<1x8x8xf32> to vector<1x8xf32>
      %75 = vector.shape_cast %74 : vector<1x8xf32> to vector<1x8x1xf32>
      %76 = vector.broadcast %75 : vector<1x8x1xf32> to vector<1x8x8xf32>
      %77 = arith.subf %73, %76 : vector<1x8x8xf32>
      %78 = math.exp %77 : vector<1x8x8xf32>
      %cst_42 = arith.constant dense<0.000000e+00> : vector<1x8xf32>
      %79 = vector.multi_reduction <add>, %78, %cst_42 [2] : vector<1x8x8xf32> to vector<1x8xf32>
      %80 = vector.shape_cast %79 : vector<1x8xf32> to vector<1x8x1xf32>
      %81 = tpu.reciprocal %80 {approx = true} : vector<1x8x1xf32> -> vector<1x8x1xf32>
      %82 = vector.broadcast %81 : vector<1x8x1xf32> to vector<1x8x8xf32>
      %83 = arith.mulf %78, %82 : vector<1x8x8xf32>
      %84 = arith.truncf %83 : vector<1x8x8xf32> to vector<1x8x8xbf16>
      "tpu.trace_start"() <{level = 10 : i32, message = "blm,bmd->bld"}> : () -> ()
      %cst_43 = arith.constant dense<0.000000e+00> : vector<1x8x8xf32>
      %85 = tpu.matmul %84, %72, %cst_43 {dimension_numbers = #tpu.dot_dimension_numbers<[2], [1], [1], [2], [0, 0, 0, 1, 1, 2], [0], [0]>} : vector<1x8x8xbf16>, vector<1x8x8xbf16>, vector<1x8x8xf32> -> vector<1x8x8xf32>
      "tpu.trace_stop"() : () -> ()
      %86 = vector.shape_cast %85 : vector<1x8x8xf32> to vector<8x8xf32>
      %87 = arith.truncf %86 : vector<8x8xf32> to vector<8x8xbf16>
      %88 = vector.extract_strided_slice %62 {offsets = [0, 0], sizes = [8, 32], strides = [1, 1]} : vector<32x32xbf16> to vector<8x32xbf16>
      %cst_44 = arith.constant dense<0.000000e+00> : vector<8x32xf32>
      %89 = tpu.matmul %87, %88, %cst_44 {dimension_numbers = #tpu.dot_dimension_numbers<[1], [0], [0], [1], [0, 0, 1, 1], [], []>} : vector<8x8xbf16>, vector<8x32xbf16>, vector<8x32xf32> -> vector<8x32xf32>
      %90 = arith.addf %63, %89 : vector<8x32xf32>
      %91 = vector.extract_strided_slice %61 {offsets = [0, 8], sizes = [8, 8], strides = [1, 1]} : vector<8x96xf32> to vector<8x8xf32>
      %92 = vector.shape_cast %91 : vector<8x8xf32> to vector<1x8x8xf32>
      %93 = arith.truncf %92 : vector<1x8x8xf32> to vector<1x8x8xbf16>
      %94 = vector.extract_strided_slice %61 {offsets = [0, 40], sizes = [8, 8], strides = [1, 1]} : vector<8x96xf32> to vector<8x8xf32>
      %95 = vector.shape_cast %94 : vector<8x8xf32> to vector<1x8x8xf32>
      %96 = arith.truncf %95 : vector<1x8x8xf32> to vector<1x8x8xbf16>
      %97 = vector.extract_strided_slice %61 {offsets = [0, 72], sizes = [8, 8], strides = [1, 1]} : vector<8x96xf32> to vector<8x8xf32>
      %98 = vector.shape_cast %97 : vector<8x8xf32> to vector<1x8x8xf32>
      %99 = arith.truncf %98 : vector<1x8x8xf32> to vector<1x8x8xbf16>
      "tpu.trace_start"() <{level = 10 : i32, message = "bld,bmd->blm"}> : () -> ()
      %cst_45 = arith.constant dense<0.000000e+00> : vector<1x8x8xf32>
      %100 = tpu.matmul %93, %96, %cst_45 {dimension_numbers = #tpu.dot_dimension_numbers<[2], [2], [1], [1], [0, 0, 0, 1, 1, 1], [0], [0]>} : vector<1x8x8xbf16>, vector<1x8x8xbf16>, vector<1x8x8xf32> -> vector<1x8x8xf32>
      "tpu.trace_stop"() : () -> ()
      %cst_46 = arith.constant dense<0xFF800000> : vector<1x8xf32>
      %101 = vector.multi_reduction <maximumf>, %100, %cst_46 [2] : vector<1x8x8xf32> to vector<1x8xf32>
      %102 = vector.shape_cast %101 : vector<1x8xf32> to vector<1x8x1xf32>
      %103 = vector.broadcast %102 : vector<1x8x1xf32> to vector<1x8x8xf32>
      %104 = arith.subf %100, %103 : vector<1x8x8xf32>
      %105 = math.exp %104 : vector<1x8x8xf32>
      %cst_47 = arith.constant dense<0.000000e+00> : vector<1x8xf32>
      %106 = vector.multi_reduction <add>, %105, %cst_47 [2] : vector<1x8x8xf32> to vector<1x8xf32>
      %107 = vector.shape_cast %106 : vector<1x8xf32> to vector<1x8x1xf32>
      %108 = tpu.reciprocal %107 {approx = true} : vector<1x8x1xf32> -> vector<1x8x1xf32>
      %109 = vector.broadcast %108 : vector<1x8x1xf32> to vector<1x8x8xf32>
      %110 = arith.mulf %105, %109 : vector<1x8x8xf32>
      %111 = arith.truncf %110 : vector<1x8x8xf32> to vector<1x8x8xbf16>
      "tpu.trace_start"() <{level = 10 : i32, message = "blm,bmd->bld"}> : () -> ()
      %cst_48 = arith.constant dense<0.000000e+00> : vector<1x8x8xf32>
      %112 = tpu.matmul %111, %99, %cst_48 {dimension_numbers = #tpu.dot_dimension_numbers<[2], [1], [1], [2], [0, 0, 0, 1, 1, 2], [0], [0]>} : vector<1x8x8xbf16>, vector<1x8x8xbf16>, vector<1x8x8xf32> -> vector<1x8x8xf32>
      "tpu.trace_stop"() : () -> ()
      %113 = vector.shape_cast %112 : vector<1x8x8xf32> to vector<8x8xf32>
      %114 = arith.truncf %113 : vector<8x8xf32> to vector<8x8xbf16>
      %115 = vector.extract_strided_slice %62 {offsets = [8, 0], sizes = [8, 32], strides = [1, 1]} : vector<32x32xbf16> to vector<8x32xbf16>
      %cst_49 = arith.constant dense<0.000000e+00> : vector<8x32xf32>
      %116 = tpu.matmul %114, %115, %cst_49 {dimension_numbers = #tpu.dot_dimension_numbers<[1], [0], [0], [1], [0, 0, 1, 1], [], []>} : vector<8x8xbf16>, vector<8x32xbf16>, vector<8x32xf32> -> vector<8x32xf32>
      %117 = arith.addf %90, %116 : vector<8x32xf32>
      %118 = vector.extract_strided_slice %61 {offsets = [0, 16], sizes = [8, 8], strides = [1, 1]} : vector<8x96xf32> to vector<8x8xf32>
      %119 = vector.shape_cast %118 : vector<8x8xf32> to vector<1x8x8xf32>
      %120 = arith.truncf %119 : vector<1x8x8xf32> to vector<1x8x8xbf16>
      %121 = vector.extract_strided_slice %61 {offsets = [0, 48], sizes = [8, 8], strides = [1, 1]} : vector<8x96xf32> to vector<8x8xf32>
      %122 = vector.shape_cast %121 : vector<8x8xf32> to vector<1x8x8xf32>
      %123 = arith.truncf %122 : vector<1x8x8xf32> to vector<1x8x8xbf16>
      %124 = vector.extract_strided_slice %61 {offsets = [0, 80], sizes = [8, 8], strides = [1, 1]} : vector<8x96xf32> to vector<8x8xf32>
      %125 = vector.shape_cast %124 : vector<8x8xf32> to vector<1x8x8xf32>
      %126 = arith.truncf %125 : vector<1x8x8xf32> to vector<1x8x8xbf16>
      "tpu.trace_start"() <{level = 10 : i32, message = "bld,bmd->blm"}> : () -> ()
      %cst_50 = arith.constant dense<0.000000e+00> : vector<1x8x8xf32>
      %127 = tpu.matmul %120, %123, %cst_50 {dimension_numbers = #tpu.dot_dimension_numbers<[2], [2], [1], [1], [0, 0, 0, 1, 1, 1], [0], [0]>} : vector<1x8x8xbf16>, vector<1x8x8xbf16>, vector<1x8x8xf32> -> vector<1x8x8xf32>
      "tpu.trace_stop"() : () -> ()
      %cst_51 = arith.constant dense<0xFF800000> : vector<1x8xf32>
      %128 = vector.multi_reduction <maximumf>, %127, %cst_51 [2] : vector<1x8x8xf32> to vector<1x8xf32>
      %129 = vector.shape_cast %128 : vector<1x8xf32> to vector<1x8x1xf32>
      %130 = vector.broadcast %129 : vector<1x8x1xf32> to vector<1x8x8xf32>
      %131 = arith.subf %127, %130 : vector<1x8x8xf32>
      %132 = math.exp %131 : vector<1x8x8xf32>
      %cst_52 = arith.constant dense<0.000000e+00> : vector<1x8xf32>
      %133 = vector.multi_reduction <add>, %132, %cst_52 [2] : vector<1x8x8xf32> to vector<1x8xf32>
      %134 = vector.shape_cast %133 : vector<1x8xf32> to vector<1x8x1xf32>
      %135 = tpu.reciprocal %134 {approx = true} : vector<1x8x1xf32> -> vector<1x8x1xf32>
      %136 = vector.broadcast %135 : vector<1x8x1xf32> to vector<1x8x8xf32>
      %137 = arith.mulf %132, %136 : vector<1x8x8xf32>
      %138 = arith.truncf %137 : vector<1x8x8xf32> to vector<1x8x8xbf16>
      "tpu.trace_start"() <{level = 10 : i32, message = "blm,bmd->bld"}> : () -> ()
      %cst_53 = arith.constant dense<0.000000e+00> : vector<1x8x8xf32>
      %139 = tpu.matmul %138, %126, %cst_53 {dimension_numbers = #tpu.dot_dimension_numbers<[2], [1], [1], [2], [0, 0, 0, 1, 1, 2], [0], [0]>} : vector<1x8x8xbf16>, vector<1x8x8xbf16>, vector<1x8x8xf32> -> vector<1x8x8xf32>
      "tpu.trace_stop"() : () -> ()
      %140 = vector.shape_cast %139 : vector<1x8x8xf32> to vector<8x8xf32>
      %141 = arith.truncf %140 : vector<8x8xf32> to vector<8x8xbf16>
      %142 = vector.extract_strided_slice %62 {offsets = [16, 0], sizes = [8, 32], strides = [1, 1]} : vector<32x32xbf16> to vector<8x32xbf16>
      %cst_54 = arith.constant dense<0.000000e+00> : vector<8x32xf32>
      %143 = tpu.matmul %141, %142, %cst_54 {dimension_numbers = #tpu.dot_dimension_numbers<[1], [0], [0], [1], [0, 0, 1, 1], [], []>} : vector<8x8xbf16>, vector<8x32xbf16>, vector<8x32xf32> -> vector<8x32xf32>
      %144 = arith.addf %117, %143 : vector<8x32xf32>
      %145 = vector.extract_strided_slice %61 {offsets = [0, 24], sizes = [8, 8], strides = [1, 1]} : vector<8x96xf32> to vector<8x8xf32>
      %146 = vector.shape_cast %145 : vector<8x8xf32> to vector<1x8x8xf32>
      %147 = arith.truncf %146 : vector<1x8x8xf32> to vector<1x8x8xbf16>
      %148 = vector.extract_strided_slice %61 {offsets = [0, 56], sizes = [8, 8], strides = [1, 1]} : vector<8x96xf32> to vector<8x8xf32>
      %149 = vector.shape_cast %148 : vector<8x8xf32> to vector<1x8x8xf32>
      %150 = arith.truncf %149 : vector<1x8x8xf32> to vector<1x8x8xbf16>
      %151 = vector.extract_strided_slice %61 {offsets = [0, 88], sizes = [8, 8], strides = [1, 1]} : vector<8x96xf32> to vector<8x8xf32>
      %152 = vector.shape_cast %151 : vector<8x8xf32> to vector<1x8x8xf32>
      %153 = arith.truncf %152 : vector<1x8x8xf32> to vector<1x8x8xbf16>
      "tpu.trace_start"() <{level = 10 : i32, message = "bld,bmd->blm"}> : () -> ()
      %cst_55 = arith.constant dense<0.000000e+00> : vector<1x8x8xf32>
      %154 = tpu.matmul %147, %150, %cst_55 {dimension_numbers = #tpu.dot_dimension_numbers<[2], [2], [1], [1], [0, 0, 0, 1, 1, 1], [0], [0]>} : vector<1x8x8xbf16>, vector<1x8x8xbf16>, vector<1x8x8xf32> -> vector<1x8x8xf32>
      "tpu.trace_stop"() : () -> ()
      %cst_56 = arith.constant dense<0xFF800000> : vector<1x8xf32>
      %155 = vector.multi_reduction <maximumf>, %154, %cst_56 [2] : vector<1x8x8xf32> to vector<1x8xf32>
      %156 = vector.shape_cast %155 : vector<1x8xf32> to vector<1x8x1xf32>
      %157 = vector.broadcast %156 : vector<1x8x1xf32> to vector<1x8x8xf32>
      %158 = arith.subf %154, %157 : vector<1x8x8xf32>
      %159 = math.exp %158 : vector<1x8x8xf32>
      %cst_57 = arith.constant dense<0.000000e+00> : vector<1x8xf32>
      %160 = vector.multi_reduction <add>, %159, %cst_57 [2] : vector<1x8x8xf32> to vector<1x8xf32>
      %161 = vector.shape_cast %160 : vector<1x8xf32> to vector<1x8x1xf32>
      %162 = tpu.reciprocal %161 {approx = true} : vector<1x8x1xf32> -> vector<1x8x1xf32>
      %163 = vector.broadcast %162 : vector<1x8x1xf32> to vector<1x8x8xf32>
      %164 = arith.mulf %159, %163 : vector<1x8x8xf32>
      %165 = arith.truncf %164 : vector<1x8x8xf32> to vector<1x8x8xbf16>
      "tpu.trace_start"() <{level = 10 : i32, message = "blm,bmd->bld"}> : () -> ()
      %cst_58 = arith.constant dense<0.000000e+00> : vector<1x8x8xf32>
      %166 = tpu.matmul %165, %153, %cst_58 {dimension_numbers = #tpu.dot_dimension_numbers<[2], [1], [1], [2], [0, 0, 0, 1, 1, 2], [0], [0]>} : vector<1x8x8xbf16>, vector<1x8x8xbf16>, vector<1x8x8xf32> -> vector<1x8x8xf32>
      "tpu.trace_stop"() : () -> ()
      %167 = vector.shape_cast %166 : vector<1x8x8xf32> to vector<8x8xf32>
      %168 = arith.truncf %167 : vector<8x8xf32> to vector<8x8xbf16>
      %169 = vector.extract_strided_slice %62 {offsets = [24, 0], sizes = [8, 32], strides = [1, 1]} : vector<32x32xbf16> to vector<8x32xbf16>
      %cst_59 = arith.constant dense<0.000000e+00> : vector<8x32xf32>
      %170 = tpu.matmul %168, %169, %cst_59 {dimension_numbers = #tpu.dot_dimension_numbers<[1], [0], [0], [1], [0, 0, 1, 1], [], []>} : vector<8x8xbf16>, vector<8x32xbf16>, vector<8x32xf32> -> vector<8x32xf32>
      %171 = arith.addf %144, %170 : vector<8x32xf32>
      %c0_60 = arith.constant 0 : index
      %c0_61 = arith.constant 0 : index
      %172 = vector.load %arg8[%c0_60, %c0_61] : memref<1x32xf32, #tpu.memory_space<vmem>>, vector<1x32xf32>
      %173 = vector.broadcast %172 : vector<1x32xf32> to vector<8x32xf32>
      %174 = arith.addf %171, %173 : vector<8x32xf32>
      %175 = vector.shape_cast %174 : vector<8x32xf32> to vector<1x8x32xf32>
      %176 = arith.addf %28, %175 : vector<1x8x32xf32>
      %c0_62 = arith.constant 0 : index
      %c0_63 = arith.constant 0 : index
      %c0_64 = arith.constant 0 : index
      %177 = vector.load %arg16[%c0_62, %c0_63, %c0_64] : memref<1x8x32xf32, #tpu.memory_space<vmem>>, vector<1x8x32xf32>
      tpu.vector_store %arg16[%c0_62, %c0_63, %c0_64], %176 {strides = array<i32>} : memref<1x8x32xf32, #tpu.memory_space<vmem>>, vector<1x8x32xf32>,
      %c0_65 = arith.constant 0 : index
      %c0_66 = arith.constant 0 : index
      %178 = vector.load %arg9[%c0_65, %c0_66] : memref<1x32xf32, #tpu.memory_space<vmem>>, vector<1x32xf32>
      %c0_67 = arith.constant 0 : index
      %c0_68 = arith.constant 0 : index
      %179 = vector.load %arg10[%c0_67, %c0_68] : memref<1x32xf32, #tpu.memory_space<vmem>>, vector<1x32xf32>
      %cst_69 = arith.constant dense<0.000000e+00> : vector<1x8xf32>
      %180 = vector.multi_reduction <add>, %176, %cst_69 [2] : vector<1x8x32xf32> to vector<1x8xf32>
      %181 = vector.shape_cast %180 : vector<1x8xf32> to vector<1x8x1xf32>
      %cst_70 = arith.constant 3.200000e+01 : f32
      %182 = vector.broadcast %cst_70 : f32 to vector<1x8x1xf32>
      %183 = arith.divf %181, %182 : vector<1x8x1xf32>
      %184 = vector.broadcast %183 : vector<1x8x1xf32> to vector<1x8x32xf32>
      %185 = arith.subf %176, %184 : vector<1x8x32xf32>
      %186 = arith.mulf %185, %185 : vector<1x8x32xf32>
      %cst_71 = arith.constant dense<0.000000e+00> : vector<1x8xf32>
      %187 = vector.multi_reduction <add>, %186, %cst_71 [2] : vector<1x8x32xf32> to vector<1x8xf32>
      %188 = vector.shape_cast %187 : vector<1x8xf32> to vector<1x8x1xf32>
      %cst_72 = arith.constant 3.200000e+01 : f32
      %189 = vector.broadcast %cst_72 : f32 to vector<1x8x1xf32>
      %190 = arith.divf %188, %189 : vector<1x8x1xf32>
      %191 = vector.broadcast %183 : vector<1x8x1xf32> to vector<1x8x32xf32>
      %192 = arith.subf %176, %191 : vector<1x8x32xf32>
      %cst_73 = arith.constant 9.99999974E-6 : f32
      %193 = vector.broadcast %cst_73 : f32 to vector<1x8x1xf32>
      %194 = arith.addf %190, %193 : vector<1x8x1xf32>
      %195 = math.rsqrt %194 : vector<1x8x1xf32>
      %196 = vector.broadcast %195 : vector<1x8x1xf32> to vector<1x8x32xf32>
      %197 = arith.mulf %192, %196 : vector<1x8x32xf32>
      %198 = vector.shape_cast %178 : vector<1x32xf32> to vector<1x1x32xf32>
      %199 = vector.broadcast %198 : vector<1x1x32xf32> to vector<1x8x32xf32>
      %200 = arith.mulf %197, %199 : vector<1x8x32xf32>
      %201 = vector.shape_cast %179 : vector<1x32xf32> to vector<1x1x32xf32>
      %202 = vector.broadcast %201 : vector<1x1x32xf32> to vector<1x8x32xf32>
      %203 = arith.addf %200, %202 : vector<1x8x32xf32>
      %204 = arith.truncf %203 : vector<1x8x32xf32> to vector<1x8x32xbf16>
      %c0_74 = arith.constant 0 : index
      %c0_75 = arith.constant 0 : index
      %c0_76 = arith.constant 0 : index
      %205 = vector.load %arg17[%c0_74, %c0_75, %c0_76] : memref<1x8x32xbf16, #tpu.memory_space<vmem>>, vector<1x8x32xbf16>
      tpu.vector_store %arg17[%c0_74, %c0_75, %c0_76], %204 {strides = array<i32>} : memref<1x8x32xbf16, #tpu.memory_space<vmem>>, vector<1x8x32xbf16>,
      %cst_77 = arith.constant 0.000000e+00 : f32
      %206 = vector.broadcast %cst_77 : f32 to vector<1x8x32xf32>
      %c0_78 = arith.constant 0 : index
      %c0_79 = arith.constant 0 : index
      %c0_80 = arith.constant 0 : index
      %207 = vector.load %arg18[%c0_78, %c0_79, %c0_80] : memref<1x8x32xf32, #tpu.memory_space<vmem>>, vector<1x8x32xf32>
      tpu.vector_store %arg18[%c0_78, %c0_79, %c0_80], %206 {strides = array<i32>} : memref<1x8x32xf32, #tpu.memory_space<vmem>>, vector<1x8x32xf32>,
    } else {
    }
    %c0 = arith.constant 0 : index
    %c0_1 = arith.constant 0 : index
    %c0_2 = arith.constant 0 : index
    %3 = vector.load %arg17[%c0, %c0_1, %c0_2] : memref<1x8x32xbf16, #tpu.memory_space<vmem>>, vector<1x8x32xbf16>
    %4 = vector.shape_cast %3 : vector<1x8x32xbf16> to vector<8x32xbf16>
    %c0_3 = arith.constant 0 : index
    %c0_4 = arith.constant 0 : index
    %5 = vector.load %arg11[%c0_3, %c0_4] : memref<32x128xbf16, #tpu.memory_space<vmem>>, vector<32x128xbf16>
    %cst = arith.constant dense<0.000000e+00> : vector<8x128xf32>
    %6 = tpu.matmul %4, %5, %cst {dimension_numbers = #tpu.dot_dimension_numbers<[1], [0], [0], [1], [0, 0, 1, 1], [], []>} : vector<8x32xbf16>, vector<32x128xbf16>, vector<8x128xf32> -> vector<8x128xf32>
    %c0_5 = arith.constant 0 : index
    %c0_6 = arith.constant 0 : index
    %7 = vector.load %arg12[%c0_5, %c0_6] : memref<1x128xf32, #tpu.memory_space<vmem>>, vector<1x128xf32>
    %8 = vector.broadcast %7 : vector<1x128xf32> to vector<8x128xf32>
    %9 = arith.addf %6, %8 : vector<8x128xf32>
    %cst_7 = arith.constant 1.702000e+00 : f32
    %10 = vector.broadcast %cst_7 : f32 to vector<8x128xf32>
    %11 = arith.mulf %10, %9 : vector<8x128xf32>
    %12 = arith.negf %11 : vector<8x128xf32>
    %13 = math.exp %12 : vector<8x128xf32>
    %cst_8 = arith.constant 1.000000e+00 : f32
    %14 = vector.broadcast %cst_8 : f32 to vector<8x128xf32>
    %15 = arith.addf %14, %13 : vector<8x128xf32>
    %16 = arith.divf %14, %15 : vector<8x128xf32>
    %17 = arith.mulf %9, %16 : vector<8x128xf32>
    %c0_9 = arith.constant 0 : index
    %c0_10 = arith.constant 0 : index
    %c0_11 = arith.constant 0 : index
    %18 = vector.load %arg18[%c0_9, %c0_10, %c0_11] : memref<1x8x32xf32, #tpu.memory_space<vmem>>, vector<1x8x32xf32>
    %19 = arith.truncf %17 : vector<8x128xf32> to vector<8x128xbf16>
    %c0_12 = arith.constant 0 : index
    %c0_13 = arith.constant 0 : index
    %20 = vector.load %arg13[%c0_12, %c0_13] : memref<128x32xbf16, #tpu.memory_space<vmem>>, vector<128x32xbf16>
    %cst_14 = arith.constant dense<0.000000e+00> : vector<8x32xf32>
    %21 = tpu.matmul %19, %20, %cst_14 {dimension_numbers = #tpu.dot_dimension_numbers<[1], [0], [0], [1], [0, 0, 1, 1], [], []>} : vector<8x128xbf16>, vector<128x32xbf16>, vector<8x32xf32> -> vector<8x32xf32>
    %22 = vector.shape_cast %21 : vector<8x32xf32> to vector<1x8x32xf32>
    %23 = arith.addf %18, %22 : vector<1x8x32xf32>
    %c0_15 = arith.constant 0 : index
    %c0_16 = arith.constant 0 : index
    %c0_17 = arith.constant 0 : index
    %24 = vector.load %arg18[%c0_15, %c0_16, %c0_17] : memref<1x8x32xf32, #tpu.memory_space<vmem>>, vector<1x8x32xf32>
    tpu.vector_store %arg18[%c0_15, %c0_16, %c0_17], %23 {strides = array<i32>} : memref<1x8x32xf32, #tpu.memory_space<vmem>>, vector<1x8x32xf32>,
    %c0_i32_18 = arith.constant 0 : i32
    %25 = arith.cmpi eq, %arg1, %c0_i32_18 : i32
    %26 = arith.extui %25 : i1 to i32
    %c0_i32_19 = arith.constant 0 : i32
    %27 = arith.cmpi ne, %26, %c0_i32_19 : i32
    scf.if %27 {
      %c0_20 = arith.constant 0 : index
      %c0_21 = arith.constant 0 : index
      %c0_22 = arith.constant 0 : index
      %28 = vector.load %arg16[%c0_20, %c0_21, %c0_22] : memref<1x8x32xf32, #tpu.memory_space<vmem>>, vector<1x8x32xf32>
      %c0_23 = arith.constant 0 : index
      %c0_24 = arith.constant 0 : index
      %c0_25 = arith.constant 0 : index
      %29 = vector.load %arg18[%c0_23, %c0_24, %c0_25] : memref<1x8x32xf32, #tpu.memory_space<vmem>>, vector<1x8x32xf32>
      %30 = arith.addf %28, %29 : vector<1x8x32xf32>
      %c0_26 = arith.constant 0 : index
      %c0_27 = arith.constant 0 : index
      %31 = vector.load %arg14[%c0_26, %c0_27] : memref<1x32xf32, #tpu.memory_space<vmem>>, vector<1x32xf32>
      %32 = vector.shape_cast %31 : vector<1x32xf32> to vector<1x1x32xf32>
      %33 = vector.broadcast %32 : vector<1x1x32xf32> to vector<1x8x32xf32>
      %34 = arith.addf %30, %33 : vector<1x8x32xf32>
      %c0_28 = arith.constant 0 : index
      %c0_29 = arith.constant 0 : index
      %c0_30 = arith.constant 0 : index
      %35 = vector.load %arg15[%c0_28, %c0_29, %c0_30] : memref<1x8x32xf32, #tpu.memory_space<vmem>>, vector<1x8x32xf32>
      tpu.vector_store %arg15[%c0_28, %c0_29, %c0_30], %34 {strides = array<i32>} : memref<1x8x32xf32, #tpu.memory_space<vmem>>, vector<1x8x32xf32>,
    } else {
    }
    return
  }
  func.func @transform_0(%arg0: i32, %arg1: i32) -> (i32, i32, i32) {
    %c0_i32 = arith.constant 0 : i32
    %c0_i32_0 = arith.constant 0 : i32
    %c0_i32_1 = arith.constant 0 : i32
    return %arg0, %c0_i32, %c0_i32_0 : i32, i32, i32
  }
  func.func @transform_1(%arg0: i32, %arg1: i32) -> (i32, i32) {
    %c0_i32 = arith.constant 0 : i32
    %c0_i32_0 = arith.constant 0 : i32
    %c0_i32_1 = arith.constant 0 : i32
    return %c0_i32, %c0_i32_0 : i32, i32
  }
  func.func @transform_2(%arg0: i32, %arg1: i32) -> (i32, i32) {
    %c0_i32 = arith.constant 0 : i32
    %c0_i32_0 = arith.constant 0 : i32
    %c0_i32_1 = arith.constant 0 : i32
    return %c0_i32, %c0_i32_0 : i32, i32
  }
  func.func @transform_3(%arg0: i32, %arg1: i32) -> (i32, i32) {
    %c0_i32 = arith.constant 0 : i32
    %c0_i32_0 = arith.constant 0 : i32
    %c0_i32_1 = arith.constant 0 : i32
    return %c0_i32, %c0_i32_0 : i32, i32
  }
  func.func @transform_4(%arg0: i32, %arg1: i32) -> (i32, i32) {
    %c0_i32 = arith.constant 0 : i32
    %c0_i32_0 = arith.constant 0 : i32
    %c0_i32_1 = arith.constant 0 : i32
    return %c0_i32, %c0_i32_0 : i32, i32
  }
  func.func @transform_5(%arg0: i32, %arg1: i32) -> (i32, i32) {
    %c0_i32 = arith.constant 0 : i32
    %c0_i32_0 = arith.constant 0 : i32
    %c0_i32_1 = arith.constant 0 : i32
    return %c0_i32, %c0_i32_0 : i32, i32
  }
  func.func @transform_6(%arg0: i32, %arg1: i32) -> (i32, i32) {
    %c0_i32 = arith.constant 0 : i32
    %c0_i32_0 = arith.constant 0 : i32
    %c0_i32_1 = arith.constant 0 : i32
    return %c0_i32, %c0_i32_0 : i32, i32
  }
  func.func @transform_7(%arg0: i32, %arg1: i32) -> (i32, i32) {
    %c0_i32 = arith.constant 0 : i32
    %c0_i32_0 = arith.constant 0 : i32
    %c0_i32_1 = arith.constant 0 : i32
    return %c0_i32, %c0_i32_0 : i32, i32
  }
  func.func @transform_8(%arg0: i32, %arg1: i32) -> (i32, i32) {
    %c0_i32 = arith.constant 0 : i32
    %c0_i32_0 = arith.constant 0 : i32
    %c0_i32_1 = arith.constant 0 : i32
    return %c0_i32, %c0_i32_0 : i32, i32
  }
  func.func @transform_9(%arg0: i32, %arg1: i32) -> (i32, i32) {
    %c0_i32 = arith.constant 0 : i32
    %c0_i32_0 = arith.constant 0 : i32
    return %c0_i32, %arg1 : i32, i32
  }
  func.func @transform_10(%arg0: i32, %arg1: i32) -> (i32, i32) {
    %c0_i32 = arith.constant 0 : i32
    %c0_i32_0 = arith.constant 0 : i32
    return %c0_i32, %arg1 : i32, i32
  }
  func.func @transform_11(%arg0: i32, %arg1: i32) -> (i32, i32) {
    %c0_i32 = arith.constant 0 : i32
    %c0_i32_0 = arith.constant 0 : i32
    return %arg1, %c0_i32 : i32, i32
  }
  func.func @transform_12(%arg0: i32, %arg1: i32) -> (i32, i32) {
    %c0_i32 = arith.constant 0 : i32
    %c0_i32_0 = arith.constant 0 : i32
    %c0_i32_1 = arith.constant 0 : i32
    return %c0_i32, %c0_i32_0 : i32, i32
  }
  func.func @transform_13(%arg0: i32, %arg1: i32) -> (i32, i32, i32) {
    %c0_i32 = arith.constant 0 : i32
    %c0_i32_0 = arith.constant 0 : i32
    %c0_i32_1 = arith.constant 0 : i32
    return %arg0, %c0_i32, %c0_i32_0 : i32, i32, i32
  }
}

</mosaic_0001>

<llo_original>
// kernel: transformer_forward.3
$region0: #{transformer_forward.3}
  #allocation0 [shape = 'u32[]', space=smem, size = 0x4, offset = 0x4, fixed_abs, tag = 'smem constant byte address 0x4 - core index']
  #allocation1 [shape = 'u32[72,128]{1,0:T(1,128)}', space=vmem, size = 0x9000, scoped, tag = 'internal scratch']
  #allocation2 [shape = 'f32[1,8,32]{2,1,0:T(8,128)}', space=vmem, size = 0x1000, scoped, tag = 'scratch operand']
  #allocation3 [shape = 'bf16[1,8,32]{2,1,0:T(8,128)(2,1)}', space=vmem, size = 0x800, scoped, tag = 'scratch operand']
  #allocation4 [shape = 'f32[1,8,32]{2,1,0:T(8,128)}', space=vmem, size = 0x1000, scoped, tag = 'scratch operand']
  %s0 = inlined_call_operand.vmem [shape: f32[2,8,32], index: 0, kind: input, shape index: {}]
  %s1 = inlined_call_operand.vmem [shape: f32[1,32], index: 1, kind: input, shape index: {}]
  %s2 = inlined_call_operand.vmem [shape: f32[1,32], index: 2, kind: input, shape index: {}]
  %s3 = inlined_call_operand.vmem [shape: bf16[32,96], index: 3, kind: input, shape index: {}]
  %s4 = inlined_call_operand.vmem [shape: f32[1,96], index: 4, kind: input, shape index: {}]
  %s5 = inlined_call_operand.vmem [shape: bf16[32,32], index: 5, kind: input, shape index: {}]
  %s6 = inlined_call_operand.vmem [shape: f32[1,32], index: 6, kind: input, shape index: {}]
  %s7 = inlined_call_operand.vmem [shape: f32[1,32], index: 7, kind: input, shape index: {}]
  %s8 = inlined_call_operand.vmem [shape: f32[1,32], index: 8, kind: input, shape index: {}]
  %s9 = inlined_call_operand.vmem [shape: bf16[32,128], index: 9, kind: input, shape index: {}]
  %s10 = inlined_call_operand.vmem [shape: f32[1,128], index: 10, kind: input, shape index: {}]
  %s11 = inlined_call_operand.vmem [shape: bf16[128,32], index: 11, kind: input, shape index: {}]
  %s12 = inlined_call_operand.vmem [shape: f32[1,32], index: 12, kind: input, shape index: {}]
  %s13 = inlined_call_operand.hbm [shape: f32[2,8,32], index: 13, kind: output, shape index: {}]
  %s14 = sld [smem:[#allocation0]]
  $region93: #{transformer_forward.3} parent=0
    _
  %s16 = ssub.s32 1, %s14
  %s17 = scalar_select 0, %s16, %s14
  $region1: #{transformer_forward.3} parent=0
    #allocation5 [shape = 'u8[8192]{0}', space=vmem, size = 0x2000, scoped, tag = 'output window, operand 0']
    #allocation6 [shape = 's32[2]{0}', space=sflag, size = 0x8, scoped, tag = 'scoped memory for transformer_forward.3']
    %18 = vsyncpa [#allocation6], 0
    %s19 = scalar_lea.sflag [#allocation6], 1
    %20 = vsyncpa %s19, 0
    loop: start=0, step=1, limit=4
    $region2: #{transformer_forward.3} parent=1 // loop_pre_header
      _
    $region3: #{transformer_forward.3} parent=1 // loop_header
      %s22 = sphi 0, %s26
      %p23 = scmp.ge.s32.totalorder %s22, 4
      %s29 = sphi 0, %s41
      %s30 = sphi 0, %s37
      %s31 = sphi 0, %s29
      %s32 = sphi 0, %s30
      %s33 = sphi 0, %s31
      %s34 = sphi 0, %s32
      %s44 = sphi 0, %s46
      %s47 = sphi 0, %s44
      %s48 = sphi 0, %s47
      %s64 = sphi 0, %s48
      %s68 = sphi 0, %s68
      %s70 = sphi 0, %s68
      %s71 = sphi 0, %s70
      %s85 = sphi 0, %s71
      %s89 = sphi 0, %s89
      %s91 = sphi 0, %s89
      %s92 = sphi 0, %s91
      %s106 = sphi 0, %s92
      %s110 = sphi 0, %s110
      %s112 = sphi 0, %s110
      %s113 = sphi 0, %s112
      %s127 = sphi 0, %s113
      %s131 = sphi 0, %s131
      %s133 = sphi 0, %s131
      %s134 = sphi 0, %s133
      %s148 = sphi 0, %s134
      %s152 = sphi 0, %s152
      %s154 = sphi 0, %s152
      %s155 = sphi 0, %s154
      %s169 = sphi 0, %s155
      %s173 = sphi 0, %s173
      %s175 = sphi 0, %s173
      %s176 = sphi 0, %s175
      %s190 = sphi 0, %s176
      %s194 = sphi 0, %s194
      %s196 = sphi 0, %s194
      %s197 = sphi 0, %s196
      %s211 = sphi 0, %s197
      %s215 = sphi 0, %s215
      %s217 = sphi 0, %s215
      %s218 = sphi 0, %s217
      %s232 = sphi 0, %s218
      %s238 = sphi 0, %s240
      %s241 = sphi 0, %s238
      %s242 = sphi 0, %s241
      %s258 = sphi 0, %s242
      %s264 = sphi 0, %s266
      %s267 = sphi 0, %s264
      %s268 = sphi 0, %s267
      %s284 = sphi 0, %s268
      %s290 = sphi 0, %s292
      %s293 = sphi 0, %s290
      %s294 = sphi 0, %s293
      %s310 = sphi 0, %s294
      %s314 = sphi 0, %s314
      %s316 = sphi 0, %s314
      %s317 = sphi 0, %s316
      %s331 = sphi 0, %s317
      %s337 = sphi 0, %s339
      %s340 = sphi 0, %s337
      %s341 = sphi 0, %s340
      %s357 = sphi 0, %s341
    $region4: #{transformer_forward.3} parent=1 // loop_header_branch
      %25 = sbr.rel (%p23) target = $region8
    $region5: #{transformer_forward.3} parent=1 // loop_body
      %s27 = ssub.s32 %s22, 1
      %s28 = ssub.s32 %s22, 2
      %s35 = sadd.s32 1, %s30
      %p36 = scmp.ge.s32.totalorder %s35, 1
      %s37 = scalar_select %p36, 0, %s35
      %s38 = sadd.s32 1, %s29
      %s39 = scalar_select %p36, %s38, %s29
      %p40 = scmp.ge.s32.totalorder %s39, 2
      %s41 = scalar_select %p40, 0, %s39
      %s42 = ssub.s32 %s29, %s41
      %p43 = scmp.eq.s32.totalorder %s42, 0
      %s45 = sadd.s32 %s44, 1
      %s46 = scalar_select %p43, %s44, %s45
      %p49 = pneg %p43
      %p50 = scmp.eq.s32.totalorder %s22, 1
      %p51 = por %p49, %p50
      %p52 = scmp.ne.s32.totalorder %s44, %s47
      %p53 = scmp.eq.s32.totalorder %s22, 0
      %p54 = por %p52, %p53
      %p55 = scmp.ne.s32.totalorder %s44, %s47
      %p56 = scmp.eq.s32.totalorder %s27, 1
      %p57 = por %p55, %p56
      %p58 = scmp.ne.s32.totalorder %s47, %s48
      %p59 = scmp.eq.s32.totalorder %s27, 0
      %p60 = por %p58, %p59
      %p61 = scmp.ne.s32.totalorder %s47, %s48
      %p62 = scmp.eq.s32.totalorder %s28, 1
      %p63 = por %p61, %p62
      %p65 = scmp.ne.s32.totalorder %s48, %s64
      %p66 = scmp.eq.s32.totalorder %s28, 0
      %p67 = por %p65, %p66
      %s69 = sadd.s32 %s68, 1
      %p72 = scmp.eq.s32.totalorder %s22, 1
      %p73 = scmp.ne.s32.totalorder %s68, %s70
      %p74 = scmp.eq.s32.totalorder %s22, 0
      %p75 = por %p73, %p74
      %p76 = scmp.ne.s32.totalorder %s68, %s70
      %p77 = scmp.eq.s32.totalorder %s27, 1
      %p78 = por %p76, %p77
      %p79 = scmp.ne.s32.totalorder %s70, %s71
      %p80 = scmp.eq.s32.totalorder %s27, 0
      %p81 = por %p79, %p80
      %p82 = scmp.ne.s32.totalorder %s70, %s71
      %p83 = scmp.eq.s32.totalorder %s28, 1
      %p84 = por %p82, %p83
      %p86 = scmp.ne.s32.totalorder %s71, %s85
      %p87 = scmp.eq.s32.totalorder %s28, 0
      %p88 = por %p86, %p87
      %s90 = sadd.s32 %s89, 1
      %p93 = scmp.eq.s32.totalorder %s22, 1
      %p94 = scmp.ne.s32.totalorder %s89, %s91
      %p95 = scmp.eq.s32.totalorder %s22, 0
      %p96 = por %p94, %p95
      %p97 = scmp.ne.s32.totalorder %s89, %s91
      %p98 = scmp.eq.s32.totalorder %s27, 1
      %p99 = por %p97, %p98
      %p100 = scmp.ne.s32.totalorder %s91, %s92
      %p101 = scmp.eq.s32.totalorder %s27, 0
      %p102 = por %p100, %p101
      %p103 = scmp.ne.s32.totalorder %s91, %s92
      %p104 = scmp.eq.s32.totalorder %s28, 1
      %p105 = por %p103, %p104
      %p107 = scmp.ne.s32.totalorder %s92, %s106
      %p108 = scmp.eq.s32.totalorder %s28, 0
      %p109 = por %p107, %p108
      %s111 = sadd.s32 %s110, 1
      %p114 = scmp.eq.s32.totalorder %s22, 1
      %p115 = scmp.ne.s32.totalorder %s110, %s112
      %p116 = scmp.eq.s32.totalorder %s22, 0
      %p117 = por %p115, %p116
      %p118 = scmp.ne.s32.totalorder %s110, %s112
      %p119 = scmp.eq.s32.totalorder %s27, 1
      %p120 = por %p118, %p119
      %p121 = scmp.ne.s32.totalorder %s112, %s113
      %p122 = scmp.eq.s32.totalorder %s27, 0
      %p123 = por %p121, %p122
      %p124 = scmp.ne.s32.totalorder %s112, %s113
      %p125 = scmp.eq.s32.totalorder %s28, 1
      %p126 = por %p124, %p125
      %p128 = scmp.ne.s32.totalorder %s113, %s127
      %p129 = scmp.eq.s32.totalorder %s28, 0
      %p130 = por %p128, %p129
      %s132 = sadd.s32 %s131, 1
      %p135 = scmp.eq.s32.totalorder %s22, 1
      %p136 = scmp.ne.s32.totalorder %s131, %s133
      %p137 = scmp.eq.s32.totalorder %s22, 0
      %p138 = por %p136, %p137
      %p139 = scmp.ne.s32.totalorder %s131, %s133
      %p140 = scmp.eq.s32.totalorder %s27, 1
      %p141 = por %p139, %p140
      %p142 = scmp.ne.s32.totalorder %s133, %s134
      %p143 = scmp.eq.s32.totalorder %s27, 0
      %p144 = por %p142, %p143
      %p145 = scmp.ne.s32.totalorder %s133, %s134
      %p146 = scmp.eq.s32.totalorder %s28, 1
      %p147 = por %p145, %p146
      %p149 = scmp.ne.s32.totalorder %s134, %s148
      %p150 = scmp.eq.s32.totalorder %s28, 0
      %p151 = por %p149, %p150
      %s153 = sadd.s32 %s152, 1
      %p156 = scmp.eq.s32.totalorder %s22, 1
      %p157 = scmp.ne.s32.totalorder %s152, %s154
      %p158 = scmp.eq.s32.totalorder %s22, 0
      %p159 = por %p157, %p158
      %p160 = scmp.ne.s32.totalorder %s152, %s154
      %p161 = scmp.eq.s32.totalorder %s27, 1
      %p162 = por %p160, %p161
      %p163 = scmp.ne.s32.totalorder %s154, %s155
      %p164 = scmp.eq.s32.totalorder %s27, 0
      %p165 = por %p163, %p164
      %p166 = scmp.ne.s32.totalorder %s154, %s155
      %p167 = scmp.eq.s32.totalorder %s28, 1
      %p168 = por %p166, %p167
      %p170 = scmp.ne.s32.totalorder %s155, %s169
      %p171 = scmp.eq.s32.totalorder %s28, 0
      %p172 = por %p170, %p171
      %s174 = sadd.s32 %s173, 1
      %p177 = scmp.eq.s32.totalorder %s22, 1
      %p178 = scmp.ne.s32.totalorder %s173, %s175
      %p179 = scmp.eq.s32.totalorder %s22, 0
      %p180 = por %p178, %p179
      %p181 = scmp.ne.s32.totalorder %s173, %s175
      %p182 = scmp.eq.s32.totalorder %s27, 1
      %p183 = por %p181, %p182
      %p184 = scmp.ne.s32.totalorder %s175, %s176
      %p185 = scmp.eq.s32.totalorder %s27, 0
      %p186 = por %p184, %p185
      %p187 = scmp.ne.s32.totalorder %s175, %s176
      %p188 = scmp.eq.s32.totalorder %s28, 1
      %p189 = por %p187, %p188
      %p191 = scmp.ne.s32.totalorder %s176, %s190
      %p192 = scmp.eq.s32.totalorder %s28, 0
      %p193 = por %p191, %p192
      %s195 = sadd.s32 %s194, 1
      %p198 = scmp.eq.s32.totalorder %s22, 1
      %p199 = scmp.ne.s32.totalorder %s194, %s196
      %p200 = scmp.eq.s32.totalorder %s22, 0
      %p201 = por %p199, %p200
      %p202 = scmp.ne.s32.totalorder %s194, %s196
      %p203 = scmp.eq.s32.totalorder %s27, 1
      %p204 = por %p202, %p203
      %p205 = scmp.ne.s32.totalorder %s196, %s197
      %p206 = scmp.eq.s32.totalorder %s27, 0
      %p207 = por %p205, %p206
      %p208 = scmp.ne.s32.totalorder %s196, %s197
      %p209 = scmp.eq.s32.totalorder %s28, 1
      %p210 = por %p208, %p209
      %p212 = scmp.ne.s32.totalorder %s197, %s211
      %p213 = scmp.eq.s32.totalorder %s28, 0
      %p214 = por %p212, %p213
      %s216 = sadd.s32 %s215, 1
      %p219 = scmp.eq.s32.totalorder %s22, 1
      %p220 = scmp.ne.s32.totalorder %s215, %s217
      %p221 = scmp.eq.s32.totalorder %s22, 0
      %p222 = por %p220, %p221
      %p223 = scmp.ne.s32.totalorder %s215, %s217
      %p224 = scmp.eq.s32.totalorder %s27, 1
      %p225 = por %p223, %p224
      %p226 = scmp.ne.s32.totalorder %s217, %s218
      %p227 = scmp.eq.s32.totalorder %s27, 0
      %p228 = por %p226, %p227
      %p229 = scmp.ne.s32.totalorder %s217, %s218
      %p230 = scmp.eq.s32.totalorder %s28, 1
      %p231 = por %p229, %p230
      %p233 = scmp.ne.s32.totalorder %s218, %s232
      %p234 = scmp.eq.s32.totalorder %s28, 0
      %p235 = por %p233, %p234
      %s236 = ssub.s32 %s30, %s37
      %p237 = scmp.eq.s32.totalorder %s236, 0
      %s239 = sadd.s32 %s238, 1
      %s240 = scalar_select %p237, %s238, %s239
      %p243 = pneg %p237
      %p244 = scmp.eq.s32.totalorder %s22, 1
      %p245 = por %p243, %p244
      %p246 = scmp.ne.s32.totalorder %s238, %s241
      %p247 = scmp.eq.s32.totalorder %s22, 0
      %p248 = por %p246, %p247
      %p249 = scmp.ne.s32.totalorder %s238, %s241
      %p250 = scmp.eq.s32.totalorder %s27, 1
      %p251 = por %p249, %p250
      %p252 = scmp.ne.s32.totalorder %s241, %s242
      %p253 = scmp.eq.s32.totalorder %s27, 0
      %p254 = por %p252, %p253
      %p255 = scmp.ne.s32.totalorder %s241, %s242
      %p256 = scmp.eq.s32.totalorder %s28, 1
      %p257 = por %p255, %p256
      %p259 = scmp.ne.s32.totalorder %s242, %s258
      %p260 = scmp.eq.s32.totalorder %s28, 0
      %p261 = por %p259, %p260
      %s262 = ssub.s32 %s30, %s37
      %p263 = scmp.eq.s32.totalorder %s262, 0
      %s265 = sadd.s32 %s264, 1
      %s266 = scalar_select %p263, %s264, %s265
      %p269 = pneg %p263
      %p270 = scmp.eq.s32.totalorder %s22, 1
      %p271 = por %p269, %p270
      %p272 = scmp.ne.s32.totalorder %s264, %s267
      %p273 = scmp.eq.s32.totalorder %s22, 0
      %p274 = por %p272, %p273
      %p275 = scmp.ne.s32.totalorder %s264, %s267
      %p276 = scmp.eq.s32.totalorder %s27, 1
      %p277 = por %p275, %p276
      %p278 = scmp.ne.s32.totalorder %s267, %s268
      %p279 = scmp.eq.s32.totalorder %s27, 0
      %p280 = por %p278, %p279
      %p281 = scmp.ne.s32.totalorder %s267, %s268
      %p282 = scmp.eq.s32.totalorder %s28, 1
      %p283 = por %p281, %p282
      %p285 = scmp.ne.s32.totalorder %s268, %s284
      %p286 = scmp.eq.s32.totalorder %s28, 0
      %p287 = por %p285, %p286
      %s288 = ssub.s32 %s30, %s37
      %p289 = scmp.eq.s32.totalorder %s288, 0
      %s291 = sadd.s32 %s290, 1
      %s292 = scalar_select %p289, %s290, %s291
      %p295 = pneg %p289
      %p296 = scmp.eq.s32.totalorder %s22, 1
      %p297 = por %p295, %p296
      %p298 = scmp.ne.s32.totalorder %s290, %s293
      %p299 = scmp.eq.s32.totalorder %s22, 0
      %p300 = por %p298, %p299
      %p301 = scmp.ne.s32.totalorder %s290, %s293
      %p302 = scmp.eq.s32.totalorder %s27, 1
      %p303 = por %p301, %p302
      %p304 = scmp.ne.s32.totalorder %s293, %s294
      %p305 = scmp.eq.s32.totalorder %s27, 0
      %p306 = por %p304, %p305
      %p307 = scmp.ne.s32.totalorder %s293, %s294
      %p308 = scmp.eq.s32.totalorder %s28, 1
      %p309 = por %p307, %p308
      %p311 = scmp.ne.s32.totalorder %s294, %s310
      %p312 = scmp.eq.s32.totalorder %s28, 0
      %p313 = por %p311, %p312
      %s315 = sadd.s32 %s314, 1
      %p318 = scmp.eq.s32.totalorder %s22, 1
      %p319 = scmp.ne.s32.totalorder %s314, %s316
      %p320 = scmp.eq.s32.totalorder %s22, 0
      %p321 = por %p319, %p320
      %p322 = scmp.ne.s32.totalorder %s314, %s316
      %p323 = scmp.eq.s32.totalorder %s27, 1
      %p324 = por %p322, %p323
      %p325 = scmp.ne.s32.totalorder %s316, %s317
      %p326 = scmp.eq.s32.totalorder %s27, 0
      %p327 = por %p325, %p326
      %p328 = scmp.ne.s32.totalorder %s316, %s317
      %p329 = scmp.eq.s32.totalorder %s28, 1
      %p330 = por %p328, %p329
      %p332 = scmp.ne.s32.totalorder %s317, %s331
      %p333 = scmp.eq.s32.totalorder %s28, 0
      %p334 = por %p332, %p333
      %s335 = ssub.s32 %s29, %s41
      %p336 = scmp.eq.s32.totalorder %s335, 0
      %s338 = sadd.s32 %s337, 1
      %s339 = scalar_select %p336, %s337, %s338
      %p342 = pneg %p336
      %p343 = scmp.eq.s32.totalorder %s22, 1
      %p344 = por %p342, %p343
      %p345 = scmp.ne.s32.totalorder %s337, %s340
      %p346 = scmp.eq.s32.totalorder %s22, 0
      %p347 = por %p345, %p346
      %p348 = scmp.ne.s32.totalorder %s337, %s340
      %p349 = scmp.eq.s32.totalorder %s27, 1
      %p350 = por %p348, %p349
      %p351 = scmp.ne.s32.totalorder %s340, %s341
      %p352 = scmp.eq.s32.totalorder %s27, 0
      %p353 = por %p351, %p352
      %p354 = scmp.ne.s32.totalorder %s340, %s341
      %p355 = scmp.eq.s32.totalorder %s28, 1
      %p356 = por %p354, %p355
      %p358 = scmp.ne.s32.totalorder %s341, %s357
      %p359 = scmp.eq.s32.totalorder %s28, 0
      %p360 = por %p358, %p359
      %p361 = scmp.le.s32.totalorder 1, %s22
      %p362 = scmp.lt.s32.totalorder %s22, 3
      %p363 = pnand %p361, %p362
      %p364 = pneg %p363
      // Predicated region
      $region9: #{transformer_forward.3} parent=5 // pred_check
        _
      $region10: #{transformer_forward.3} parent=5 // pred_check_branch
        %366 = sbr.rel (%p363) target = $region12
      $region11: #{transformer_forward.3} parent=5 // pred_region
        %s367 = ssub.s32 %s22, 1
        // Predicated region
        $region13: #{transformer_forward.3} parent=11 // pred_check
          %p368 = pneg %p81
        $region14: #{transformer_forward.3} parent=11 // pred_check_branch
          %370 = sbr.rel (%p368) target = $region16
        $region15: #{transformer_forward.3} parent=11 // pred_region
          _
        $region16: #{transformer_forward.3} parent=11 // pred_fallthru
          _
        // Predicated region
        $region17: #{transformer_forward.3} parent=11 // pred_check
          %p371 = pneg %p102
        $region18: #{transformer_forward.3} parent=11 // pred_check_branch
          %373 = sbr.rel (%p371) target = $region20
        $region19: #{transformer_forward.3} parent=11 // pred_region
          _
        $region20: #{transformer_forward.3} parent=11 // pred_fallthru
          _
        // Predicated region
        $region21: #{transformer_forward.3} parent=11 // pred_check
          %p374 = pneg %p123
        $region22: #{transformer_forward.3} parent=11 // pred_check_branch
          %376 = sbr.rel (%p374) target = $region24
        $region23: #{transformer_forward.3} parent=11 // pred_region
          _
        $region24: #{transformer_forward.3} parent=11 // pred_fallthru
          _
        // Predicated region
        $region25: #{transformer_forward.3} parent=11 // pred_check
          %p377 = pneg %p144
        $region26: #{transformer_forward.3} parent=11 // pred_check_branch
          %379 = sbr.rel (%p377) target = $region28
        $region27: #{transformer_forward.3} parent=11 // pred_region
          _
        $region28: #{transformer_forward.3} parent=11 // pred_fallthru
          _
        // Predicated region
        $region29: #{transformer_forward.3} parent=11 // pred_check
          %p380 = pneg %p165
        $region30: #{transformer_forward.3} parent=11 // pred_check_branch
          %382 = sbr.rel (%p380) target = $region32
        $region31: #{transformer_forward.3} parent=11 // pred_region
          _
        $region32: #{transformer_forward.3} parent=11 // pred_fallthru
          _
        // Predicated region
        $region33: #{transformer_forward.3} parent=11 // pred_check
          %p383 = pneg %p186
        $region34: #{transformer_forward.3} parent=11 // pred_check_branch
          %385 = sbr.rel (%p383) target = $region36
        $region35: #{transformer_forward.3} parent=11 // pred_region
          _
        $region36: #{transformer_forward.3} parent=11 // pred_fallthru
          _
        // Predicated region
        $region37: #{transformer_forward.3} parent=11 // pred_check
          %p386 = pneg %p207
        $region38: #{transformer_forward.3} parent=11 // pred_check_branch
          %388 = sbr.rel (%p386) target = $region40
        $region39: #{transformer_forward.3} parent=11 // pred_region
          _
        $region40: #{transformer_forward.3} parent=11 // pred_fallthru
          _
        // Predicated region
        $region41: #{transformer_forward.3} parent=11 // pred_check
          %p389 = pneg %p228
        $region42: #{transformer_forward.3} parent=11 // pred_check_branch
          %391 = sbr.rel (%p389) target = $region44
        $region43: #{transformer_forward.3} parent=11 // pred_region
          _
        $region44: #{transformer_forward.3} parent=11 // pred_fallthru
          _
        // Predicated region
        $region45: #{transformer_forward.3} parent=11 // pred_check
          %p392 = pneg %p254
        $region46: #{transformer_forward.3} parent=11 // pred_check_branch
          %394 = sbr.rel (%p392) target = $region48
        $region47: #{transformer_forward.3} parent=11 // pred_region
          %p395 = scmp.lt.s32.totalorder %s32, 0
          %s396 = scalar_select %p395, %s32, 0
          %s397 = smul.addr %s396, 4
          %s398 = scalar_lea.vmem %s9, %s397
        $region48: #{transformer_forward.3} parent=11 // pred_fallthru
          _
        // Predicated region
        $region49: #{transformer_forward.3} parent=11 // pred_check
          %p399 = pneg %p280
        $region50: #{transformer_forward.3} parent=11 // pred_check_branch
          %401 = sbr.rel (%p399) target = $region52
        $region51: #{transformer_forward.3} parent=11 // pred_region
          %p402 = scmp.lt.s32.totalorder %s32, 0
          %s403 = scalar_select %p402, %s32, 0
          %s404 = scalar_lea.vmem %s10, %s403
        $region52: #{transformer_forward.3} parent=11 // pred_fallthru
          _
        // Predicated region
        $region53: #{transformer_forward.3} parent=11 // pred_check
          %p405 = pneg %p306
        $region54: #{transformer_forward.3} parent=11 // pred_check_branch
          %407 = sbr.rel (%p405) target = $region56
        $region55: #{transformer_forward.3} parent=11 // pred_region
          %s408 = smul.u32 16, %s32
          %p409 = scmp.lt.s32.totalorder %s408, 15
          %s410 = scalar_select %p409, %s408, 15
          %s411 = smul.addr %s410, 4
          %s412 = scalar_lea.vmem %s11, %s411
          %s413 = smul.u32 16, %s32
        $region56: #{transformer_forward.3} parent=11 // pred_fallthru
          _
        // Predicated region
        $region57: #{transformer_forward.3} parent=11 // pred_check
          %p414 = pneg %p327
        $region58: #{transformer_forward.3} parent=11 // pred_check_branch
          %416 = sbr.rel (%p414) target = $region60
        $region59: #{transformer_forward.3} parent=11 // pred_region
          _
        $region60: #{transformer_forward.3} parent=11 // pred_fallthru
          _
      $region12: #{transformer_forward.3} parent=5 // pred_fallthru
        _
      %p417 = scmp.lt.s32.totalorder %s22, 2
      // Predicated region
      $region61: #{transformer_forward.3} parent=5 // pred_check
        %p418 = pneg %p417
      $region62: #{transformer_forward.3} parent=5 // pred_check_branch
        %420 = sbr.rel (%p418) target = $region64
      $region63: #{transformer_forward.3} parent=5 // pred_region
        // Predicated region
        $region65: #{transformer_forward.3} parent=63 // pred_check
          %p421 = pneg %p54
        $region66: #{transformer_forward.3} parent=63 // pred_check_branch
          %423 = sbr.rel (%p421) target = $region68
        $region67: #{transformer_forward.3} parent=63 // pred_region
          %p424 = scmp.lt.s32.totalorder %s29, 1
          %s425 = scalar_select %p424, %s29, 1
          %s426 = smul.addr %s425, 8
          %s427 = scalar_lea.vmem %s0, %s426
        $region68: #{transformer_forward.3} parent=63 // pred_fallthru
          _
      $region64: #{transformer_forward.3} parent=5 // pred_fallthru
        _
      %p428 = scmp.le.s32.totalorder 1, %s22
      %p429 = scmp.lt.s32.totalorder %s22, 3
      %p430 = pnand %p428, %p429
      %p431 = pneg %p430
      // Predicated region
      $region69: #{transformer_forward.3} parent=5 // pred_check
        _
      $region70: #{transformer_forward.3} parent=5 // pred_check_branch
        %433 = sbr.rel (%p430) target = $region72
      $region71: #{transformer_forward.3} parent=5 // pred_region
        %s434 = ssub.s32 %s22, 1
        %p435 = scmp.lt.s32.totalorder %s31, 1
        %s436 = scalar_select %p435, %s31, 1
        %s437 = smul.addr %s436, 8
        %s438 = scalar_lea.vmem %s0, %s437
        %p439 = pneg %p60
        %p440 = pneg %p57
        %p441 = pneg %p81
        %p442 = pneg %p78
        %p443 = pneg %p102
        %p444 = pneg %p99
        %p445 = pneg %p123
        %p446 = pneg %p120
        %p447 = pneg %p144
        %p448 = pneg %p141
        %p449 = pneg %p165
        %p450 = pneg %p162
        %p451 = pneg %p186
        %p452 = pneg %p183
        %p453 = pneg %p207
        %p454 = pneg %p204
        %p455 = pneg %p228
        %p456 = pneg %p225
        %p457 = scmp.lt.s32.totalorder %s32, 0
        %s458 = scalar_select %p457, %s32, 0
        %s459 = smul.addr %s458, 4
        %s460 = scalar_lea.vmem %s9, %s459
        %p461 = pneg %p254
        %p462 = pneg %p251
        %p463 = scmp.lt.s32.totalorder %s32, 0
        %s464 = scalar_select %p463, %s32, 0
        %s465 = scalar_lea.vmem %s10, %s464
        %p466 = pneg %p280
        %p467 = pneg %p277
        %s468 = smul.u32 16, %s32
        %p469 = scmp.lt.s32.totalorder %s468, 15
        %s470 = scalar_select %p469, %s468, 15
        %s471 = smul.addr %s470, 4
        %s472 = scalar_lea.vmem %s11, %s471
        %p473 = pneg %p306
        %p474 = pneg %p303
        %p475 = pneg %p327
        %p476 = pneg %p324
        %p477 = pneg %p353
        %p478 = pneg %p350
        %s479 = sand.u32 %s340, 1
        %s480 = scalar_lea.sflag [#allocation6], %s479
        %s481 = sand.u32 %s340, 1
        %s482 = smul.addr %s481, 8
        %s483 = scalar_lea.vmem [#allocation5], %s482
        %p484 = scmp.lt.s32.totalorder %s31, 1
        %s485 = scalar_select %p484, %s31, 1
        %s486 = smul.addr %s485, 8
        %s487 = scalar_lea.vmem %s0, %s486
        %p488 = scmp.lt.s32.totalorder %s32, 0
        %s489 = scalar_select %p488, %s32, 0
        %s490 = smul.addr %s489, 4
        %s491 = scalar_lea.vmem %s9, %s490
        %p492 = scmp.lt.s32.totalorder %s32, 0
        %s493 = scalar_select %p492, %s32, 0
        %s494 = scalar_lea.vmem %s10, %s493
        %s495 = smul.u32 16, %s32
        %p496 = scmp.lt.s32.totalorder %s495, 15
        %s497 = scalar_select %p496, %s495, 15
        %s498 = smul.addr %s497, 4
        %s499 = scalar_lea.vmem %s11, %s498
        %s500 = smul.u32 16, %s32
        %p502 = scmp.eq.s32.totalorder %s32, 0
        // Predicated region
        $region73: #{transformer_forward.3} parent=71 // pred_check
          %p503 = pneg %p502
        $region74: #{transformer_forward.3} parent=71 // pred_check_branch
          %505 = sbr.rel (%p503) target = $region76
        $region75: #{transformer_forward.3} parent=71 // pred_region
          %v506 = vld [vmem:[%s487] sm:$0xff]
          %v507 = vld [vmem:[%s1] sm:$0x1]
          %v508 = vld [vmem:[%s2] sm:$0x1]
          %vm509 = vcmask 261120
          %v510 = vsel %vm509, %v506, 0.0
          %511 = vadd.xlane.f32.xlu0 %v510
          %v512 = vpop.xlane.xlu0 %511
          %v513 = vrcp.pop 32.0
          %v514 = vmul.f32 32.0, %v513
          %v515 = vsub.f32 1.0, %v514
          %v516 = vmul.f32 %v513, %v515
          %v517 = vadd.f32 %v513, %v516
          %vm518 = vweird.f32 %v513
          %v519 = vsel %vm518, %v513, %v517
          %v520 = vmul.f32 %v512, %v519
          %v521 = vsub.f32 %v506, %v520
          %v522 = vmul.f32 %v521, %v521
          %v523 = vsel %vm509, %v522, 0.0
          %524 = vadd.xlane.f32.xlu0 %v523
          %v525 = vpop.xlane.xlu0 %524
          %v526 = vmul.f32 %v525, %v519
          %v527 = vadd.f32 %v526, 1e-05
          %v528 = vrsqrt.pop %v527
          %v529 = vmul.f32 %v528, %v527
          %v530 = vmul.f32 %v529, %v528
          %v531 = vmul.f32 0.5, %v530
          %v532 = vsub.f32 1.5, %v531
          %v533 = vmul.f32 %v528, %v532
          %vm534 = vweird.f32 %v527
          %vm535 = vweird.f32 %v528
          %vm536 = vmor %vm534, %vm535
          %v537 = vsel %vm536, %v528, %v533
          %v538 = vmul.f32 %v521, %v537
          %v540 = vperm.slane %v507, 0
          %v542 = vmul.f32 %v538, %v540
          %v544 = vperm.slane %v508, 0
          %v546 = vadd.f32 %v542, %v544
          %v547 = vpack.c.bf16 %v546, %v546
          %v548 = vld [vmem:[%s3] sm:$0xf]
          %v549 = vld [vmem:[%s3 + $0x4] sm:$0xf]
          %v550 = vld [vmem:[%s3 + $0x8] sm:$0xf]
          %v551 = vld [vmem:[%s3 + $0xc] sm:$0xf]
          %v552 = vld [vmem:[%s4] sm:$0x1]
          %v554 = vperm.slane %v552, 0
          %v560 = vunpack.c.l.b16 %v548
          %v561 = vunpack.c.l.b16 %v549
          %v562 = vunpack.c.l.b16 %v550
          %v563 = vunpack.c.l.b16 %v551
          %v564 = vpack.c.b16 %v561, %v560
          %v565 = vpack.c.b16 %v563, %v562
          %v569 = vsel %vm509, %v547, 0
          %571 = vmatpush.bf16.msra.mxu0 0
          %572 = vmatpush.bf16.msra.mxu0 0
          %573 = vmatpush.bf16.msra.mxu0 0
          %574 = vmatpush.bf16.msra.mxu0 0
          %575 = vmatpush.bf16.msra.mxu0 0
          %576 = vmatpush.bf16.msra.mxu0 0
          %577 = vmatpush.bf16.msra.mxu0 %v565
          %578 = vmatpush.bf16.msra.mxu0 %v564
          %579 = vmatmul.bf16.gmra.mxu0 %v569
          %v580 = vpop.f32.mrf.mxu0
          %v581 = vadd.f32 %v554, %v580
          %v582 = vpop.f32.mrf.mxu0
          %583 = vdwg.mxu0
          %v584 = vld [vmem:[%s5] sm:$0xf]
          %v585 = vld [vmem:[%s5 + $0x4] sm:$0xf]
          %v586 = vld [vmem:[%s5 + $0x8] sm:$0xf]
          %v587 = vld [vmem:[%s5 + $0xc] sm:$0xf]
          %v588 = vpack.c.bf16 %v581, %v581
          %v590 = vunpack.c.l.b16 %v588
          %v591 = vpack.c.b16 %v590, %v590
          %592 = vrot.lane.b32.xlu0 %v591, 96
          %v593 = vpop.permute.xlu0 %592
          %vm594 = vcmask 64512
          %v596 = vsel %vm594, %v588, 0
          %v599 = vsel %vm594, %v593, 0
          %601 = vmatpush.bf16.xpose.msra.mxu0 0
          %602 = vmatpush.bf16.xpose.msra.mxu0 0
          %603 = vmatpush.bf16.xpose.msra.mxu0 0
          %604 = vmatpush.bf16.xpose.msra.mxu0 0
          %605 = vmatpush.bf16.xpose.msra.mxu0 0
          %606 = vmatpush.bf16.xpose.msra.mxu0 0
          %607 = vmatpush.bf16.xpose.msra.mxu0 0
          %608 = vmatpush.bf16.xpose.msra.mxu0 %v599
          %609 = vmatmul.bf16.gmra.mxu0 %v596
          %v610 = vpop.f32.mrf.mxu0
          %v611 = vadd.f32 0.0, %v610
          %v612 = vpop.f32.mrf.mxu0
          %613 = vdwg.mxu0
          %v614 = vsel %vm594, %v611, -inf
          %615 = vmax.xlane.f32.xlu0 %v614
          %v616 = vpop.xlane.xlu0 %615
          %v617 = vsub.f32 %v611, %v616
          %v618 = vmul.f32 %v617, 1.442695
          %v619 = vpow.pop %v618
          %v620 = vsel %vm594, %v619, 0.0
          %621 = vadd.xlane.f32.xlu0 %v620
          %v622 = vpop.xlane.xlu0 %621
          %v623 = vrcp.pop %v622
          %v624 = vmul.f32 %v619, %v623
          %v625 = vpack.c.bf16 %v624, %v624
          %626 = vrot.lane.b32.xlu0 %v591, 64
          %v627 = vpop.permute.xlu0 %626
          %v629 = vsel %vm594, %v625, 0
          %vm631 = vcmask 1043456
          %v633 = vsel %vm631, %v627, 0
          %635 = vmatpush.bf16.msra.mxu0 0
          %636 = vmatpush.bf16.msra.mxu0 0
          %637 = vmatpush.bf16.msra.mxu0 0
          %638 = vmatpush.bf16.msra.mxu0 0
          %639 = vmatpush.bf16.msra.mxu0 0
          %640 = vmatpush.bf16.msra.mxu0 0
          %641 = vmatpush.bf16.msra.mxu0 0
          %642 = vmatpush.bf16.msra.mxu0 %v633
          %643 = vmatmul.bf16.gmra.mxu0 %v629
          %v644 = vpop.f32.mrf.mxu0
          %v645 = vadd.f32 0.0, %v644
          %v646 = vpop.f32.mrf.mxu0
          %647 = vdwg.mxu0
          %v648 = vpack.c.bf16 %v645, %v645
          %649 = vrot.lane.b32.xlu0 %v591, 120
          %v650 = vpop.permute.xlu0 %649
          %651 = vrot.lane.b32.xlu0 %v591, 88
          %v652 = vpop.permute.xlu0 %651
          %v654 = vsel %vm594, %v650, 0
          %v657 = vsel %vm594, %v652, 0
          %659 = vmatpush.bf16.xpose.msra.mxu0 0
          %660 = vmatpush.bf16.xpose.msra.mxu0 0
          %661 = vmatpush.bf16.xpose.msra.mxu0 0
          %662 = vmatpush.bf16.xpose.msra.mxu0 0
          %663 = vmatpush.bf16.xpose.msra.mxu0 0
          %664 = vmatpush.bf16.xpose.msra.mxu0 0
          %665 = vmatpush.bf16.xpose.msra.mxu0 0
          %666 = vmatpush.bf16.xpose.msra.mxu0 %v657
          %667 = vmatmul.bf16.gmra.mxu0 %v654
          %v668 = vpop.f32.mrf.mxu0
          %v669 = vadd.f32 0.0, %v668
          %v670 = vpop.f32.mrf.mxu0
          %671 = vdwg.mxu0
          %v672 = vsel %vm594, %v669, -inf
          %673 = vmax.xlane.f32.xlu0 %v672
          %v674 = vpop.xlane.xlu0 %673
          %v675 = vsub.f32 %v669, %v674
          %v676 = vmul.f32 %v675, 1.442695
          %v677 = vpow.pop %v676
          %v678 = vsel %vm594, %v677, 0.0
          %679 = vadd.xlane.f32.xlu0 %v678
          %v680 = vpop.xlane.xlu0 %679
          %v681 = vrcp.pop %v680
          %v682 = vmul.f32 %v677, %v681
          %v683 = vpack.c.bf16 %v682, %v682
          %684 = vrot.lane.b32.xlu0 %v591, 56
          %v685 = vpop.permute.xlu0 %684
          %v687 = vsel %vm594, %v683, 0
          %v690 = vsel %vm631, %v685, 0
          %692 = vmatpush.bf16.msra.mxu0 0
          %693 = vmatpush.bf16.msra.mxu0 0
          %694 = vmatpush.bf16.msra.mxu0 0
          %695 = vmatpush.bf16.msra.mxu0 0
          %696 = vmatpush.bf16.msra.mxu0 0
          %697 = vmatpush.bf16.msra.mxu0 0
          %698 = vmatpush.bf16.msra.mxu0 0
          %699 = vmatpush.bf16.msra.mxu0 %v690
          %700 = vmatmul.bf16.gmra.mxu0 %v687
          %v701 = vpop.f32.mrf.mxu0
          %v702 = vadd.f32 0.0, %v701
          %v703 = vpop.f32.mrf.mxu0
          %704 = vdwg.mxu0
          %v705 = vpack.c.bf16 %v702, %v702
          %v707 = vsel %vm594, %v705, 0
          %v710 = vsel %vm631, %v585, 0
          %712 = vmatpush.bf16.msra.mxu0 0
          %713 = vmatpush.bf16.msra.mxu0 0
          %714 = vmatpush.bf16.msra.mxu0 0
          %715 = vmatpush.bf16.msra.mxu0 0
          %716 = vmatpush.bf16.msra.mxu0 0
          %717 = vmatpush.bf16.msra.mxu0 0
          %718 = vmatpush.bf16.msra.mxu0 0
          %719 = vmatpush.bf16.msra.mxu0 %v710
          %720 = vmatmul.bf16.gmra.mxu0 %v707
          %v721 = vpop.f32.mrf.mxu0
          %v722 = vadd.f32 0.0, %v721
          %v723 = vpop.f32.mrf.mxu0
          %724 = vdwg.mxu0
          %v726 = vsel %vm594, %v648, 0
          %v729 = vsel %vm631, %v584, 0
          %731 = vmatpush.bf16.msra.mxu0 0
          %732 = vmatpush.bf16.msra.mxu0 0
          %733 = vmatpush.bf16.msra.mxu0 0
          %734 = vmatpush.bf16.msra.mxu0 0
          %735 = vmatpush.bf16.msra.mxu0 0
          %736 = vmatpush.bf16.msra.mxu0 0
          %737 = vmatpush.bf16.msra.mxu0 0
          %738 = vmatpush.bf16.msra.mxu0 %v729
          %739 = vmatmul.bf16.gmra.mxu0 %v726
          %v740 = vpop.f32.mrf.mxu0
          %v741 = vadd.f32 %v722, %v740
          %v742 = vpop.f32.mrf.mxu0
          %743 = vdwg.mxu0
          %744 = vrot.lane.b32.xlu0 %v591, 112
          %v745 = vpop.permute.xlu0 %744
          %746 = vrot.lane.b32.xlu0 %v591, 80
          %v747 = vpop.permute.xlu0 %746
          %v749 = vsel %vm594, %v745, 0
          %v752 = vsel %vm594, %v747, 0
          %754 = vmatpush.bf16.xpose.msra.mxu0 0
          %755 = vmatpush.bf16.xpose.msra.mxu0 0
          %756 = vmatpush.bf16.xpose.msra.mxu0 0
          %757 = vmatpush.bf16.xpose.msra.mxu0 0
          %758 = vmatpush.bf16.xpose.msra.mxu0 0
          %759 = vmatpush.bf16.xpose.msra.mxu0 0
          %760 = vmatpush.bf16.xpose.msra.mxu0 0
          %761 = vmatpush.bf16.xpose.msra.mxu0 %v752
          %762 = vmatmul.bf16.gmra.mxu0 %v749
          %v763 = vpop.f32.mrf.mxu0
          %v764 = vadd.f32 0.0, %v763
          %v765 = vpop.f32.mrf.mxu0
          %766 = vdwg.mxu0
          %v767 = vsel %vm594, %v764, -inf
          %768 = vmax.xlane.f32.xlu0 %v767
          %v769 = vpop.xlane.xlu0 %768
          %v770 = vsub.f32 %v764, %v769
          %v771 = vmul.f32 %v770, 1.442695
          %v772 = vpow.pop %v771
          %v773 = vsel %vm594, %v772, 0.0
          %774 = vadd.xlane.f32.xlu0 %v773
          %v775 = vpop.xlane.xlu0 %774
          %v776 = vrcp.pop %v775
          %v777 = vmul.f32 %v772, %v776
          %v778 = vpack.c.bf16 %v777, %v777
          %779 = vrot.lane.b32.xlu0 %v591, 48
          %v780 = vpop.permute.xlu0 %779
          %v782 = vsel %vm594, %v778, 0
          %v785 = vsel %vm631, %v780, 0
          %787 = vmatpush.bf16.msra.mxu0 0
          %788 = vmatpush.bf16.msra.mxu0 0
          %789 = vmatpush.bf16.msra.mxu0 0
          %790 = vmatpush.bf16.msra.mxu0 0
          %791 = vmatpush.bf16.msra.mxu0 0
          %792 = vmatpush.bf16.msra.mxu0 0
          %793 = vmatpush.bf16.msra.mxu0 0
          %794 = vmatpush.bf16.msra.mxu0 %v785
          %795 = vmatmul.bf16.gmra.mxu0 %v782
          %v796 = vpop.f32.mrf.mxu0
          %v797 = vadd.f32 0.0, %v796
          %v798 = vpop.f32.mrf.mxu0
          %799 = vdwg.mxu0
          %v800 = vpack.c.bf16 %v797, %v797
          %v802 = vsel %vm594, %v800, 0
          %v805 = vsel %vm631, %v586, 0
          %807 = vmatpush.bf16.msra.mxu0 0
          %808 = vmatpush.bf16.msra.mxu0 0
          %809 = vmatpush.bf16.msra.mxu0 0
          %810 = vmatpush.bf16.msra.mxu0 0
          %811 = vmatpush.bf16.msra.mxu0 0
          %812 = vmatpush.bf16.msra.mxu0 0
          %813 = vmatpush.bf16.msra.mxu0 0
          %814 = vmatpush.bf16.msra.mxu0 %v805
          %815 = vmatmul.bf16.gmra.mxu0 %v802
          %v816 = vpop.f32.mrf.mxu0
          %v817 = vadd.f32 0.0, %v816
          %v818 = vpop.f32.mrf.mxu0
          %819 = vdwg.mxu0
          %v820 = vadd.f32 %v741, %v817
          %821 = vrot.lane.b32.xlu0 %v591, 104
          %v822 = vpop.permute.xlu0 %821
          %823 = vrot.lane.b32.xlu0 %v591, 72
          %v824 = vpop.permute.xlu0 %823
          %v826 = vsel %vm594, %v822, 0
          %v829 = vsel %vm594, %v824, 0
          %831 = vmatpush.bf16.xpose.msra.mxu0 0
          %832 = vmatpush.bf16.xpose.msra.mxu0 0
          %833 = vmatpush.bf16.xpose.msra.mxu0 0
          %834 = vmatpush.bf16.xpose.msra.mxu0 0
          %835 = vmatpush.bf16.xpose.msra.mxu0 0
          %836 = vmatpush.bf16.xpose.msra.mxu0 0
          %837 = vmatpush.bf16.xpose.msra.mxu0 0
          %838 = vmatpush.bf16.xpose.msra.mxu0 %v829
          %839 = vmatmul.bf16.gmra.mxu0 %v826
          %v840 = vpop.f32.mrf.mxu0
          %v841 = vadd.f32 0.0, %v840
          %v842 = vpop.f32.mrf.mxu0
          %843 = vdwg.mxu0
          %v844 = vsel %vm594, %v841, -inf
          %845 = vmax.xlane.f32.xlu0 %v844
          %v846 = vpop.xlane.xlu0 %845
          %v847 = vsub.f32 %v841, %v846
          %v848 = vmul.f32 %v847, 1.442695
          %v849 = vpow.pop %v848
          %v850 = vsel %vm594, %v849, 0.0
          %851 = vadd.xlane.f32.xlu0 %v850
          %v852 = vpop.xlane.xlu0 %851
          %v853 = vrcp.pop %v852
          %v854 = vmul.f32 %v849, %v853
          %v855 = vpack.c.bf16 %v854, %v854
          %856 = vrot.lane.b32.xlu0 %v591, 40
          %v857 = vpop.permute.xlu0 %856
          %v859 = vsel %vm594, %v855, 0
          %v862 = vsel %vm631, %v857, 0
          %864 = vmatpush.bf16.msra.mxu0 0
          %865 = vmatpush.bf16.msra.mxu0 0
          %866 = vmatpush.bf16.msra.mxu0 0
          %867 = vmatpush.bf16.msra.mxu0 0
          %868 = vmatpush.bf16.msra.mxu0 0
          %869 = vmatpush.bf16.msra.mxu0 0
          %870 = vmatpush.bf16.msra.mxu0 0
          %871 = vmatpush.bf16.msra.mxu0 %v862
          %872 = vmatmul.bf16.gmra.mxu0 %v859
          %v873 = vpop.f32.mrf.mxu0
          %v874 = vadd.f32 0.0, %v873
          %v875 = vpop.f32.mrf.mxu0
          %876 = vdwg.mxu0
          %v877 = vpack.c.bf16 %v874, %v874
          %v879 = vsel %vm594, %v877, 0
          %v882 = vsel %vm631, %v587, 0
          %884 = vmatpush.bf16.msra.mxu0 0
          %885 = vmatpush.bf16.msra.mxu0 0
          %886 = vmatpush.bf16.msra.mxu0 0
          %887 = vmatpush.bf16.msra.mxu0 0
          %888 = vmatpush.bf16.msra.mxu0 0
          %889 = vmatpush.bf16.msra.mxu0 0
          %890 = vmatpush.bf16.msra.mxu0 0
          %891 = vmatpush.bf16.msra.mxu0 %v882
          %892 = vmatmul.bf16.gmra.mxu0 %v879
          %v893 = vpop.f32.mrf.mxu0
          %v894 = vadd.f32 0.0, %v893
          %v895 = vpop.f32.mrf.mxu0
          %896 = vdwg.mxu0
          %v897 = vadd.f32 %v820, %v894
          %v898 = vld [vmem:[%s6] sm:$0x1]
          %v900 = vperm.slane %v898, 0
          %v902 = vadd.f32 %v897, %v900
          %v903 = vadd.f32 %v506, %v902
          %904 = vst.msk [vmem:[#allocation2] sm:$0xff] %vm509, %v903
          %v905 = vld [vmem:[%s7] sm:$0x1]
          %v906 = vld [vmem:[%s8] sm:$0x1]
          %v907 = vsel %vm509, %v903, 0.0
          %908 = vadd.xlane.f32.xlu0 %v907
          %v909 = vpop.xlane.xlu0 %908
          %v910 = vmul.f32 %v909, %v519
          %v911 = vsub.f32 %v903, %v910
          %v912 = vmul.f32 %v911, %v911
          %v913 = vsel %vm509, %v912, 0.0
          %914 = vadd.xlane.f32.xlu0 %v913
          %v915 = vpop.xlane.xlu0 %914
          %v916 = vmul.f32 %v915, %v519
          %v917 = vadd.f32 %v916, 1e-05
          %v918 = vrsqrt.pop %v917
          %v919 = vmul.f32 %v918, %v917
          %v920 = vmul.f32 %v919, %v918
          %v921 = vmul.f32 0.5, %v920
          %v922 = vsub.f32 1.5, %v921
          %v923 = vmul.f32 %v918, %v922
          %vm924 = vweird.f32 %v917
          %vm925 = vweird.f32 %v918
          %vm926 = vmor %vm924, %vm925
          %v927 = vsel %vm926, %v918, %v923
          %v928 = vmul.f32 %v911, %v927
          %v930 = vperm.slane %v905, 0
          %v932 = vmul.f32 %v928, %v930
          %v934 = vperm.slane %v906, 0
          %v936 = vadd.f32 %v932, %v934
          %v937 = vpack.c.bf16 %v936, %v936
          %vm938 = vcmask 257024
          %939 = vst.msk [vmem:[#allocation3] sm:$0xf] %vm938, %v937
          %940 = vst.msk [vmem:[#allocation4] sm:$0xff] %vm509, 0.0
        $region76: #{transformer_forward.3} parent=71 // pred_fallthru
          _
        %v941 = vld [vmem:[#allocation3] sm:$0xf]
        %v942 = vld [vmem:[%s491] sm:$0xf]
        %v943 = vld [vmem:[%s491 + $0x4] sm:$0xf]
        %v944 = vld [vmem:[%s491 + $0x8] sm:$0xf]
        %v945 = vld [vmem:[%s491 + $0xc] sm:$0xf]
        %v946 = vld [vmem:[%s494] sm:$0x1]
        %v948 = vperm.slane %v946, 0
        %v954 = vunpack.c.l.b16 %v942
        %v955 = vunpack.c.l.b16 %v943
        %v956 = vunpack.c.l.b16 %v944
        %v957 = vunpack.c.l.b16 %v945
        %v958 = vpack.c.b16 %v955, %v954
        %v959 = vpack.c.b16 %v957, %v956
        %vm962 = vcmask 261120
        %v964 = vsel %vm962, %v941, 0
        %966 = vmatpush.bf16.msra.mxu0 0
        %967 = vmatpush.bf16.msra.mxu0 0
        %968 = vmatpush.bf16.msra.mxu0 0
        %969 = vmatpush.bf16.msra.mxu0 0
        %970 = vmatpush.bf16.msra.mxu0 0
        %971 = vmatpush.bf16.msra.mxu0 0
        %972 = vmatpush.bf16.msra.mxu0 %v959
        %973 = vmatpush.bf16.msra.mxu0 %v958
        %974 = vmatmul.bf16.gmra.mxu0 %v964
        %v975 = vpop.f32.mrf.mxu0
        %v976 = vadd.f32 %v948, %v975
        %v977 = vpop.f32.mrf.mxu0
        %978 = vdwg.mxu0
        %v979 = vmul.f32 %v976, 1.702
        %v980 = vxor.u32 %v979, 2147483648
        %v981 = vmul.f32 %v980, 1.442695
        %v982 = vpow.pop %v981
        %v983 = vadd.f32 %v982, 1.0
        %v984 = vrcp.pop %v983
        %v985 = vmul.f32 %v983, %v984
        %v986 = vsub.f32 1.0, %v985
        %v987 = vmul.f32 %v984, %v986
        %v988 = vadd.f32 %v984, %v987
        %vm989 = vweird.f32 %v983
        %vm990 = vweird.f32 %v984
        %vm991 = vmor %vm989, %vm990
        %v992 = vsel %vm991, %v984, %v988
        %v993 = vand.u32 2147483647, %v983
        %vm994 = vcmp.eq.f32.partialorder %v993, 8.507059e+37
        %v995 = vand.u32 %v983, 2147483648
        %v996 = vor.u32 1.1754944e-38, %v995
        %v997 = vsel %vm994, %v996, %v992
        %v998 = vmul.f32 1.0, %v997
        %v999 = vmul.f32 %v976, %v998
        %v1000 = vld [vmem:[#allocation4] sm:$0xff]
        %v1001 = vpack.c.bf16 %v999, %v999
        %v1002 = vld [vmem:[%s499] sm:$0xf]
        %v1003 = vld [vmem:[%s499 + $0x4] sm:$0xf]
        %v1004 = vld [vmem:[%s499 + $0x8] sm:$0xf]
        %v1005 = vld [vmem:[%s499 + $0xc] sm:$0xf]
        %v1006 = vld [vmem:[%s499 + $0x10] sm:$0xf]
        %v1007 = vld [vmem:[%s499 + $0x14] sm:$0xf]
        %v1008 = vld [vmem:[%s499 + $0x18] sm:$0xf]
        %v1009 = vld [vmem:[%s499 + $0x1c] sm:$0xf]
        %v1010 = vld [vmem:[%s499 + $0x20] sm:$0xf]
        %v1011 = vld [vmem:[%s499 + $0x24] sm:$0xf]
        %v1012 = vld [vmem:[%s499 + $0x28] sm:$0xf]
        %v1013 = vld [vmem:[%s499 + $0x2c] sm:$0xf]
        %v1014 = vld [vmem:[%s499 + $0x30] sm:$0xf]
        %v1015 = vld [vmem:[%s499 + $0x34] sm:$0xf]
        %v1016 = vld [vmem:[%s499 + $0x38] sm:$0xf]
        %v1017 = vld [vmem:[%s499 + $0x3c] sm:$0xf]
        %v1034 = vunpack.c.l.b16 %v1002
        %v1035 = vunpack.c.l.b16 %v1003
        %v1036 = vunpack.c.l.b16 %v1004
        %v1037 = vunpack.c.l.b16 %v1005
        %v1038 = vunpack.c.l.b16 %v1006
        %v1039 = vunpack.c.l.b16 %v1007
        %v1040 = vunpack.c.l.b16 %v1008
        %v1041 = vunpack.c.l.b16 %v1009
        %v1042 = vunpack.c.l.b16 %v1010
        %v1043 = vunpack.c.l.b16 %v1011
        %v1044 = vunpack.c.l.b16 %v1012
        %v1045 = vunpack.c.l.b16 %v1013
        %v1046 = vunpack.c.l.b16 %v1014
        %v1047 = vunpack.c.l.b16 %v1015
        %v1048 = vunpack.c.l.b16 %v1016
        %v1049 = vunpack.c.l.b16 %v1017
        %v1050 = vpack.c.b16 %v1035, %v1034
        %v1051 = vpack.c.b16 %v1037, %v1036
        %v1052 = vpack.c.b16 %v1039, %v1038
        %v1053 = vpack.c.b16 %v1041, %v1040
        %v1054 = vpack.c.b16 %v1043, %v1042
        %v1055 = vpack.c.b16 %v1045, %v1044
        %v1056 = vpack.c.b16 %v1047, %v1046
        %v1057 = vpack.c.b16 %v1049, %v1048
        %1066 = vmatpush.bf16.msra.mxu0 %v1057
        %1067 = vmatpush.bf16.msra.mxu0 %v1056
        %1068 = vmatpush.bf16.msra.mxu0 %v1055
        %1069 = vmatpush.bf16.msra.mxu0 %v1054
        %1070 = vmatpush.bf16.msra.mxu0 %v1053
        %1071 = vmatpush.bf16.msra.mxu0 %v1052
        %1072 = vmatpush.bf16.msra.mxu0 %v1051
        %1073 = vmatpush.bf16.msra.mxu0 %v1050
        %1074 = vmatmul.bf16.gmra.mxu0 %v1001
        %v1075 = vpop.f32.mrf.mxu0
        %v1076 = vadd.f32 0.0, %v1075
        %v1077 = vpop.f32.mrf.mxu0
        %1078 = vdwg.mxu0
        %v1079 = vadd.f32 %v1000, %v1076
        %1080 = vst.msk [vmem:[#allocation4] sm:$0xff] %vm962, %v1079
        // Predicated region
        $region77: #{transformer_forward.3} parent=71 // pred_check
          %p1081 = pneg %p502
        $region78: #{transformer_forward.3} parent=71 // pred_check_branch
          %1083 = sbr.rel (%p1081) target = $region80
        $region79: #{transformer_forward.3} parent=71 // pred_region
          %v1084 = vld [vmem:[#allocation2] sm:$0xff]
          %v1085 = vld [vmem:[#allocation4] sm:$0xff]
          %v1086 = vadd.f32 %v1084, %v1085
          %v1087 = vld [vmem:[%s12] sm:$0x1]
          %v1089 = vperm.slane %v1087, 0
          %v1091 = vadd.f32 %v1086, %v1089
          %1092 = vst.msk [vmem:[%s483] sm:$0xff] %vm962, %v1091
        $region80: #{transformer_forward.3} parent=71 // pred_fallthru
          _
        %s1093 = sand.u32 %s340, 1
        %s1094 = scalar_lea.sflag [#allocation6], %s1093
        %s1095 = sand.u32 %s340, 1
        %s1096 = smul.addr %s1095, 8
        %s1097 = scalar_lea.vmem [#allocation5], %s1096
        // Predicated region
        $region81: #{transformer_forward.3} parent=71 // pred_check
          %p1098 = pneg %p350
        $region82: #{transformer_forward.3} parent=71 // pred_check_branch
          %1100 = sbr.rel (%p1098) target = $region84
        $region83: #{transformer_forward.3} parent=71 // pred_region
          %1102 = vsyncadd %s1094, 0
          %s1103 = smul.addr %s31, 8
          %s1104 = scalar_lea.hbm %s13, %s1103
          %s1106 = sshll.u32 %s1097, 4
          %s1107 = int_to_ptr.vmem [resolvable:$true] %s1106
          %s1108 = sshll.u32 %s1104, 4
          %s1109 = int_to_ptr.hbm [resolvable:$true] %s1108
          %1111 = dma.vmem_to_hbm [thread:$0]  %s1107, 128, %s1109, %s1094
        $region84: #{transformer_forward.3} parent=71 // pred_fallthru
          _
      $region72: #{transformer_forward.3} parent=5 // pred_fallthru
        _
      %p1112 = scmp.le.s32.totalorder 2, %s22
      // Predicated region
      $region85: #{transformer_forward.3} parent=5 // pred_check
        %p1113 = pneg %p1112
      $region86: #{transformer_forward.3} parent=5 // pred_check_branch
        %1115 = sbr.rel (%p1113) target = $region88
      $region87: #{transformer_forward.3} parent=5 // pred_region
        %s1116 = ssub.s32 %s22, 2
        // Predicated region
        $region89: #{transformer_forward.3} parent=87 // pred_check
          %p1117 = pneg %p356
        $region90: #{transformer_forward.3} parent=87 // pred_check_branch
          %1119 = sbr.rel (%p1117) target = $region92
        $region91: #{transformer_forward.3} parent=87 // pred_region
          %s1120 = sand.u32 %s341, 1
          %s1121 = scalar_lea.sflag [#allocation6], %s1120
          %s1122 = sand.u32 %s341, 1
          %s1123 = smul.addr %s1122, 8
          %s1124 = scalar_lea.vmem [#allocation5], %s1123
          %1126 = dma.done %s1121, 128
        $region92: #{transformer_forward.3} parent=87 // pred_fallthru
          _
      $region88: #{transformer_forward.3} parent=5 // pred_fallthru
        _
    $region6: #{transformer_forward.3} parent=1 // loop_footer
      %s26 = sadd.s32 1, %s22
    $region7: #{transformer_forward.3} parent=1 // loop_footer_branch
      %21 = sbr.rel target = $region3
    $region8: #{transformer_forward.3} parent=1 // loop_exit
      _
    %1127 = vsyncpa [#allocation6], 1
    %s1128 = scalar_lea.sflag [#allocation6], 1
    %1129 = vsyncpa %s1128, 1

// kernel: transformer_forward.2
$region0: #{transformer_forward.2}
  #allocation0 [shape = 'u32[]', space=smem, size = 0x4, offset = 0x4, fixed_abs, tag = 'smem constant byte address 0x4 - core index']
  #allocation1 [shape = 'u32[72,128]{1,0:T(1,128)}', space=vmem, size = 0x9000, scoped, tag = 'internal scratch']
  #allocation2 [shape = 'f32[1,8,32]{2,1,0:T(8,128)}', space=vmem, size = 0x1000, scoped, tag = 'scratch operand']
  #allocation3 [shape = 'bf16[1,8,32]{2,1,0:T(8,128)(2,1)}', space=vmem, size = 0x800, scoped, tag = 'scratch operand']
  #allocation4 [shape = 'f32[1,8,32]{2,1,0:T(8,128)}', space=vmem, size = 0x1000, scoped, tag = 'scratch operand']
  %s0 = inlined_call_operand.vmem [shape: f32[2,8,32], index: 0, kind: input, shape index: {}]
  %s1 = inlined_call_operand.hbm [shape: f32[1,32], index: 1, kind: input, shape index: {}]
  %s2 = inlined_call_operand.vmem [shape: f32[1,32], index: 2, kind: input, shape index: {}]
  %s3 = inlined_call_operand.vmem [shape: bf16[32,96], index: 3, kind: input, shape index: {}]
  %s4 = inlined_call_operand.vmem [shape: f32[1,96], index: 4, kind: input, shape index: {}]
  %s5 = inlined_call_operand.vmem [shape: bf16[32,32], index: 5, kind: input, shape index: {}]
  %s6 = inlined_call_operand.vmem [shape: f32[1,32], index: 6, kind: input, shape index: {}]
  %s7 = inlined_call_operand.vmem [shape: f32[1,32], index: 7, kind: input, shape index: {}]
  %s8 = inlined_call_operand.vmem [shape: f32[1,32], index: 8, kind: input, shape index: {}]
  %s9 = inlined_call_operand.vmem [shape: bf16[32,128], index: 9, kind: input, shape index: {}]
  %s10 = inlined_call_operand.vmem [shape: f32[1,128], index: 10, kind: input, shape index: {}]
  %s11 = inlined_call_operand.vmem [shape: bf16[128,32], index: 11, kind: input, shape index: {}]
  %s12 = inlined_call_operand.vmem [shape: f32[1,32], index: 12, kind: input, shape index: {}]
  %s13 = inlined_call_operand.vmem [shape: f32[2,8,32], index: 13, kind: output, shape index: {}]
  %s14 = sld [smem:[#allocation0]]
  $region97: #{transformer_forward.2} parent=0
    _
  %s16 = ssub.s32 1, %s14
  %s17 = scalar_select 0, %s16, %s14
  $region1: #{transformer_forward.2} parent=0
    #allocation5 [shape = 'u8[512]{0}', space=vmem, size = 0x400, scoped, tag = 'input window, operand 1, single buffered']
    #allocation6 [shape = 's32[2]{0}', space=sflag, size = 0x8, scoped, tag = 'scoped memory for transformer_forward.2']
    %18 = vsyncpa [#allocation6], 0
    loop: start=0, step=1, limit=4
    $region2: #{transformer_forward.2} parent=1 // loop_pre_header
      _
    $region3: #{transformer_forward.2} parent=1 // loop_header
      %s20 = sphi 0, %s24
      %p21 = scmp.ge.s32.totalorder %s20, 4
      %s27 = sphi 0, %s39
      %s28 = sphi 0, %s35
      %s29 = sphi 0, %s27
      %s30 = sphi 0, %s28
      %s31 = sphi 0, %s29
      %s32 = sphi 0, %s30
      %s42 = sphi 0, %s44
      %s45 = sphi 0, %s42
      %s46 = sphi 0, %s45
      %s62 = sphi 0, %s46
      %s66 = sphi 0, %s66
      %s68 = sphi 0, %s66
      %s69 = sphi 0, %s68
      %s83 = sphi 0, %s69
      %s87 = sphi 0, %s87
      %s89 = sphi 0, %s87
      %s90 = sphi 0, %s89
      %s104 = sphi 0, %s90
      %s108 = sphi 0, %s108
      %s110 = sphi 0, %s108
      %s111 = sphi 0, %s110
      %s125 = sphi 0, %s111
      %s129 = sphi 0, %s129
      %s131 = sphi 0, %s129
      %s132 = sphi 0, %s131
      %s146 = sphi 0, %s132
      %s150 = sphi 0, %s150
      %s152 = sphi 0, %s150
      %s153 = sphi 0, %s152
      %s167 = sphi 0, %s153
      %s171 = sphi 0, %s171
      %s173 = sphi 0, %s171
      %s174 = sphi 0, %s173
      %s188 = sphi 0, %s174
      %s192 = sphi 0, %s192
      %s194 = sphi 0, %s192
      %s195 = sphi 0, %s194
      %s209 = sphi 0, %s195
      %s213 = sphi 0, %s213
      %s215 = sphi 0, %s213
      %s216 = sphi 0, %s215
      %s230 = sphi 0, %s216
      %s236 = sphi 0, %s238
      %s239 = sphi 0, %s236
      %s240 = sphi 0, %s239
      %s256 = sphi 0, %s240
      %s262 = sphi 0, %s264
      %s265 = sphi 0, %s262
      %s266 = sphi 0, %s265
      %s282 = sphi 0, %s266
      %s288 = sphi 0, %s290
      %s291 = sphi 0, %s288
      %s292 = sphi 0, %s291
      %s308 = sphi 0, %s292
      %s312 = sphi 0, %s312
      %s314 = sphi 0, %s312
      %s315 = sphi 0, %s314
      %s329 = sphi 0, %s315
      %s335 = sphi 0, %s337
      %s338 = sphi 0, %s335
      %s339 = sphi 0, %s338
      %s355 = sphi 0, %s339
    $region4: #{transformer_forward.2} parent=1 // loop_header_branch
      %23 = sbr.rel (%p21) target = $region8
    $region5: #{transformer_forward.2} parent=1 // loop_body
      %s25 = ssub.s32 %s20, 1
      %s26 = ssub.s32 %s20, 2
      %s33 = sadd.s32 1, %s28
      %p34 = scmp.ge.s32.totalorder %s33, 1
      %s35 = scalar_select %p34, 0, %s33
      %s36 = sadd.s32 1, %s27
      %s37 = scalar_select %p34, %s36, %s27
      %p38 = scmp.ge.s32.totalorder %s37, 2
      %s39 = scalar_select %p38, 0, %s37
      %s40 = ssub.s32 %s27, %s39
      %p41 = scmp.eq.s32.totalorder %s40, 0
      %s43 = sadd.s32 %s42, 1
      %s44 = scalar_select %p41, %s42, %s43
      %p47 = pneg %p41
      %p48 = scmp.eq.s32.totalorder %s20, 1
      %p49 = por %p47, %p48
      %p50 = scmp.ne.s32.totalorder %s42, %s45
      %p51 = scmp.eq.s32.totalorder %s20, 0
      %p52 = por %p50, %p51
      %p53 = scmp.ne.s32.totalorder %s42, %s45
      %p54 = scmp.eq.s32.totalorder %s25, 1
      %p55 = por %p53, %p54
      %p56 = scmp.ne.s32.totalorder %s45, %s46
      %p57 = scmp.eq.s32.totalorder %s25, 0
      %p58 = por %p56, %p57
      %p59 = scmp.ne.s32.totalorder %s45, %s46
      %p60 = scmp.eq.s32.totalorder %s26, 1
      %p61 = por %p59, %p60
      %p63 = scmp.ne.s32.totalorder %s46, %s62
      %p64 = scmp.eq.s32.totalorder %s26, 0
      %p65 = por %p63, %p64
      %s67 = sadd.s32 %s66, 1
      %p70 = scmp.eq.s32.totalorder %s20, 1
      %p71 = scmp.ne.s32.totalorder %s66, %s68
      %p72 = scmp.eq.s32.totalorder %s20, 0
      %p73 = por %p71, %p72
      %p74 = scmp.ne.s32.totalorder %s66, %s68
      %p75 = scmp.eq.s32.totalorder %s25, 1
      %p76 = por %p74, %p75
      %p77 = scmp.ne.s32.totalorder %s68, %s69
      %p78 = scmp.eq.s32.totalorder %s25, 0
      %p79 = por %p77, %p78
      %p80 = scmp.ne.s32.totalorder %s68, %s69
      %p81 = scmp.eq.s32.totalorder %s26, 1
      %p82 = por %p80, %p81
      %p84 = scmp.ne.s32.totalorder %s69, %s83
      %p85 = scmp.eq.s32.totalorder %s26, 0
      %p86 = por %p84, %p85
      %s88 = sadd.s32 %s87, 1
      %p91 = scmp.eq.s32.totalorder %s20, 1
      %p92 = scmp.ne.s32.totalorder %s87, %s89
      %p93 = scmp.eq.s32.totalorder %s20, 0
      %p94 = por %p92, %p93
      %p95 = scmp.ne.s32.totalorder %s87, %s89
      %p96 = scmp.eq.s32.totalorder %s25, 1
      %p97 = por %p95, %p96
      %p98 = scmp.ne.s32.totalorder %s89, %s90
      %p99 = scmp.eq.s32.totalorder %s25, 0
      %p100 = por %p98, %p99
      %p101 = scmp.ne.s32.totalorder %s89, %s90
      %p102 = scmp.eq.s32.totalorder %s26, 1
      %p103 = por %p101, %p102
      %p105 = scmp.ne.s32.totalorder %s90, %s104
      %p106 = scmp.eq.s32.totalorder %s26, 0
      %p107 = por %p105, %p106
      %s109 = sadd.s32 %s108, 1
      %p112 = scmp.eq.s32.totalorder %s20, 1
      %p113 = scmp.ne.s32.totalorder %s108, %s110
      %p114 = scmp.eq.s32.totalorder %s20, 0
      %p115 = por %p113, %p114
      %p116 = scmp.ne.s32.totalorder %s108, %s110
      %p117 = scmp.eq.s32.totalorder %s25, 1
      %p118 = por %p116, %p117
      %p119 = scmp.ne.s32.totalorder %s110, %s111
      %p120 = scmp.eq.s32.totalorder %s25, 0
      %p121 = por %p119, %p120
      %p122 = scmp.ne.s32.totalorder %s110, %s111
      %p123 = scmp.eq.s32.totalorder %s26, 1
      %p124 = por %p122, %p123
      %p126 = scmp.ne.s32.totalorder %s111, %s125
      %p127 = scmp.eq.s32.totalorder %s26, 0
      %p128 = por %p126, %p127
      %s130 = sadd.s32 %s129, 1
      %p133 = scmp.eq.s32.totalorder %s20, 1
      %p134 = scmp.ne.s32.totalorder %s129, %s131
      %p135 = scmp.eq.s32.totalorder %s20, 0
      %p136 = por %p134, %p135
      %p137 = scmp.ne.s32.totalorder %s129, %s131
      %p138 = scmp.eq.s32.totalorder %s25, 1
      %p139 = por %p137, %p138
      %p140 = scmp.ne.s32.totalorder %s131, %s132
      %p141 = scmp.eq.s32.totalorder %s25, 0
      %p142 = por %p140, %p141
      %p143 = scmp.ne.s32.totalorder %s131, %s132
      %p144 = scmp.eq.s32.totalorder %s26, 1
      %p145 = por %p143, %p144
      %p147 = scmp.ne.s32.totalorder %s132, %s146
      %p148 = scmp.eq.s32.totalorder %s26, 0
      %p149 = por %p147, %p148
      %s151 = sadd.s32 %s150, 1
      %p154 = scmp.eq.s32.totalorder %s20, 1
      %p155 = scmp.ne.s32.totalorder %s150, %s152
      %p156 = scmp.eq.s32.totalorder %s20, 0
      %p157 = por %p155, %p156
      %p158 = scmp.ne.s32.totalorder %s150, %s152
      %p159 = scmp.eq.s32.totalorder %s25, 1
      %p160 = por %p158, %p159
      %p161 = scmp.ne.s32.totalorder %s152, %s153
      %p162 = scmp.eq.s32.totalorder %s25, 0
      %p163 = por %p161, %p162
      %p164 = scmp.ne.s32.totalorder %s152, %s153
      %p165 = scmp.eq.s32.totalorder %s26, 1
      %p166 = por %p164, %p165
      %p168 = scmp.ne.s32.totalorder %s153, %s167
      %p169 = scmp.eq.s32.totalorder %s26, 0
      %p170 = por %p168, %p169
      %s172 = sadd.s32 %s171, 1
      %p175 = scmp.eq.s32.totalorder %s20, 1
      %p176 = scmp.ne.s32.totalorder %s171, %s173
      %p177 = scmp.eq.s32.totalorder %s20, 0
      %p178 = por %p176, %p177
      %p179 = scmp.ne.s32.totalorder %s171, %s173
      %p180 = scmp.eq.s32.totalorder %s25, 1
      %p181 = por %p179, %p180
      %p182 = scmp.ne.s32.totalorder %s173, %s174
      %p183 = scmp.eq.s32.totalorder %s25, 0
      %p184 = por %p182, %p183
      %p185 = scmp.ne.s32.totalorder %s173, %s174
      %p186 = scmp.eq.s32.totalorder %s26, 1
      %p187 = por %p185, %p186
      %p189 = scmp.ne.s32.totalorder %s174, %s188
      %p190 = scmp.eq.s32.totalorder %s26, 0
      %p191 = por %p189, %p190
      %s193 = sadd.s32 %s192, 1
      %p196 = scmp.eq.s32.totalorder %s20, 1
      %p197 = scmp.ne.s32.totalorder %s192, %s194
      %p198 = scmp.eq.s32.totalorder %s20, 0
      %p199 = por %p197, %p198
      %p200 = scmp.ne.s32.totalorder %s192, %s194
      %p201 = scmp.eq.s32.totalorder %s25, 1
      %p202 = por %p200, %p201
      %p203 = scmp.ne.s32.totalorder %s194, %s195
      %p204 = scmp.eq.s32.totalorder %s25, 0
      %p205 = por %p203, %p204
      %p206 = scmp.ne.s32.totalorder %s194, %s195
      %p207 = scmp.eq.s32.totalorder %s26, 1
      %p208 = por %p206, %p207
      %p210 = scmp.ne.s32.totalorder %s195, %s209
      %p211 = scmp.eq.s32.totalorder %s26, 0
      %p212 = por %p210, %p211
      %s214 = sadd.s32 %s213, 1
      %p217 = scmp.eq.s32.totalorder %s20, 1
      %p218 = scmp.ne.s32.totalorder %s213, %s215
      %p219 = scmp.eq.s32.totalorder %s20, 0
      %p220 = por %p218, %p219
      %p221 = scmp.ne.s32.totalorder %s213, %s215
      %p222 = scmp.eq.s32.totalorder %s25, 1
      %p223 = por %p221, %p222
      %p224 = scmp.ne.s32.totalorder %s215, %s216
      %p225 = scmp.eq.s32.totalorder %s25, 0
      %p226 = por %p224, %p225
      %p227 = scmp.ne.s32.totalorder %s215, %s216
      %p228 = scmp.eq.s32.totalorder %s26, 1
      %p229 = por %p227, %p228
      %p231 = scmp.ne.s32.totalorder %s216, %s230
      %p232 = scmp.eq.s32.totalorder %s26, 0
      %p233 = por %p231, %p232
      %s234 = ssub.s32 %s28, %s35
      %p235 = scmp.eq.s32.totalorder %s234, 0
      %s237 = sadd.s32 %s236, 1
      %s238 = scalar_select %p235, %s236, %s237
      %p241 = pneg %p235
      %p242 = scmp.eq.s32.totalorder %s20, 1
      %p243 = por %p241, %p242
      %p244 = scmp.ne.s32.totalorder %s236, %s239
      %p245 = scmp.eq.s32.totalorder %s20, 0
      %p246 = por %p244, %p245
      %p247 = scmp.ne.s32.totalorder %s236, %s239
      %p248 = scmp.eq.s32.totalorder %s25, 1
      %p249 = por %p247, %p248
      %p250 = scmp.ne.s32.totalorder %s239, %s240
      %p251 = scmp.eq.s32.totalorder %s25, 0
      %p252 = por %p250, %p251
      %p253 = scmp.ne.s32.totalorder %s239, %s240
      %p254 = scmp.eq.s32.totalorder %s26, 1
      %p255 = por %p253, %p254
      %p257 = scmp.ne.s32.totalorder %s240, %s256
      %p258 = scmp.eq.s32.totalorder %s26, 0
      %p259 = por %p257, %p258
      %s260 = ssub.s32 %s28, %s35
      %p261 = scmp.eq.s32.totalorder %s260, 0
      %s263 = sadd.s32 %s262, 1
      %s264 = scalar_select %p261, %s262, %s263
      %p267 = pneg %p261
      %p268 = scmp.eq.s32.totalorder %s20, 1
      %p269 = por %p267, %p268
      %p270 = scmp.ne.s32.totalorder %s262, %s265
      %p271 = scmp.eq.s32.totalorder %s20, 0
      %p272 = por %p270, %p271
      %p273 = scmp.ne.s32.totalorder %s262, %s265
      %p274 = scmp.eq.s32.totalorder %s25, 1
      %p275 = por %p273, %p274
      %p276 = scmp.ne.s32.totalorder %s265, %s266
      %p277 = scmp.eq.s32.totalorder %s25, 0
      %p278 = por %p276, %p277
      %p279 = scmp.ne.s32.totalorder %s265, %s266
      %p280 = scmp.eq.s32.totalorder %s26, 1
      %p281 = por %p279, %p280
      %p283 = scmp.ne.s32.totalorder %s266, %s282
      %p284 = scmp.eq.s32.totalorder %s26, 0
      %p285 = por %p283, %p284
      %s286 = ssub.s32 %s28, %s35
      %p287 = scmp.eq.s32.totalorder %s286, 0
      %s289 = sadd.s32 %s288, 1
      %s290 = scalar_select %p287, %s288, %s289
      %p293 = pneg %p287
      %p294 = scmp.eq.s32.totalorder %s20, 1
      %p295 = por %p293, %p294
      %p296 = scmp.ne.s32.totalorder %s288, %s291
      %p297 = scmp.eq.s32.totalorder %s20, 0
      %p298 = por %p296, %p297
      %p299 = scmp.ne.s32.totalorder %s288, %s291
      %p300 = scmp.eq.s32.totalorder %s25, 1
      %p301 = por %p299, %p300
      %p302 = scmp.ne.s32.totalorder %s291, %s292
      %p303 = scmp.eq.s32.totalorder %s25, 0
      %p304 = por %p302, %p303
      %p305 = scmp.ne.s32.totalorder %s291, %s292
      %p306 = scmp.eq.s32.totalorder %s26, 1
      %p307 = por %p305, %p306
      %p309 = scmp.ne.s32.totalorder %s292, %s308
      %p310 = scmp.eq.s32.totalorder %s26, 0
      %p311 = por %p309, %p310
      %s313 = sadd.s32 %s312, 1
      %p316 = scmp.eq.s32.totalorder %s20, 1
      %p317 = scmp.ne.s32.totalorder %s312, %s314
      %p318 = scmp.eq.s32.totalorder %s20, 0
      %p319 = por %p317, %p318
      %p320 = scmp.ne.s32.totalorder %s312, %s314
      %p321 = scmp.eq.s32.totalorder %s25, 1
      %p322 = por %p320, %p321
      %p323 = scmp.ne.s32.totalorder %s314, %s315
      %p324 = scmp.eq.s32.totalorder %s25, 0
      %p325 = por %p323, %p324
      %p326 = scmp.ne.s32.totalorder %s314, %s315
      %p327 = scmp.eq.s32.totalorder %s26, 1
      %p328 = por %p326, %p327
      %p330 = scmp.ne.s32.totalorder %s315, %s329
      %p331 = scmp.eq.s32.totalorder %s26, 0
      %p332 = por %p330, %p331
      %s333 = ssub.s32 %s27, %s39
      %p334 = scmp.eq.s32.totalorder %s333, 0
      %s336 = sadd.s32 %s335, 1
      %s337 = scalar_select %p334, %s335, %s336
      %p340 = pneg %p334
      %p341 = scmp.eq.s32.totalorder %s20, 1
      %p342 = por %p340, %p341
      %p343 = scmp.ne.s32.totalorder %s335, %s338
      %p344 = scmp.eq.s32.totalorder %s20, 0
      %p345 = por %p343, %p344
      %p346 = scmp.ne.s32.totalorder %s335, %s338
      %p347 = scmp.eq.s32.totalorder %s25, 1
      %p348 = por %p346, %p347
      %p349 = scmp.ne.s32.totalorder %s338, %s339
      %p350 = scmp.eq.s32.totalorder %s25, 0
      %p351 = por %p349, %p350
      %p352 = scmp.ne.s32.totalorder %s338, %s339
      %p353 = scmp.eq.s32.totalorder %s26, 1
      %p354 = por %p352, %p353
      %p356 = scmp.ne.s32.totalorder %s339, %s355
      %p357 = scmp.eq.s32.totalorder %s26, 0
      %p358 = por %p356, %p357
      %p359 = scmp.le.s32.totalorder 1, %s20
      %p360 = scmp.lt.s32.totalorder %s20, 3
      %p361 = pnand %p359, %p360
      %p362 = pneg %p361
      // Predicated region
      $region9: #{transformer_forward.2} parent=5 // pred_check
        _
      $region10: #{transformer_forward.2} parent=5 // pred_check_branch
        %364 = sbr.rel (%p361) target = $region12
      $region11: #{transformer_forward.2} parent=5 // pred_region
        %s365 = ssub.s32 %s20, 1
        // Predicated region
        $region13: #{transformer_forward.2} parent=11 // pred_check
          %p366 = pneg %p79
        $region14: #{transformer_forward.2} parent=11 // pred_check_branch
          %368 = sbr.rel (%p366) target = $region16
        $region15: #{transformer_forward.2} parent=11 // pred_region
          %370 = vsyncadd [#allocation6], 0
          %s372 = sshll.u32 %s1, 4
          %s373 = int_to_ptr.hbm [resolvable:$true] %s372
          %s374 = sshll.u32 [#allocation5], 4
          %s375 = int_to_ptr.vmem [resolvable:$true] %s374
          %377 = dma.hbm_to_vmem [thread:$0]  %s373, 16, %s375, [#allocation6]
        $region16: #{transformer_forward.2} parent=11 // pred_fallthru
          _
        // Predicated region
        $region17: #{transformer_forward.2} parent=11 // pred_check
          %p378 = pneg %p100
        $region18: #{transformer_forward.2} parent=11 // pred_check_branch
          %380 = sbr.rel (%p378) target = $region20
        $region19: #{transformer_forward.2} parent=11 // pred_region
          _
        $region20: #{transformer_forward.2} parent=11 // pred_fallthru
          _
        // Predicated region
        $region21: #{transformer_forward.2} parent=11 // pred_check
          %p381 = pneg %p121
        $region22: #{transformer_forward.2} parent=11 // pred_check_branch
          %383 = sbr.rel (%p381) target = $region24
        $region23: #{transformer_forward.2} parent=11 // pred_region
          _
        $region24: #{transformer_forward.2} parent=11 // pred_fallthru
          _
        // Predicated region
        $region25: #{transformer_forward.2} parent=11 // pred_check
          %p384 = pneg %p142
        $region26: #{transformer_forward.2} parent=11 // pred_check_branch
          %386 = sbr.rel (%p384) target = $region28
        $region27: #{transformer_forward.2} parent=11 // pred_region
          _
        $region28: #{transformer_forward.2} parent=11 // pred_fallthru
          _
        // Predicated region
        $region29: #{transformer_forward.2} parent=11 // pred_check
          %p387 = pneg %p163
        $region30: #{transformer_forward.2} parent=11 // pred_check_branch
          %389 = sbr.rel (%p387) target = $region32
        $region31: #{transformer_forward.2} parent=11 // pred_region
          _
        $region32: #{transformer_forward.2} parent=11 // pred_fallthru
          _
        // Predicated region
        $region33: #{transformer_forward.2} parent=11 // pred_check
          %p390 = pneg %p184
        $region34: #{transformer_forward.2} parent=11 // pred_check_branch
          %392 = sbr.rel (%p390) target = $region36
        $region35: #{transformer_forward.2} parent=11 // pred_region
          _
        $region36: #{transformer_forward.2} parent=11 // pred_fallthru
          _
        // Predicated region
        $region37: #{transformer_forward.2} parent=11 // pred_check
          %p393 = pneg %p205
        $region38: #{transformer_forward.2} parent=11 // pred_check_branch
          %395 = sbr.rel (%p393) target = $region40
        $region39: #{transformer_forward.2} parent=11 // pred_region
          _
        $region40: #{transformer_forward.2} parent=11 // pred_fallthru
          _
        // Predicated region
        $region41: #{transformer_forward.2} parent=11 // pred_check
          %p396 = pneg %p226
        $region42: #{transformer_forward.2} parent=11 // pred_check_branch
          %398 = sbr.rel (%p396) target = $region44
        $region43: #{transformer_forward.2} parent=11 // pred_region
          _
        $region44: #{transformer_forward.2} parent=11 // pred_fallthru
          _
        // Predicated region
        $region45: #{transformer_forward.2} parent=11 // pred_check
          %p399 = pneg %p252
        $region46: #{transformer_forward.2} parent=11 // pred_check_branch
          %401 = sbr.rel (%p399) target = $region48
        $region47: #{transformer_forward.2} parent=11 // pred_region
          %p402 = scmp.lt.s32.totalorder %s30, 0
          %s403 = scalar_select %p402, %s30, 0
          %s404 = smul.addr %s403, 4
          %s405 = scalar_lea.vmem %s9, %s404
        $region48: #{transformer_forward.2} parent=11 // pred_fallthru
          _
        // Predicated region
        $region49: #{transformer_forward.2} parent=11 // pred_check
          %p406 = pneg %p278
        $region50: #{transformer_forward.2} parent=11 // pred_check_branch
          %408 = sbr.rel (%p406) target = $region52
        $region51: #{transformer_forward.2} parent=11 // pred_region
          %p409 = scmp.lt.s32.totalorder %s30, 0
          %s410 = scalar_select %p409, %s30, 0
          %s411 = scalar_lea.vmem %s10, %s410
        $region52: #{transformer_forward.2} parent=11 // pred_fallthru
          _
        // Predicated region
        $region53: #{transformer_forward.2} parent=11 // pred_check
          %p412 = pneg %p304
        $region54: #{transformer_forward.2} parent=11 // pred_check_branch
          %414 = sbr.rel (%p412) target = $region56
        $region55: #{transformer_forward.2} parent=11 // pred_region
          %s415 = smul.u32 16, %s30
          %p416 = scmp.lt.s32.totalorder %s415, 15
          %s417 = scalar_select %p416, %s415, 15
          %s418 = smul.addr %s417, 4
          %s419 = scalar_lea.vmem %s11, %s418
          %s420 = smul.u32 16, %s30
        $region56: #{transformer_forward.2} parent=11 // pred_fallthru
          _
        // Predicated region
        $region57: #{transformer_forward.2} parent=11 // pred_check
          %p421 = pneg %p325
        $region58: #{transformer_forward.2} parent=11 // pred_check_branch
          %423 = sbr.rel (%p421) target = $region60
        $region59: #{transformer_forward.2} parent=11 // pred_region
          _
        $region60: #{transformer_forward.2} parent=11 // pred_fallthru
          _
      $region12: #{transformer_forward.2} parent=5 // pred_fallthru
        _
      %p424 = scmp.lt.s32.totalorder %s20, 2
      // Predicated region
      $region61: #{transformer_forward.2} parent=5 // pred_check
        %p425 = pneg %p424
      $region62: #{transformer_forward.2} parent=5 // pred_check_branch
        %427 = sbr.rel (%p425) target = $region64
      $region63: #{transformer_forward.2} parent=5 // pred_region
        // Predicated region
        $region65: #{transformer_forward.2} parent=63 // pred_check
          %p428 = pneg %p52
        $region66: #{transformer_forward.2} parent=63 // pred_check_branch
          %430 = sbr.rel (%p428) target = $region68
        $region67: #{transformer_forward.2} parent=63 // pred_region
          %p431 = scmp.lt.s32.totalorder %s27, 1
          %s432 = scalar_select %p431, %s27, 1
          %s433 = smul.addr %s432, 8
          %s434 = scalar_lea.vmem %s0, %s433
        $region68: #{transformer_forward.2} parent=63 // pred_fallthru
          _
      $region64: #{transformer_forward.2} parent=5 // pred_fallthru
        _
      %p435 = scmp.le.s32.totalorder 1, %s20
      %p436 = scmp.lt.s32.totalorder %s20, 3
      %p437 = pnand %p435, %p436
      %p438 = pneg %p437
      // Predicated region
      $region69: #{transformer_forward.2} parent=5 // pred_check
        _
      $region70: #{transformer_forward.2} parent=5 // pred_check_branch
        %440 = sbr.rel (%p437) target = $region72
      $region71: #{transformer_forward.2} parent=5 // pred_region
        %s441 = ssub.s32 %s20, 1
        // Predicated region
        $region73: #{transformer_forward.2} parent=71 // pred_check
          %p442 = pneg %p79
        $region74: #{transformer_forward.2} parent=71 // pred_check_branch
          %444 = sbr.rel (%p442) target = $region76
        $region75: #{transformer_forward.2} parent=71 // pred_region
          %446 = dma.done [#allocation6], 16
        $region76: #{transformer_forward.2} parent=71 // pred_fallthru
          _
        %p447 = scmp.lt.s32.totalorder %s29, 1
        %s448 = scalar_select %p447, %s29, 1
        %s449 = smul.addr %s448, 8
        %s450 = scalar_lea.vmem %s0, %s449
        %p451 = pneg %p58
        %p452 = pneg %p55
        %p453 = pneg %p79
        %p454 = pneg %p76
        %p455 = pneg %p100
        %p456 = pneg %p97
        %p457 = pneg %p121
        %p458 = pneg %p118
        %p459 = pneg %p142
        %p460 = pneg %p139
        %p461 = pneg %p163
        %p462 = pneg %p160
        %p463 = pneg %p184
        %p464 = pneg %p181
        %p465 = pneg %p205
        %p466 = pneg %p202
        %p467 = pneg %p226
        %p468 = pneg %p223
        %p469 = scmp.lt.s32.totalorder %s30, 0
        %s470 = scalar_select %p469, %s30, 0
        %s471 = smul.addr %s470, 4
        %s472 = scalar_lea.vmem %s9, %s471
        %p473 = pneg %p252
        %p474 = pneg %p249
        %p475 = scmp.lt.s32.totalorder %s30, 0
        %s476 = scalar_select %p475, %s30, 0
        %s477 = scalar_lea.vmem %s10, %s476
        %p478 = pneg %p278
        %p479 = pneg %p275
        %s480 = smul.u32 16, %s30
        %p481 = scmp.lt.s32.totalorder %s480, 15
        %s482 = scalar_select %p481, %s480, 15
        %s483 = smul.addr %s482, 4
        %s484 = scalar_lea.vmem %s11, %s483
        %p485 = pneg %p304
        %p486 = pneg %p301
        %p487 = pneg %p325
        %p488 = pneg %p322
        %p489 = pneg %p351
        %p490 = pneg %p348
        %p491 = scmp.lt.s32.totalorder %s29, 1
        %s492 = scalar_select %p491, %s29, 1
        %s493 = smul.addr %s492, 8
        %s494 = scalar_lea.vmem %s13, %s493
        %p495 = scmp.lt.s32.totalorder %s29, 1
        %s496 = scalar_select %p495, %s29, 1
        %s497 = smul.addr %s496, 8
        %s498 = scalar_lea.vmem %s0, %s497
        %p499 = scmp.lt.s32.totalorder %s30, 0
        %s500 = scalar_select %p499, %s30, 0
        %s501 = smul.addr %s500, 4
        %s502 = scalar_lea.vmem %s9, %s501
        %p503 = scmp.lt.s32.totalorder %s30, 0
        %s504 = scalar_select %p503, %s30, 0
        %s505 = scalar_lea.vmem %s10, %s504
        %s506 = smul.u32 16, %s30
        %p507 = scmp.lt.s32.totalorder %s506, 15
        %s508 = scalar_select %p507, %s506, 15
        %s509 = smul.addr %s508, 4
        %s510 = scalar_lea.vmem %s11, %s509
        %s511 = smul.u32 16, %s30
        %p512 = scmp.lt.s32.totalorder %s29, 1
        %s513 = scalar_select %p512, %s29, 1
        %s514 = smul.addr %s513, 8
        %s515 = scalar_lea.vmem %s13, %s514
        %p517 = scmp.eq.s32.totalorder %s30, 0
        // Predicated region
        $region77: #{transformer_forward.2} parent=71 // pred_check
          %p518 = pneg %p517
        $region78: #{transformer_forward.2} parent=71 // pred_check_branch
          %520 = sbr.rel (%p518) target = $region80
        $region79: #{transformer_forward.2} parent=71 // pred_region
          %v521 = vld [vmem:[%s498] sm:$0xff]
          %v522 = vld [vmem:[#allocation5] sm:$0x1]
          %v523 = vld [vmem:[%s2] sm:$0x1]
          %vm524 = vcmask 261120
          %v525 = vsel %vm524, %v521, 0.0
          %526 = vadd.xlane.f32.xlu0 %v525
          %v527 = vpop.xlane.xlu0 %526
          %v528 = vrcp.pop 32.0
          %v529 = vmul.f32 32.0, %v528
          %v530 = vsub.f32 1.0, %v529
          %v531 = vmul.f32 %v528, %v530
          %v532 = vadd.f32 %v528, %v531
          %vm533 = vweird.f32 %v528
          %v534 = vsel %vm533, %v528, %v532
          %v535 = vmul.f32 %v527, %v534
          %v536 = vsub.f32 %v521, %v535
          %v537 = vmul.f32 %v536, %v536
          %v538 = vsel %vm524, %v537, 0.0
          %539 = vadd.xlane.f32.xlu0 %v538
          %v540 = vpop.xlane.xlu0 %539
          %v541 = vmul.f32 %v540, %v534
          %v542 = vadd.f32 %v541, 1e-05
          %v543 = vrsqrt.pop %v542
          %v544 = vmul.f32 %v543, %v542
          %v545 = vmul.f32 %v544, %v543
          %v546 = vmul.f32 0.5, %v545
          %v547 = vsub.f32 1.5, %v546
          %v548 = vmul.f32 %v543, %v547
          %vm549 = vweird.f32 %v542
          %vm550 = vweird.f32 %v543
          %vm551 = vmor %vm549, %vm550
          %v552 = vsel %vm551, %v543, %v548
          %v553 = vmul.f32 %v536, %v552
          %v555 = vperm.slane %v522, 0
          %v557 = vmul.f32 %v553, %v555
          %v559 = vperm.slane %v523, 0
          %v561 = vadd.f32 %v557, %v559
          %v562 = vpack.c.bf16 %v561, %v561
          %v563 = vld [vmem:[%s3] sm:$0xf]
          %v564 = vld [vmem:[%s3 + $0x4] sm:$0xf]
          %v565 = vld [vmem:[%s3 + $0x8] sm:$0xf]
          %v566 = vld [vmem:[%s3 + $0xc] sm:$0xf]
          %v567 = vld [vmem:[%s4] sm:$0x1]
          %v569 = vperm.slane %v567, 0
          %v575 = vunpack.c.l.b16 %v563
          %v576 = vunpack.c.l.b16 %v564
          %v577 = vunpack.c.l.b16 %v565
          %v578 = vunpack.c.l.b16 %v566
          %v579 = vpack.c.b16 %v576, %v575
          %v580 = vpack.c.b16 %v578, %v577
          %v584 = vsel %vm524, %v562, 0
          %586 = vmatpush.bf16.msra.mxu0 0
          %587 = vmatpush.bf16.msra.mxu0 0
          %588 = vmatpush.bf16.msra.mxu0 0
          %589 = vmatpush.bf16.msra.mxu0 0
          %590 = vmatpush.bf16.msra.mxu0 0
          %591 = vmatpush.bf16.msra.mxu0 0
          %592 = vmatpush.bf16.msra.mxu0 %v580
          %593 = vmatpush.bf16.msra.mxu0 %v579
          %594 = vmatmul.bf16.gmra.mxu0 %v584
          %v595 = vpop.f32.mrf.mxu0
          %v596 = vadd.f32 %v569, %v595
          %v597 = vpop.f32.mrf.mxu0
          %598 = vdwg.mxu0
          %v599 = vld [vmem:[%s5] sm:$0xf]
          %v600 = vld [vmem:[%s5 + $0x4] sm:$0xf]
          %v601 = vld [vmem:[%s5 + $0x8] sm:$0xf]
          %v602 = vld [vmem:[%s5 + $0xc] sm:$0xf]
          %v603 = vpack.c.bf16 %v596, %v596
          %v605 = vunpack.c.l.b16 %v603
          %v606 = vpack.c.b16 %v605, %v605
          %607 = vrot.lane.b32.xlu0 %v606, 96
          %v608 = vpop.permute.xlu0 %607
          %vm609 = vcmask 64512
          %v611 = vsel %vm609, %v603, 0
          %v614 = vsel %vm609, %v608, 0
          %616 = vmatpush.bf16.xpose.msra.mxu0 0
          %617 = vmatpush.bf16.xpose.msra.mxu0 0
          %618 = vmatpush.bf16.xpose.msra.mxu0 0
          %619 = vmatpush.bf16.xpose.msra.mxu0 0
          %620 = vmatpush.bf16.xpose.msra.mxu0 0
          %621 = vmatpush.bf16.xpose.msra.mxu0 0
          %622 = vmatpush.bf16.xpose.msra.mxu0 0
          %623 = vmatpush.bf16.xpose.msra.mxu0 %v614
          %624 = vmatmul.bf16.gmra.mxu0 %v611
          %v625 = vpop.f32.mrf.mxu0
          %v626 = vadd.f32 0.0, %v625
          %v627 = vpop.f32.mrf.mxu0
          %628 = vdwg.mxu0
          %v629 = vsel %vm609, %v626, -inf
          %630 = vmax.xlane.f32.xlu0 %v629
          %v631 = vpop.xlane.xlu0 %630
          %v632 = vsub.f32 %v626, %v631
          %v633 = vmul.f32 %v632, 1.442695
          %v634 = vpow.pop %v633
          %v635 = vsel %vm609, %v634, 0.0
          %636 = vadd.xlane.f32.xlu0 %v635
          %v637 = vpop.xlane.xlu0 %636
          %v638 = vrcp.pop %v637
          %v639 = vmul.f32 %v634, %v638
          %v640 = vpack.c.bf16 %v639, %v639
          %641 = vrot.lane.b32.xlu0 %v606, 64
          %v642 = vpop.permute.xlu0 %641
          %v644 = vsel %vm609, %v640, 0
          %vm646 = vcmask 1043456
          %v648 = vsel %vm646, %v642, 0
          %650 = vmatpush.bf16.msra.mxu0 0
          %651 = vmatpush.bf16.msra.mxu0 0
          %652 = vmatpush.bf16.msra.mxu0 0
          %653 = vmatpush.bf16.msra.mxu0 0
          %654 = vmatpush.bf16.msra.mxu0 0
          %655 = vmatpush.bf16.msra.mxu0 0
          %656 = vmatpush.bf16.msra.mxu0 0
          %657 = vmatpush.bf16.msra.mxu0 %v648
          %658 = vmatmul.bf16.gmra.mxu0 %v644
          %v659 = vpop.f32.mrf.mxu0
          %v660 = vadd.f32 0.0, %v659
          %v661 = vpop.f32.mrf.mxu0
          %662 = vdwg.mxu0
          %v663 = vpack.c.bf16 %v660, %v660
          %664 = vrot.lane.b32.xlu0 %v606, 120
          %v665 = vpop.permute.xlu0 %664
          %666 = vrot.lane.b32.xlu0 %v606, 88
          %v667 = vpop.permute.xlu0 %666
          %v669 = vsel %vm609, %v665, 0
          %v672 = vsel %vm609, %v667, 0
          %674 = vmatpush.bf16.xpose.msra.mxu0 0
          %675 = vmatpush.bf16.xpose.msra.mxu0 0
          %676 = vmatpush.bf16.xpose.msra.mxu0 0
          %677 = vmatpush.bf16.xpose.msra.mxu0 0
          %678 = vmatpush.bf16.xpose.msra.mxu0 0
          %679 = vmatpush.bf16.xpose.msra.mxu0 0
          %680 = vmatpush.bf16.xpose.msra.mxu0 0
          %681 = vmatpush.bf16.xpose.msra.mxu0 %v672
          %682 = vmatmul.bf16.gmra.mxu0 %v669
          %v683 = vpop.f32.mrf.mxu0
          %v684 = vadd.f32 0.0, %v683
          %v685 = vpop.f32.mrf.mxu0
          %686 = vdwg.mxu0
          %v687 = vsel %vm609, %v684, -inf
          %688 = vmax.xlane.f32.xlu0 %v687
          %v689 = vpop.xlane.xlu0 %688
          %v690 = vsub.f32 %v684, %v689
          %v691 = vmul.f32 %v690, 1.442695
          %v692 = vpow.pop %v691
          %v693 = vsel %vm609, %v692, 0.0
          %694 = vadd.xlane.f32.xlu0 %v693
          %v695 = vpop.xlane.xlu0 %694
          %v696 = vrcp.pop %v695
          %v697 = vmul.f32 %v692, %v696
          %v698 = vpack.c.bf16 %v697, %v697
          %699 = vrot.lane.b32.xlu0 %v606, 56
          %v700 = vpop.permute.xlu0 %699
          %v702 = vsel %vm609, %v698, 0
          %v705 = vsel %vm646, %v700, 0
          %707 = vmatpush.bf16.msra.mxu0 0
          %708 = vmatpush.bf16.msra.mxu0 0
          %709 = vmatpush.bf16.msra.mxu0 0
          %710 = vmatpush.bf16.msra.mxu0 0
          %711 = vmatpush.bf16.msra.mxu0 0
          %712 = vmatpush.bf16.msra.mxu0 0
          %713 = vmatpush.bf16.msra.mxu0 0
          %714 = vmatpush.bf16.msra.mxu0 %v705
          %715 = vmatmul.bf16.gmra.mxu0 %v702
          %v716 = vpop.f32.mrf.mxu0
          %v717 = vadd.f32 0.0, %v716
          %v718 = vpop.f32.mrf.mxu0
          %719 = vdwg.mxu0
          %v720 = vpack.c.bf16 %v717, %v717
          %v722 = vsel %vm609, %v720, 0
          %v725 = vsel %vm646, %v600, 0
          %727 = vmatpush.bf16.msra.mxu0 0
          %728 = vmatpush.bf16.msra.mxu0 0
          %729 = vmatpush.bf16.msra.mxu0 0
          %730 = vmatpush.bf16.msra.mxu0 0
          %731 = vmatpush.bf16.msra.mxu0 0
          %732 = vmatpush.bf16.msra.mxu0 0
          %733 = vmatpush.bf16.msra.mxu0 0
          %734 = vmatpush.bf16.msra.mxu0 %v725
          %735 = vmatmul.bf16.gmra.mxu0 %v722
          %v736 = vpop.f32.mrf.mxu0
          %v737 = vadd.f32 0.0, %v736
          %v738 = vpop.f32.mrf.mxu0
          %739 = vdwg.mxu0
          %v741 = vsel %vm609, %v663, 0
          %v744 = vsel %vm646, %v599, 0
          %746 = vmatpush.bf16.msra.mxu0 0
          %747 = vmatpush.bf16.msra.mxu0 0
          %748 = vmatpush.bf16.msra.mxu0 0
          %749 = vmatpush.bf16.msra.mxu0 0
          %750 = vmatpush.bf16.msra.mxu0 0
          %751 = vmatpush.bf16.msra.mxu0 0
          %752 = vmatpush.bf16.msra.mxu0 0
          %753 = vmatpush.bf16.msra.mxu0 %v744
          %754 = vmatmul.bf16.gmra.mxu0 %v741
          %v755 = vpop.f32.mrf.mxu0
          %v756 = vadd.f32 %v737, %v755
          %v757 = vpop.f32.mrf.mxu0
          %758 = vdwg.mxu0
          %759 = vrot.lane.b32.xlu0 %v606, 112
          %v760 = vpop.permute.xlu0 %759
          %761 = vrot.lane.b32.xlu0 %v606, 80
          %v762 = vpop.permute.xlu0 %761
          %v764 = vsel %vm609, %v760, 0
          %v767 = vsel %vm609, %v762, 0
          %769 = vmatpush.bf16.xpose.msra.mxu0 0
          %770 = vmatpush.bf16.xpose.msra.mxu0 0
          %771 = vmatpush.bf16.xpose.msra.mxu0 0
          %772 = vmatpush.bf16.xpose.msra.mxu0 0
          %773 = vmatpush.bf16.xpose.msra.mxu0 0
          %774 = vmatpush.bf16.xpose.msra.mxu0 0
          %775 = vmatpush.bf16.xpose.msra.mxu0 0
          %776 = vmatpush.bf16.xpose.msra.mxu0 %v767
          %777 = vmatmul.bf16.gmra.mxu0 %v764
          %v778 = vpop.f32.mrf.mxu0
          %v779 = vadd.f32 0.0, %v778
          %v780 = vpop.f32.mrf.mxu0
          %781 = vdwg.mxu0
          %v782 = vsel %vm609, %v779, -inf
          %783 = vmax.xlane.f32.xlu0 %v782
          %v784 = vpop.xlane.xlu0 %783
          %v785 = vsub.f32 %v779, %v784
          %v786 = vmul.f32 %v785, 1.442695
          %v787 = vpow.pop %v786
          %v788 = vsel %vm609, %v787, 0.0
          %789 = vadd.xlane.f32.xlu0 %v788
          %v790 = vpop.xlane.xlu0 %789
          %v791 = vrcp.pop %v790
          %v792 = vmul.f32 %v787, %v791
          %v793 = vpack.c.bf16 %v792, %v792
          %794 = vrot.lane.b32.xlu0 %v606, 48
          %v795 = vpop.permute.xlu0 %794
          %v797 = vsel %vm609, %v793, 0
          %v800 = vsel %vm646, %v795, 0
          %802 = vmatpush.bf16.msra.mxu0 0
          %803 = vmatpush.bf16.msra.mxu0 0
          %804 = vmatpush.bf16.msra.mxu0 0
          %805 = vmatpush.bf16.msra.mxu0 0
          %806 = vmatpush.bf16.msra.mxu0 0
          %807 = vmatpush.bf16.msra.mxu0 0
          %808 = vmatpush.bf16.msra.mxu0 0
          %809 = vmatpush.bf16.msra.mxu0 %v800
          %810 = vmatmul.bf16.gmra.mxu0 %v797
          %v811 = vpop.f32.mrf.mxu0
          %v812 = vadd.f32 0.0, %v811
          %v813 = vpop.f32.mrf.mxu0
          %814 = vdwg.mxu0
          %v815 = vpack.c.bf16 %v812, %v812
          %v817 = vsel %vm609, %v815, 0
          %v820 = vsel %vm646, %v601, 0
          %822 = vmatpush.bf16.msra.mxu0 0
          %823 = vmatpush.bf16.msra.mxu0 0
          %824 = vmatpush.bf16.msra.mxu0 0
          %825 = vmatpush.bf16.msra.mxu0 0
          %826 = vmatpush.bf16.msra.mxu0 0
          %827 = vmatpush.bf16.msra.mxu0 0
          %828 = vmatpush.bf16.msra.mxu0 0
          %829 = vmatpush.bf16.msra.mxu0 %v820
          %830 = vmatmul.bf16.gmra.mxu0 %v817
          %v831 = vpop.f32.mrf.mxu0
          %v832 = vadd.f32 0.0, %v831
          %v833 = vpop.f32.mrf.mxu0
          %834 = vdwg.mxu0
          %v835 = vadd.f32 %v756, %v832
          %836 = vrot.lane.b32.xlu0 %v606, 104
          %v837 = vpop.permute.xlu0 %836
          %838 = vrot.lane.b32.xlu0 %v606, 72
          %v839 = vpop.permute.xlu0 %838
          %v841 = vsel %vm609, %v837, 0
          %v844 = vsel %vm609, %v839, 0
          %846 = vmatpush.bf16.xpose.msra.mxu0 0
          %847 = vmatpush.bf16.xpose.msra.mxu0 0
          %848 = vmatpush.bf16.xpose.msra.mxu0 0
          %849 = vmatpush.bf16.xpose.msra.mxu0 0
          %850 = vmatpush.bf16.xpose.msra.mxu0 0
          %851 = vmatpush.bf16.xpose.msra.mxu0 0
          %852 = vmatpush.bf16.xpose.msra.mxu0 0
          %853 = vmatpush.bf16.xpose.msra.mxu0 %v844
          %854 = vmatmul.bf16.gmra.mxu0 %v841
          %v855 = vpop.f32.mrf.mxu0
          %v856 = vadd.f32 0.0, %v855
          %v857 = vpop.f32.mrf.mxu0
          %858 = vdwg.mxu0
          %v859 = vsel %vm609, %v856, -inf
          %860 = vmax.xlane.f32.xlu0 %v859
          %v861 = vpop.xlane.xlu0 %860
          %v862 = vsub.f32 %v856, %v861
          %v863 = vmul.f32 %v862, 1.442695
          %v864 = vpow.pop %v863
          %v865 = vsel %vm609, %v864, 0.0
          %866 = vadd.xlane.f32.xlu0 %v865
          %v867 = vpop.xlane.xlu0 %866
          %v868 = vrcp.pop %v867
          %v869 = vmul.f32 %v864, %v868
          %v870 = vpack.c.bf16 %v869, %v869
          %871 = vrot.lane.b32.xlu0 %v606, 40
          %v872 = vpop.permute.xlu0 %871
          %v874 = vsel %vm609, %v870, 0
          %v877 = vsel %vm646, %v872, 0
          %879 = vmatpush.bf16.msra.mxu0 0
          %880 = vmatpush.bf16.msra.mxu0 0
          %881 = vmatpush.bf16.msra.mxu0 0
          %882 = vmatpush.bf16.msra.mxu0 0
          %883 = vmatpush.bf16.msra.mxu0 0
          %884 = vmatpush.bf16.msra.mxu0 0
          %885 = vmatpush.bf16.msra.mxu0 0
          %886 = vmatpush.bf16.msra.mxu0 %v877
          %887 = vmatmul.bf16.gmra.mxu0 %v874
          %v888 = vpop.f32.mrf.mxu0
          %v889 = vadd.f32 0.0, %v888
          %v890 = vpop.f32.mrf.mxu0
          %891 = vdwg.mxu0
          %v892 = vpack.c.bf16 %v889, %v889
          %v894 = vsel %vm609, %v892, 0
          %v897 = vsel %vm646, %v602, 0
          %899 = vmatpush.bf16.msra.mxu0 0
          %900 = vmatpush.bf16.msra.mxu0 0
          %901 = vmatpush.bf16.msra.mxu0 0
          %902 = vmatpush.bf16.msra.mxu0 0
          %903 = vmatpush.bf16.msra.mxu0 0
          %904 = vmatpush.bf16.msra.mxu0 0
          %905 = vmatpush.bf16.msra.mxu0 0
          %906 = vmatpush.bf16.msra.mxu0 %v897
          %907 = vmatmul.bf16.gmra.mxu0 %v894
          %v908 = vpop.f32.mrf.mxu0
          %v909 = vadd.f32 0.0, %v908
          %v910 = vpop.f32.mrf.mxu0
          %911 = vdwg.mxu0
          %v912 = vadd.f32 %v835, %v909
          %v913 = vld [vmem:[%s6] sm:$0x1]
          %v915 = vperm.slane %v913, 0
          %v917 = vadd.f32 %v912, %v915
          %v918 = vadd.f32 %v521, %v917
          %919 = vst.msk [vmem:[#allocation2] sm:$0xff] %vm524, %v918
          %v920 = vld [vmem:[%s7] sm:$0x1]
          %v921 = vld [vmem:[%s8] sm:$0x1]
          %v922 = vsel %vm524, %v918, 0.0
          %923 = vadd.xlane.f32.xlu0 %v922
          %v924 = vpop.xlane.xlu0 %923
          %v925 = vmul.f32 %v924, %v534
          %v926 = vsub.f32 %v918, %v925
          %v927 = vmul.f32 %v926, %v926
          %v928 = vsel %vm524, %v927, 0.0
          %929 = vadd.xlane.f32.xlu0 %v928
          %v930 = vpop.xlane.xlu0 %929
          %v931 = vmul.f32 %v930, %v534
          %v932 = vadd.f32 %v931, 1e-05
          %v933 = vrsqrt.pop %v932
          %v934 = vmul.f32 %v933, %v932
          %v935 = vmul.f32 %v934, %v933
          %v936 = vmul.f32 0.5, %v935
          %v937 = vsub.f32 1.5, %v936
          %v938 = vmul.f32 %v933, %v937
          %vm939 = vweird.f32 %v932
          %vm940 = vweird.f32 %v933
          %vm941 = vmor %vm939, %vm940
          %v942 = vsel %vm941, %v933, %v938
          %v943 = vmul.f32 %v926, %v942
          %v945 = vperm.slane %v920, 0
          %v947 = vmul.f32 %v943, %v945
          %v949 = vperm.slane %v921, 0
          %v951 = vadd.f32 %v947, %v949
          %v952 = vpack.c.bf16 %v951, %v951
          %vm953 = vcmask 257024
          %954 = vst.msk [vmem:[#allocation3] sm:$0xf] %vm953, %v952
          %955 = vst.msk [vmem:[#allocation4] sm:$0xff] %vm524, 0.0
        $region80: #{transformer_forward.2} parent=71 // pred_fallthru
          _
        %v956 = vld [vmem:[#allocation3] sm:$0xf]
        %v957 = vld [vmem:[%s502] sm:$0xf]
        %v958 = vld [vmem:[%s502 + $0x4] sm:$0xf]
        %v959 = vld [vmem:[%s502 + $0x8] sm:$0xf]
        %v960 = vld [vmem:[%s502 + $0xc] sm:$0xf]
        %v961 = vld [vmem:[%s505] sm:$0x1]
        %v963 = vperm.slane %v961, 0
        %v969 = vunpack.c.l.b16 %v957
        %v970 = vunpack.c.l.b16 %v958
        %v971 = vunpack.c.l.b16 %v959
        %v972 = vunpack.c.l.b16 %v960
        %v973 = vpack.c.b16 %v970, %v969
        %v974 = vpack.c.b16 %v972, %v971
        %vm977 = vcmask 261120
        %v979 = vsel %vm977, %v956, 0
        %981 = vmatpush.bf16.msra.mxu0 0
        %982 = vmatpush.bf16.msra.mxu0 0
        %983 = vmatpush.bf16.msra.mxu0 0
        %984 = vmatpush.bf16.msra.mxu0 0
        %985 = vmatpush.bf16.msra.mxu0 0
        %986 = vmatpush.bf16.msra.mxu0 0
        %987 = vmatpush.bf16.msra.mxu0 %v974
        %988 = vmatpush.bf16.msra.mxu0 %v973
        %989 = vmatmul.bf16.gmra.mxu0 %v979
        %v990 = vpop.f32.mrf.mxu0
        %v991 = vadd.f32 %v963, %v990
        %v992 = vpop.f32.mrf.mxu0
        %993 = vdwg.mxu0
        %v994 = vmul.f32 %v991, 1.702
        %v995 = vxor.u32 %v994, 2147483648
        %v996 = vmul.f32 %v995, 1.442695
        %v997 = vpow.pop %v996
        %v998 = vadd.f32 %v997, 1.0
        %v999 = vrcp.pop %v998
        %v1000 = vmul.f32 %v998, %v999
        %v1001 = vsub.f32 1.0, %v1000
        %v1002 = vmul.f32 %v999, %v1001
        %v1003 = vadd.f32 %v999, %v1002
        %vm1004 = vweird.f32 %v998
        %vm1005 = vweird.f32 %v999
        %vm1006 = vmor %vm1004, %vm1005
        %v1007 = vsel %vm1006, %v999, %v1003
        %v1008 = vand.u32 2147483647, %v998
        %vm1009 = vcmp.eq.f32.partialorder %v1008, 8.507059e+37
        %v1010 = vand.u32 %v998, 2147483648
        %v1011 = vor.u32 1.1754944e-38, %v1010
        %v1012 = vsel %vm1009, %v1011, %v1007
        %v1013 = vmul.f32 1.0, %v1012
        %v1014 = vmul.f32 %v991, %v1013
        %v1015 = vld [vmem:[#allocation4] sm:$0xff]
        %v1016 = vpack.c.bf16 %v1014, %v1014
        %v1017 = vld [vmem:[%s510] sm:$0xf]
        %v1018 = vld [vmem:[%s510 + $0x4] sm:$0xf]
        %v1019 = vld [vmem:[%s510 + $0x8] sm:$0xf]
        %v1020 = vld [vmem:[%s510 + $0xc] sm:$0xf]
        %v1021 = vld [vmem:[%s510 + $0x10] sm:$0xf]
        %v1022 = vld [vmem:[%s510 + $0x14] sm:$0xf]
        %v1023 = vld [vmem:[%s510 + $0x18] sm:$0xf]
        %v1024 = vld [vmem:[%s510 + $0x1c] sm:$0xf]
        %v1025 = vld [vmem:[%s510 + $0x20] sm:$0xf]
        %v1026 = vld [vmem:[%s510 + $0x24] sm:$0xf]
        %v1027 = vld [vmem:[%s510 + $0x28] sm:$0xf]
        %v1028 = vld [vmem:[%s510 + $0x2c] sm:$0xf]
        %v1029 = vld [vmem:[%s510 + $0x30] sm:$0xf]
        %v1030 = vld [vmem:[%s510 + $0x34] sm:$0xf]
        %v1031 = vld [vmem:[%s510 + $0x38] sm:$0xf]
        %v1032 = vld [vmem:[%s510 + $0x3c] sm:$0xf]
        %v1049 = vunpack.c.l.b16 %v1017
        %v1050 = vunpack.c.l.b16 %v1018
        %v1051 = vunpack.c.l.b16 %v1019
        %v1052 = vunpack.c.l.b16 %v1020
        %v1053 = vunpack.c.l.b16 %v1021
        %v1054 = vunpack.c.l.b16 %v1022
        %v1055 = vunpack.c.l.b16 %v1023
        %v1056 = vunpack.c.l.b16 %v1024
        %v1057 = vunpack.c.l.b16 %v1025
        %v1058 = vunpack.c.l.b16 %v1026
        %v1059 = vunpack.c.l.b16 %v1027
        %v1060 = vunpack.c.l.b16 %v1028
        %v1061 = vunpack.c.l.b16 %v1029
        %v1062 = vunpack.c.l.b16 %v1030
        %v1063 = vunpack.c.l.b16 %v1031
        %v1064 = vunpack.c.l.b16 %v1032
        %v1065 = vpack.c.b16 %v1050, %v1049
        %v1066 = vpack.c.b16 %v1052, %v1051
        %v1067 = vpack.c.b16 %v1054, %v1053
        %v1068 = vpack.c.b16 %v1056, %v1055
        %v1069 = vpack.c.b16 %v1058, %v1057
        %v1070 = vpack.c.b16 %v1060, %v1059
        %v1071 = vpack.c.b16 %v1062, %v1061
        %v1072 = vpack.c.b16 %v1064, %v1063
        %1081 = vmatpush.bf16.msra.mxu0 %v1072
        %1082 = vmatpush.bf16.msra.mxu0 %v1071
        %1083 = vmatpush.bf16.msra.mxu0 %v1070
        %1084 = vmatpush.bf16.msra.mxu0 %v1069
        %1085 = vmatpush.bf16.msra.mxu0 %v1068
        %1086 = vmatpush.bf16.msra.mxu0 %v1067
        %1087 = vmatpush.bf16.msra.mxu0 %v1066
        %1088 = vmatpush.bf16.msra.mxu0 %v1065
        %1089 = vmatmul.bf16.gmra.mxu0 %v1016
        %v1090 = vpop.f32.mrf.mxu0
        %v1091 = vadd.f32 0.0, %v1090
        %v1092 = vpop.f32.mrf.mxu0
        %1093 = vdwg.mxu0
        %v1094 = vadd.f32 %v1015, %v1091
        %1095 = vst.msk [vmem:[#allocation4] sm:$0xff] %vm977, %v1094
        // Predicated region
        $region81: #{transformer_forward.2} parent=71 // pred_check
          %p1096 = pneg %p517
        $region82: #{transformer_forward.2} parent=71 // pred_check_branch
          %1098 = sbr.rel (%p1096) target = $region84
        $region83: #{transformer_forward.2} parent=71 // pred_region
          %v1099 = vld [vmem:[#allocation2] sm:$0xff]
          %v1100 = vld [vmem:[#allocation4] sm:$0xff]
          %v1101 = vadd.f32 %v1099, %v1100
          %v1102 = vld [vmem:[%s12] sm:$0x1]
          %v1104 = vperm.slane %v1102, 0
          %v1106 = vadd.f32 %v1101, %v1104
          %1107 = vst.msk [vmem:[%s515] sm:$0xff] %vm977, %v1106
        $region84: #{transformer_forward.2} parent=71 // pred_fallthru
          _
        %p1108 = scmp.lt.s32.totalorder %s29, 1
        %s1109 = scalar_select %p1108, %s29, 1
        %s1110 = smul.addr %s1109, 8
        %s1111 = scalar_lea.vmem %s13, %s1110
        // Predicated region
        $region85: #{transformer_forward.2} parent=71 // pred_check
          %p1112 = pneg %p348
        $region86: #{transformer_forward.2} parent=71 // pred_check_branch
          %1114 = sbr.rel (%p1112) target = $region88
        $region87: #{transformer_forward.2} parent=71 // pred_region
          _
        $region88: #{transformer_forward.2} parent=71 // pred_fallthru
          _
      $region72: #{transformer_forward.2} parent=5 // pred_fallthru
        _
      %p1115 = scmp.le.s32.totalorder 2, %s20
      // Predicated region
      $region89: #{transformer_forward.2} parent=5 // pred_check
        %p1116 = pneg %p1115
      $region90: #{transformer_forward.2} parent=5 // pred_check_branch
        %1118 = sbr.rel (%p1116) target = $region92
      $region91: #{transformer_forward.2} parent=5 // pred_region
        %s1119 = ssub.s32 %s20, 2
        // Predicated region
        $region93: #{transformer_forward.2} parent=91 // pred_check
          %p1120 = pneg %p354
        $region94: #{transformer_forward.2} parent=91 // pred_check_branch
          %1122 = sbr.rel (%p1120) target = $region96
        $region95: #{transformer_forward.2} parent=91 // pred_region
          %p1123 = scmp.lt.s32.totalorder %s31, 1
          %s1124 = scalar_select %p1123, %s31, 1
          %s1125 = smul.addr %s1124, 8
          %s1126 = scalar_lea.vmem %s13, %s1125
        $region96: #{transformer_forward.2} parent=91 // pred_fallthru
          _
      $region92: #{transformer_forward.2} parent=5 // pred_fallthru
        _
    $region6: #{transformer_forward.2} parent=1 // loop_footer
      %s24 = sadd.s32 1, %s20
    $region7: #{transformer_forward.2} parent=1 // loop_footer_branch
      %19 = sbr.rel target = $region3
    $region8: #{transformer_forward.2} parent=1 // loop_exit
      _
    %1127 = vsyncpa [#allocation6], 1
    %s1128 = scalar_lea.sflag [#allocation6], 1
    %1129 = vsyncpa %s1128, 1

</llo_original>
